<compile_context>
chip_gen: v6e
topology: v6e:2x2x1
jax: 0.10.0
libtpu: 0.0.40
codegen_flags: <defaults>
</compile_context>

<pallas_src>
import jax
import jax.numpy as jnp
from jax.experimental import pallas as pl
from jax.experimental.pallas import tpu as pltpu


def _round_up(x, m):
    return ((x + m - 1) // m) * m


def ner_lstm_kernel(emb_ref,        # (T, E)     one sequence (batch via grid)
                    wx_ref,         # (E, 8*Hp)  fwd+bwd input projection, gate-padded
                    bx_ref,         # (1, 8*Hp)  fused (b_ih + b_hh) biases, gate-padded
                    whh_f_ref,      # (Hp, 4*Hp)
                    whh_b_ref,      # (Hp, 4*Hp)
                    wout_f_ref,     # (Hp, Np)
                    wout_b_ref,     # (Hp, Np)
                    bout_ref,       # (1, Np)
                    out_ref,        # (T, Np)    batch-first output block
                    gxf_scr,        # (T, 4*Hp)  precomputed forward input gates
                    gxb_scr,        # (T, 4*Hp)  precomputed backward input gates
                    hf_scr,         # (T, Hp)
                    hb_scr):        # (T, Hp)
    T = emb_ref.shape[0]
    Hp = whh_f_ref.shape[0]

    # ---- Hoisted input projection: ONE matmul covers both directions and all
    # timesteps, with the gate biases folded in (computed once, not per step).
    gx = (jnp.dot(emb_ref[...], wx_ref[...], preferred_element_type=jnp.float32)
          + bx_ref[...])                                    # (T, 8*Hp)
    gxf_scr[...] = gx[:, :4 * Hp]
    gxb_scr[...] = gx[:, 4 * Hp:]

    whh_f = whh_f_ref[...]
    whh_b = whh_b_ref[...]

    def lstm_gates(g, c):
        # Each gate occupies its own 128-lane-aligned block (Hp = padded Hd),
        # so these slices are plain aligned vreg selects (no cross-lane work).
        i_g = jax.nn.sigmoid(g[:, 0 * Hp:1 * Hp])
        f_g = jax.nn.sigmoid(g[:, 1 * Hp:2 * Hp])
        g_g = jnp.tanh(g[:, 2 * Hp:3 * Hp])
        o_g = jax.nn.sigmoid(g[:, 3 * Hp:4 * Hp])
        c_n = f_g * c + i_g * g_g
        h_n = o_g * jnp.tanh(c_n)
        return h_n, c_n

    def one_step(t, carry):
        # Fused forward step t and backward step T-1-t (independent carries).
        h_f, c_f, h_b, c_b = carry
        tb = T - 1 - t
        g_f = gxf_scr[pl.ds(t, 1), :] + jnp.dot(
            h_f, whh_f, preferred_element_type=jnp.float32)
        g_b = gxb_scr[pl.ds(tb, 1), :] + jnp.dot(
            h_b, whh_b, preferred_element_type=jnp.float32)
        h_f, c_f = lstm_gates(g_f, c_f)
        h_b, c_b = lstm_gates(g_b, c_b)
        hf_scr[pl.ds(t, 1), :] = h_f
        hb_scr[pl.ds(tb, 1), :] = h_b
        return (h_f, c_f, h_b, c_b)

    zeros = jnp.zeros((1, Hp), jnp.float32)
    carry = (zeros, zeros, zeros, zeros)

    # Unroll the recurrence (fully for small T, by blocks of UNROLL otherwise)
    # so the LLO scheduler sees across timesteps.
    UNROLL = 8 if T % 8 == 0 else (4 if T % 4 == 0 else (2 if T % 2 == 0 else 1))
    if T == UNROLL:
        for t in range(T):
            carry = one_step(t, carry)
    else:
        def block_body(s, c):
            for u in range(UNROLL):
                c = one_step(s * UNROLL + u, c)
            return c
        jax.lax.fori_loop(0, T // UNROLL, block_body, carry)

    # TODO(synk): dropout is identity (eval mode); training-mode dropout not implemented.

    # ---- hidden2tag with pre-split output weights: no concat, no reshape.
    out_ref[...] = (jnp.dot(hf_scr[...], wout_f_ref[...],
                            preferred_element_type=jnp.float32)
                    + jnp.dot(hb_scr[...], wout_b_ref[...],
                              preferred_element_type=jnp.float32)
                    + bout_ref[...])


def ner_lstm_forward(x_ids, params):
    """x_ids: int32 (B, T) token ids.  Returns (B, T, n_tags) float32."""
    Hd, Hp, Np, n_tags = params["dims"]
    emb = params["emb_table"][x_ids].astype(jnp.float32)     # (B, T, E) batch-first
    B, T, E = emb.shape

    out_padded = pl.pallas_call(
        ner_lstm_kernel,
        out_shape=jax.ShapeDtypeStruct((B, T, Np), jnp.float32),
        grid=(B,),
        in_specs=[
            pl.BlockSpec((None, T, E), lambda b: (b, 0, 0)),      # embeddings
            pl.BlockSpec((E, 8 * Hp), lambda b: (0, 0)),          # W_x (both dirs)
            pl.BlockSpec((1, 8 * Hp), lambda b: (0, 0)),          # fused gate biases
            pl.BlockSpec((Hp, 4 * Hp), lambda b: (0, 0)),         # W_hh forward
            pl.BlockSpec((Hp, 4 * Hp), lambda b: (0, 0)),         # W_hh backward
            pl.BlockSpec((Hp, Np), lambda b: (0, 0)),             # W_out forward half
            pl.BlockSpec((Hp, Np), lambda b: (0, 0)),             # W_out backward half
            pl.BlockSpec((1, Np), lambda b: (0, 0)),              # b_out
        ],
        out_specs=pl.BlockSpec((None, T, Np), lambda b: (b, 0, 0)),
        scratch_shapes=[
            pltpu.VMEM((T, 4 * Hp), jnp.float32),   # precomputed fwd input gates
            pltpu.VMEM((T, 4 * Hp), jnp.float32),   # precomputed bwd input gates
            pltpu.VMEM((T, Hp), jnp.float32),       # fwd hidden states
            pltpu.VMEM((T, Hp), jnp.float32),       # bwd hidden states
        ],
        compiler_params=pltpu.CompilerParams(
            dimension_semantics=("parallel",),       # batch grid -> both TCs on v7x
            vmem_limit_bytes=32 * 1024 * 1024,
        ),
    )(emb,
      params["w_x"], params["b_x"],
      params["whh_f"], params["whh_b"],
      params["w_out_f"], params["w_out_b"], params["b_out"])

    return out_padded[:, :, :n_tags]                 # slice off lane padding


def make_params(key, embedding_dim, hidden_dim, n_tags):
    """Deterministic parameter init (shapes follow the PyTorch module) plus
    kernel-layout (gate-padded, pre-transposed, pre-split) copies."""
    assert embedding_dim == hidden_dim, "LSTM input_size must match embedding output dim"
    Hd = hidden_dim // 2
    Hp = _round_up(Hd, 128)       # each gate on its own 128-lane block
    Np = _round_up(n_tags, 128)   # lane-dense output block
    ks = jax.random.split(key, 12)
    k_lstm = 1.0 / jnp.sqrt(Hd)
    k_lin = 1.0 / jnp.sqrt(hidden_dim)

    def unif(k, shape, scale):
        return jax.random.uniform(k, shape, jnp.float32, -scale, scale)

    # Embedding(embedding_dim, hidden_dim): table (embedding_dim, hidden_dim), N(0,1)
    emb_table = jax.random.normal(ks[0], (embedding_dim, hidden_dim), jnp.float32)

    # PyTorch layouts: weight_ih (4Hd, E), weight_hh (4Hd, Hd), biases (4Hd,)
    wih_f = unif(ks[1], (4 * Hd, embedding_dim), k_lstm)
    whh_f = unif(ks[2], (4 * Hd, Hd), k_lstm)
    bih_f = unif(ks[3], (4 * Hd,), k_lstm)
    bhh_f = unif(ks[4], (4 * Hd,), k_lstm)
    wih_b = unif(ks[5], (4 * Hd, embedding_dim), k_lstm)
    whh_b = unif(ks[6], (4 * Hd, Hd), k_lstm)
    bih_b = unif(ks[7], (4 * Hd,), k_lstm)
    bhh_b = unif(ks[8], (4 * Hd,), k_lstm)
    # hidden2tag Linear(hidden_dim, n_tags): weight (n_tags, H), bias (n_tags,)
    w_tag = unif(ks[9], (n_tags, hidden_dim), k_lin)
    b_tag = unif(ks[10], (n_tags,), k_lin)

    def pad_ih(w):    # (4Hd, E) -> (E, 4Hp), gate g in lanes [g*Hp, g*Hp+Hd)
        E = w.shape[1]
        out = jnp.zeros((E, 4 * Hp), jnp.float32)
        for g in range(4):
            out = out.at[:, g * Hp:g * Hp + Hd].set(w[g * Hd:(g + 1) * Hd, :].T)
        return out

    def pad_hh(w):    # (4Hd, Hd) -> (Hp, 4Hp)
        out = jnp.zeros((Hp, 4 * Hp), jnp.float32)
        for g in range(4):
            out = out.at[:Hd, g * Hp:g * Hp + Hd].set(w[g * Hd:(g + 1) * Hd, :].T)
        return out

    def pad_bias(b):  # (4Hd,) -> (1, 4Hp)
        out = jnp.zeros((1, 4 * Hp), jnp.float32)
        for g in range(4):
            out = out.at[0, g * Hp:g * Hp + Hd].set(b[g * Hd:(g + 1) * Hd])
        return out

    w_x = jnp.concatenate([pad_ih(wih_f), pad_ih(wih_b)], axis=1)                  # (E, 8Hp)
    b_x = jnp.concatenate([pad_bias(bih_f + bhh_f), pad_bias(bih_b + bhh_b)], axis=1)

    w_out_f = jnp.zeros((Hp, Np), jnp.float32).at[:Hd, :n_tags].set(w_tag[:, :Hd].T)
    w_out_b = jnp.zeros((Hp, Np), jnp.float32).at[:Hd, :n_tags].set(w_tag[:, Hd:].T)
    b_out = jnp.zeros((1, Np), jnp.float32).at[0, :n_tags].set(b_tag)

    return {
        "emb_table": emb_table,
        "dims": (Hd, Hp, Np, n_tags),
        "w_x": w_x, "b_x": b_x,
        "whh_f": pad_hh(whh_f), "whh_b": pad_hh(whh_b),
        "w_out_f": w_out_f, "w_out_b": w_out_b, "b_out": b_out,
        # raw PyTorch-layout copies for the pure-JAX reference
        "_raw": (wih_f, whh_f, bih_f, bhh_f, wih_b, whh_b, bih_b, bhh_b, w_tag, b_tag),
    }


def reference_forward(x_ids, params):
    """Pure-JAX reference mirroring PyTorch nn.LSTM + Linear (eval mode)."""
    emb = params["emb_table"][x_ids]           # (B, T, E)
    wih_f, whh_f, bih_f, bhh_f, wih_b, whh_b, bih_b, bhh_b, w_tag, b_tag = params["_raw"]
    B, T, E = emb.shape
    Hd = whh_f.shape[1]

    def run_dir(seq_tbe, wih, whh, b):
        def step(carry, x_t):
            h, c = carry
            g = x_t @ wih.T + h @ whh.T + b
            i = jax.nn.sigmoid(g[:, :Hd])
            f = jax.nn.sigmoid(g[:, Hd:2 * Hd])
            gg = jnp.tanh(g[:, 2 * Hd:3 * Hd])
            o = jax.nn.sigmoid(g[:, 3 * Hd:])
            c = f * c + i * gg
            h = o * jnp.tanh(c)
            return (h, c), h
        init = (jnp.zeros((B, Hd), jnp.float32), jnp.zeros((B, Hd), jnp.float32))
        _, hs = jax.lax.scan(step, init, seq_tbe)
        return hs                              # (T, B, Hd)

    seq = jnp.swapaxes(emb, 0, 1)              # (T, B, E)
    hf = run_dir(seq, wih_f, whh_f, bih_f + bhh_f)
    hb = run_dir(seq[::-1], wih_b, whh_b, bih_b + bhh_b)[::-1]
    hs = jnp.concatenate([hf, hb], axis=-1)    # (T, B, 2Hd)
    out = hs @ w_tag.T + b_tag                 # (T, B, n_tags)
    return jnp.swapaxes(out, 0, 1)             # (B, T, n_tags)


if __name__ == "__main__":
    # Module-consistent small shapes: embedding_dim == hidden_dim == 32,
    # bidirectional hidden = 16 per direction, seq=8, batch=2, 5 tags.
    embedding_dim = 32
    hidden_dim = 32
    n_tags = 5
    B, T = 2, 8

    key = jax.random.PRNGKey(0)
    k_param, k_ids = jax.random.split(key)
    params = make_params(k_param, embedding_dim, hidden_dim, n_tags)

    # token ids must index the Embedding(embedding_dim, ...) table
    x_ids = jax.random.randint(k_ids, (B, T), 0, embedding_dim, dtype=jnp.int32)

    out = jax.block_until_ready(ner_lstm_forward(x_ids, params))
    ref = jax.block_until_ready(reference_forward(x_ids, params))

    assert out.shape == (B, T, n_tags), out.shape
    assert jnp.allclose(out, ref, atol=1e-4, rtol=1e-4), float(jnp.max(jnp.abs(out - ref)))
    print("KERNEL_OK")
</pallas_src>

<mosaic_0001>
module attributes {stable_mosaic.version = 11 : i64} {
  func.func @ner_lstm_kernel(%arg0: i32, %arg1: memref<1x8x32xf32, #tpu.memory_space<vmem>>, %arg2: memref<32x1024xf32, #tpu.memory_space<vmem>>, %arg3: memref<1x1024xf32, #tpu.memory_space<vmem>>, %arg4: memref<128x512xf32, #tpu.memory_space<vmem>>, %arg5: memref<128x512xf32, #tpu.memory_space<vmem>>, %arg6: memref<128x128xf32, #tpu.memory_space<vmem>>, %arg7: memref<128x128xf32, #tpu.memory_space<vmem>>, %arg8: memref<1x128xf32, #tpu.memory_space<vmem>>, %arg9: memref<1x8x128xf32, #tpu.memory_space<vmem>>, %arg10: memref<8x512xf32, #tpu.memory_space<vmem>>, %arg11: memref<8x512xf32, #tpu.memory_space<vmem>>, %arg12: memref<8x128xf32, #tpu.memory_space<vmem>>, %arg13: memref<8x128xf32, #tpu.memory_space<vmem>>) attributes {dimension_semantics = [#tpu.dimension_semantics<parallel>], iteration_bounds = array<i64: 2>, scalar_prefetch = 0 : i64, scratch_operands = 4 : i64, tpu.core_type = #tpu.core_type<tc>, window_params = [{transform_indices = @transform_0, window_bounds = array<i64: 1, 8, 32>}, {pipeline_mode = #tpu.pipeline_mode<synchronous>, transform_indices = @transform_1, window_bounds = array<i64: 32, 1024>}, {pipeline_mode = #tpu.pipeline_mode<synchronous>, transform_indices = @transform_2, window_bounds = array<i64: 1, 1024>}, {pipeline_mode = #tpu.pipeline_mode<synchronous>, transform_indices = @transform_3, window_bounds = array<i64: 128, 512>}, {pipeline_mode = #tpu.pipeline_mode<synchronous>, transform_indices = @transform_4, window_bounds = array<i64: 128, 512>}, {pipeline_mode = #tpu.pipeline_mode<synchronous>, transform_indices = @transform_5, window_bounds = array<i64: 128, 128>}, {pipeline_mode = #tpu.pipeline_mode<synchronous>, transform_indices = @transform_6, window_bounds = array<i64: 128, 128>}, {pipeline_mode = #tpu.pipeline_mode<synchronous>, transform_indices = @transform_7, window_bounds = array<i64: 1, 128>}, {transform_indices = @transform_8, window_bounds = array<i64: 1, 8, 128>}]} {
    %c0 = arith.constant 0 : index
    %c0_0 = arith.constant 0 : index
    %c0_1 = arith.constant 0 : index
    %0 = vector.load %arg1[%c0, %c0_0, %c0_1] : memref<1x8x32xf32, #tpu.memory_space<vmem>>, vector<1x8x32xf32>
    %1 = vector.shape_cast %0 : vector<1x8x32xf32> to vector<8x32xf32>
    %c0_2 = arith.constant 0 : index
    %c0_3 = arith.constant 0 : index
    %2 = vector.load %arg2[%c0_2, %c0_3] : memref<32x1024xf32, #tpu.memory_space<vmem>>, vector<32x1024xf32>
    %cst = arith.constant dense<0.000000e+00> : vector<8x1024xf32>
    %3 = tpu.matmul %1, %2, %cst {dimension_numbers = #tpu.dot_dimension_numbers<[1], [0], [0], [1], [0, 0, 1, 1], [], []>} : vector<8x32xf32>, vector<32x1024xf32>, vector<8x1024xf32> -> vector<8x1024xf32>
    %c0_4 = arith.constant 0 : index
    %c0_5 = arith.constant 0 : index
    %4 = vector.load %arg3[%c0_4, %c0_5] : memref<1x1024xf32, #tpu.memory_space<vmem>>, vector<1x1024xf32>
    %5 = vector.broadcast %4 : vector<1x1024xf32> to vector<8x1024xf32>
    %6 = arith.addf %3, %5 : vector<8x1024xf32>
    %7 = vector.extract_strided_slice %6 {offsets = [0, 0], sizes = [8, 512], strides = [1, 1]} : vector<8x1024xf32> to vector<8x512xf32>
    %c0_6 = arith.constant 0 : index
    %c0_7 = arith.constant 0 : index
    %8 = vector.load %arg10[%c0_6, %c0_7] : memref<8x512xf32, #tpu.memory_space<vmem>>, vector<8x512xf32>
    tpu.vector_store %arg10[%c0_6, %c0_7], %7 {strides = array<i32>} : memref<8x512xf32, #tpu.memory_space<vmem>>, vector<8x512xf32>,
    %9 = vector.extract_strided_slice %6 {offsets = [0, 512], sizes = [8, 512], strides = [1, 1]} : vector<8x1024xf32> to vector<8x512xf32>
    %c0_8 = arith.constant 0 : index
    %c0_9 = arith.constant 0 : index
    %10 = vector.load %arg11[%c0_8, %c0_9] : memref<8x512xf32, #tpu.memory_space<vmem>>, vector<8x512xf32>
    tpu.vector_store %arg11[%c0_8, %c0_9], %9 {strides = array<i32>} : memref<8x512xf32, #tpu.memory_space<vmem>>, vector<8x512xf32>,
    %c0_10 = arith.constant 0 : index
    %c0_11 = arith.constant 0 : index
    %11 = vector.load %arg4[%c0_10, %c0_11] : memref<128x512xf32, #tpu.memory_space<vmem>>, vector<128x512xf32>
    %c0_12 = arith.constant 0 : index
    %c0_13 = arith.constant 0 : index
    %12 = vector.load %arg5[%c0_12, %c0_13] : memref<128x512xf32, #tpu.memory_space<vmem>>, vector<128x512xf32>
    %cst_14 = arith.constant 0.000000e+00 : f32
    %13 = vector.broadcast %cst_14 : f32 to vector<1x128xf32>
    %c0_15 = arith.constant 0 : index
    %c0_16 = arith.constant 0 : index
    %14 = vector.load %arg10[%c0_15, %c0_16] : memref<8x512xf32, #tpu.memory_space<vmem>>, vector<1x512xf32>
    %cst_17 = arith.constant dense<0.000000e+00> : vector<1x512xf32>
    %15 = tpu.matmul %13, %11, %cst_17 {dimension_numbers = #tpu.dot_dimension_numbers<[1], [0], [0], [1], [0, 0, 1, 1], [], []>} : vector<1x128xf32>, vector<128x512xf32>, vector<1x512xf32> -> vector<1x512xf32>
    %16 = arith.addf %14, %15 : vector<1x512xf32>
    %c7 = arith.constant 7 : index
    %c0_18 = arith.constant 0 : index
    %17 = vector.load %arg11[%c7, %c0_18] : memref<8x512xf32, #tpu.memory_space<vmem>>, vector<1x512xf32>
    %cst_19 = arith.constant dense<0.000000e+00> : vector<1x512xf32>
    %18 = tpu.matmul %13, %12, %cst_19 {dimension_numbers = #tpu.dot_dimension_numbers<[1], [0], [0], [1], [0, 0, 1, 1], [], []>} : vector<1x128xf32>, vector<128x512xf32>, vector<1x512xf32> -> vector<1x512xf32>
    %19 = arith.addf %17, %18 : vector<1x512xf32>
    %20 = vector.extract_strided_slice %16 {offsets = [0, 0], sizes = [1, 128], strides = [1, 1]} : vector<1x512xf32> to vector<1x128xf32>
    %21 = arith.negf %20 : vector<1x128xf32>
    %22 = math.exp %21 : vector<1x128xf32>
    %cst_20 = arith.constant 1.000000e+00 : f32
    %23 = vector.broadcast %cst_20 : f32 to vector<1x128xf32>
    %24 = arith.addf %23, %22 : vector<1x128xf32>
    %25 = arith.divf %23, %24 : vector<1x128xf32>
    %26 = vector.extract_strided_slice %16 {offsets = [0, 128], sizes = [1, 128], strides = [1, 1]} : vector<1x512xf32> to vector<1x128xf32>
    %27 = arith.negf %26 : vector<1x128xf32>
    %28 = math.exp %27 : vector<1x128xf32>
    %cst_21 = arith.constant 1.000000e+00 : f32
    %29 = vector.broadcast %cst_21 : f32 to vector<1x128xf32>
    %30 = arith.addf %29, %28 : vector<1x128xf32>
    %31 = arith.divf %29, %30 : vector<1x128xf32>
    %32 = vector.extract_strided_slice %16 {offsets = [0, 256], sizes = [1, 128], strides = [1, 1]} : vector<1x512xf32> to vector<1x128xf32>
    %33 = math.tanh %32 : vector<1x128xf32>
    %34 = vector.extract_strided_slice %16 {offsets = [0, 384], sizes = [1, 128], strides = [1, 1]} : vector<1x512xf32> to vector<1x128xf32>
    %35 = arith.negf %34 : vector<1x128xf32>
    %36 = math.exp %35 : vector<1x128xf32>
    %cst_22 = arith.constant 1.000000e+00 : f32
    %37 = vector.broadcast %cst_22 : f32 to vector<1x128xf32>
    %38 = arith.addf %37, %36 : vector<1x128xf32>
    %39 = arith.divf %37, %38 : vector<1x128xf32>
    %40 = arith.mulf %31, %13 : vector<1x128xf32>
    %41 = arith.mulf %25, %33 : vector<1x128xf32>
    %42 = arith.addf %40, %41 : vector<1x128xf32>
    %43 = math.tanh %42 : vector<1x128xf32>
    %44 = arith.mulf %39, %43 : vector<1x128xf32>
    %45 = vector.extract_strided_slice %19 {offsets = [0, 0], sizes = [1, 128], strides = [1, 1]} : vector<1x512xf32> to vector<1x128xf32>
    %46 = arith.negf %45 : vector<1x128xf32>
    %47 = math.exp %46 : vector<1x128xf32>
    %cst_23 = arith.constant 1.000000e+00 : f32
    %48 = vector.broadcast %cst_23 : f32 to vector<1x128xf32>
    %49 = arith.addf %48, %47 : vector<1x128xf32>
    %50 = arith.divf %48, %49 : vector<1x128xf32>
    %51 = vector.extract_strided_slice %19 {offsets = [0, 128], sizes = [1, 128], strides = [1, 1]} : vector<1x512xf32> to vector<1x128xf32>
    %52 = arith.negf %51 : vector<1x128xf32>
    %53 = math.exp %52 : vector<1x128xf32>
    %cst_24 = arith.constant 1.000000e+00 : f32
    %54 = vector.broadcast %cst_24 : f32 to vector<1x128xf32>
    %55 = arith.addf %54, %53 : vector<1x128xf32>
    %56 = arith.divf %54, %55 : vector<1x128xf32>
    %57 = vector.extract_strided_slice %19 {offsets = [0, 256], sizes = [1, 128], strides = [1, 1]} : vector<1x512xf32> to vector<1x128xf32>
    %58 = math.tanh %57 : vector<1x128xf32>
    %59 = vector.extract_strided_slice %19 {offsets = [0, 384], sizes = [1, 128], strides = [1, 1]} : vector<1x512xf32> to vector<1x128xf32>
    %60 = arith.negf %59 : vector<1x128xf32>
    %61 = math.exp %60 : vector<1x128xf32>
    %cst_25 = arith.constant 1.000000e+00 : f32
    %62 = vector.broadcast %cst_25 : f32 to vector<1x128xf32>
    %63 = arith.addf %62, %61 : vector<1x128xf32>
    %64 = arith.divf %62, %63 : vector<1x128xf32>
    %65 = arith.mulf %56, %13 : vector<1x128xf32>
    %66 = arith.mulf %50, %58 : vector<1x128xf32>
    %67 = arith.addf %65, %66 : vector<1x128xf32>
    %68 = math.tanh %67 : vector<1x128xf32>
    %69 = arith.mulf %64, %68 : vector<1x128xf32>
    %c0_26 = arith.constant 0 : index
    %c0_27 = arith.constant 0 : index
    %70 = vector.load %arg12[%c0_26, %c0_27] : memref<8x128xf32, #tpu.memory_space<vmem>>, vector<1x128xf32>
    tpu.vector_store %arg12[%c0_26, %c0_27], %44 {strides = array<i32>} : memref<8x128xf32, #tpu.memory_space<vmem>>, vector<1x128xf32>,
    %c7_28 = arith.constant 7 : index
    %c0_29 = arith.constant 0 : index
    %71 = vector.load %arg13[%c7_28, %c0_29] : memref<8x128xf32, #tpu.memory_space<vmem>>, vector<1x128xf32>
    tpu.vector_store %arg13[%c7_28, %c0_29], %69 {strides = array<i32>} : memref<8x128xf32, #tpu.memory_space<vmem>>, vector<1x128xf32>,
    %c1 = arith.constant 1 : index
    %c0_30 = arith.constant 0 : index
    %72 = vector.load %arg10[%c1, %c0_30] : memref<8x512xf32, #tpu.memory_space<vmem>>, vector<1x512xf32>
    %cst_31 = arith.constant dense<0.000000e+00> : vector<1x512xf32>
    %73 = tpu.matmul %44, %11, %cst_31 {dimension_numbers = #tpu.dot_dimension_numbers<[1], [0], [0], [1], [0, 0, 1, 1], [], []>} : vector<1x128xf32>, vector<128x512xf32>, vector<1x512xf32> -> vector<1x512xf32>
    %74 = arith.addf %72, %73 : vector<1x512xf32>
    %c6 = arith.constant 6 : index
    %c0_32 = arith.constant 0 : index
    %75 = vector.load %arg11[%c6, %c0_32] : memref<8x512xf32, #tpu.memory_space<vmem>>, vector<1x512xf32>
    %cst_33 = arith.constant dense<0.000000e+00> : vector<1x512xf32>
    %76 = tpu.matmul %69, %12, %cst_33 {dimension_numbers = #tpu.dot_dimension_numbers<[1], [0], [0], [1], [0, 0, 1, 1], [], []>} : vector<1x128xf32>, vector<128x512xf32>, vector<1x512xf32> -> vector<1x512xf32>
    %77 = arith.addf %75, %76 : vector<1x512xf32>
    %78 = vector.extract_strided_slice %74 {offsets = [0, 0], sizes = [1, 128], strides = [1, 1]} : vector<1x512xf32> to vector<1x128xf32>
    %79 = arith.negf %78 : vector<1x128xf32>
    %80 = math.exp %79 : vector<1x128xf32>
    %cst_34 = arith.constant 1.000000e+00 : f32
    %81 = vector.broadcast %cst_34 : f32 to vector<1x128xf32>
    %82 = arith.addf %81, %80 : vector<1x128xf32>
    %83 = arith.divf %81, %82 : vector<1x128xf32>
    %84 = vector.extract_strided_slice %74 {offsets = [0, 128], sizes = [1, 128], strides = [1, 1]} : vector<1x512xf32> to vector<1x128xf32>
    %85 = arith.negf %84 : vector<1x128xf32>
    %86 = math.exp %85 : vector<1x128xf32>
    %cst_35 = arith.constant 1.000000e+00 : f32
    %87 = vector.broadcast %cst_35 : f32 to vector<1x128xf32>
    %88 = arith.addf %87, %86 : vector<1x128xf32>
    %89 = arith.divf %87, %88 : vector<1x128xf32>
    %90 = vector.extract_strided_slice %74 {offsets = [0, 256], sizes = [1, 128], strides = [1, 1]} : vector<1x512xf32> to vector<1x128xf32>
    %91 = math.tanh %90 : vector<1x128xf32>
    %92 = vector.extract_strided_slice %74 {offsets = [0, 384], sizes = [1, 128], strides = [1, 1]} : vector<1x512xf32> to vector<1x128xf32>
    %93 = arith.negf %92 : vector<1x128xf32>
    %94 = math.exp %93 : vector<1x128xf32>
    %cst_36 = arith.constant 1.000000e+00 : f32
    %95 = vector.broadcast %cst_36 : f32 to vector<1x128xf32>
    %96 = arith.addf %95, %94 : vector<1x128xf32>
    %97 = arith.divf %95, %96 : vector<1x128xf32>
    %98 = arith.mulf %89, %42 : vector<1x128xf32>
    %99 = arith.mulf %83, %91 : vector<1x128xf32>
    %100 = arith.addf %98, %99 : vector<1x128xf32>
    %101 = math.tanh %100 : vector<1x128xf32>
    %102 = arith.mulf %97, %101 : vector<1x128xf32>
    %103 = vector.extract_strided_slice %77 {offsets = [0, 0], sizes = [1, 128], strides = [1, 1]} : vector<1x512xf32> to vector<1x128xf32>
    %104 = arith.negf %103 : vector<1x128xf32>
    %105 = math.exp %104 : vector<1x128xf32>
    %cst_37 = arith.constant 1.000000e+00 : f32
    %106 = vector.broadcast %cst_37 : f32 to vector<1x128xf32>
    %107 = arith.addf %106, %105 : vector<1x128xf32>
    %108 = arith.divf %106, %107 : vector<1x128xf32>
    %109 = vector.extract_strided_slice %77 {offsets = [0, 128], sizes = [1, 128], strides = [1, 1]} : vector<1x512xf32> to vector<1x128xf32>
    %110 = arith.negf %109 : vector<1x128xf32>
    %111 = math.exp %110 : vector<1x128xf32>
    %cst_38 = arith.constant 1.000000e+00 : f32
    %112 = vector.broadcast %cst_38 : f32 to vector<1x128xf32>
    %113 = arith.addf %112, %111 : vector<1x128xf32>
    %114 = arith.divf %112, %113 : vector<1x128xf32>
    %115 = vector.extract_strided_slice %77 {offsets = [0, 256], sizes = [1, 128], strides = [1, 1]} : vector<1x512xf32> to vector<1x128xf32>
    %116 = math.tanh %115 : vector<1x128xf32>
    %117 = vector.extract_strided_slice %77 {offsets = [0, 384], sizes = [1, 128], strides = [1, 1]} : vector<1x512xf32> to vector<1x128xf32>
    %118 = arith.negf %117 : vector<1x128xf32>
    %119 = math.exp %118 : vector<1x128xf32>
    %cst_39 = arith.constant 1.000000e+00 : f32
    %120 = vector.broadcast %cst_39 : f32 to vector<1x128xf32>
    %121 = arith.addf %120, %119 : vector<1x128xf32>
    %122 = arith.divf %120, %121 : vector<1x128xf32>
    %123 = arith.mulf %114, %67 : vector<1x128xf32>
    %124 = arith.mulf %108, %116 : vector<1x128xf32>
    %125 = arith.addf %123, %124 : vector<1x128xf32>
    %126 = math.tanh %125 : vector<1x128xf32>
    %127 = arith.mulf %122, %126 : vector<1x128xf32>
    %c1_40 = arith.constant 1 : index
    %c0_41 = arith.constant 0 : index
    %128 = vector.load %arg12[%c1_40, %c0_41] : memref<8x128xf32, #tpu.memory_space<vmem>>, vector<1x128xf32>
    tpu.vector_store %arg12[%c1_40, %c0_41], %102 {strides = array<i32>} : memref<8x128xf32, #tpu.memory_space<vmem>>, vector<1x128xf32>,
    %c6_42 = arith.constant 6 : index
    %c0_43 = arith.constant 0 : index
    %129 = vector.load %arg13[%c6_42, %c0_43] : memref<8x128xf32, #tpu.memory_space<vmem>>, vector<1x128xf32>
    tpu.vector_store %arg13[%c6_42, %c0_43], %127 {strides = array<i32>} : memref<8x128xf32, #tpu.memory_space<vmem>>, vector<1x128xf32>,
    %c2 = arith.constant 2 : index
    %c0_44 = arith.constant 0 : index
    %130 = vector.load %arg10[%c2, %c0_44] : memref<8x512xf32, #tpu.memory_space<vmem>>, vector<1x512xf32>
    %cst_45 = arith.constant dense<0.000000e+00> : vector<1x512xf32>
    %131 = tpu.matmul %102, %11, %cst_45 {dimension_numbers = #tpu.dot_dimension_numbers<[1], [0], [0], [1], [0, 0, 1, 1], [], []>} : vector<1x128xf32>, vector<128x512xf32>, vector<1x512xf32> -> vector<1x512xf32>
    %132 = arith.addf %130, %131 : vector<1x512xf32>
    %c5 = arith.constant 5 : index
    %c0_46 = arith.constant 0 : index
    %133 = vector.load %arg11[%c5, %c0_46] : memref<8x512xf32, #tpu.memory_space<vmem>>, vector<1x512xf32>
    %cst_47 = arith.constant dense<0.000000e+00> : vector<1x512xf32>
    %134 = tpu.matmul %127, %12, %cst_47 {dimension_numbers = #tpu.dot_dimension_numbers<[1], [0], [0], [1], [0, 0, 1, 1], [], []>} : vector<1x128xf32>, vector<128x512xf32>, vector<1x512xf32> -> vector<1x512xf32>
    %135 = arith.addf %133, %134 : vector<1x512xf32>
    %136 = vector.extract_strided_slice %132 {offsets = [0, 0], sizes = [1, 128], strides = [1, 1]} : vector<1x512xf32> to vector<1x128xf32>
    %137 = arith.negf %136 : vector<1x128xf32>
    %138 = math.exp %137 : vector<1x128xf32>
    %cst_48 = arith.constant 1.000000e+00 : f32
    %139 = vector.broadcast %cst_48 : f32 to vector<1x128xf32>
    %140 = arith.addf %139, %138 : vector<1x128xf32>
    %141 = arith.divf %139, %140 : vector<1x128xf32>
    %142 = vector.extract_strided_slice %132 {offsets = [0, 128], sizes = [1, 128], strides = [1, 1]} : vector<1x512xf32> to vector<1x128xf32>
    %143 = arith.negf %142 : vector<1x128xf32>
    %144 = math.exp %143 : vector<1x128xf32>
    %cst_49 = arith.constant 1.000000e+00 : f32
    %145 = vector.broadcast %cst_49 : f32 to vector<1x128xf32>
    %146 = arith.addf %145, %144 : vector<1x128xf32>
    %147 = arith.divf %145, %146 : vector<1x128xf32>
    %148 = vector.extract_strided_slice %132 {offsets = [0, 256], sizes = [1, 128], strides = [1, 1]} : vector<1x512xf32> to vector<1x128xf32>
    %149 = math.tanh %148 : vector<1x128xf32>
    %150 = vector.extract_strided_slice %132 {offsets = [0, 384], sizes = [1, 128], strides = [1, 1]} : vector<1x512xf32> to vector<1x128xf32>
    %151 = arith.negf %150 : vector<1x128xf32>
    %152 = math.exp %151 : vector<1x128xf32>
    %cst_50 = arith.constant 1.000000e+00 : f32
    %153 = vector.broadcast %cst_50 : f32 to vector<1x128xf32>
    %154 = arith.addf %153, %152 : vector<1x128xf32>
    %155 = arith.divf %153, %154 : vector<1x128xf32>
    %156 = arith.mulf %147, %100 : vector<1x128xf32>
    %157 = arith.mulf %141, %149 : vector<1x128xf32>
    %158 = arith.addf %156, %157 : vector<1x128xf32>
    %159 = math.tanh %158 : vector<1x128xf32>
    %160 = arith.mulf %155, %159 : vector<1x128xf32>
    %161 = vector.extract_strided_slice %135 {offsets = [0, 0], sizes = [1, 128], strides = [1, 1]} : vector<1x512xf32> to vector<1x128xf32>
    %162 = arith.negf %161 : vector<1x128xf32>
    %163 = math.exp %162 : vector<1x128xf32>
    %cst_51 = arith.constant 1.000000e+00 : f32
    %164 = vector.broadcast %cst_51 : f32 to vector<1x128xf32>
    %165 = arith.addf %164, %163 : vector<1x128xf32>
    %166 = arith.divf %164, %165 : vector<1x128xf32>
    %167 = vector.extract_strided_slice %135 {offsets = [0, 128], sizes = [1, 128], strides = [1, 1]} : vector<1x512xf32> to vector<1x128xf32>
    %168 = arith.negf %167 : vector<1x128xf32>
    %169 = math.exp %168 : vector<1x128xf32>
    %cst_52 = arith.constant 1.000000e+00 : f32
    %170 = vector.broadcast %cst_52 : f32 to vector<1x128xf32>
    %171 = arith.addf %170, %169 : vector<1x128xf32>
    %172 = arith.divf %170, %171 : vector<1x128xf32>
    %173 = vector.extract_strided_slice %135 {offsets = [0, 256], sizes = [1, 128], strides = [1, 1]} : vector<1x512xf32> to vector<1x128xf32>
    %174 = math.tanh %173 : vector<1x128xf32>
    %175 = vector.extract_strided_slice %135 {offsets = [0, 384], sizes = [1, 128], strides = [1, 1]} : vector<1x512xf32> to vector<1x128xf32>
    %176 = arith.negf %175 : vector<1x128xf32>
    %177 = math.exp %176 : vector<1x128xf32>
    %cst_53 = arith.constant 1.000000e+00 : f32
    %178 = vector.broadcast %cst_53 : f32 to vector<1x128xf32>
    %179 = arith.addf %178, %177 : vector<1x128xf32>
    %180 = arith.divf %178, %179 : vector<1x128xf32>
    %181 = arith.mulf %172, %125 : vector<1x128xf32>
    %182 = arith.mulf %166, %174 : vector<1x128xf32>
    %183 = arith.addf %181, %182 : vector<1x128xf32>
    %184 = math.tanh %183 : vector<1x128xf32>
    %185 = arith.mulf %180, %184 : vector<1x128xf32>
    %c2_54 = arith.constant 2 : index
    %c0_55 = arith.constant 0 : index
    %186 = vector.load %arg12[%c2_54, %c0_55] : memref<8x128xf32, #tpu.memory_space<vmem>>, vector<1x128xf32>
    tpu.vector_store %arg12[%c2_54, %c0_55], %160 {strides = array<i32>} : memref<8x128xf32, #tpu.memory_space<vmem>>, vector<1x128xf32>,
    %c5_56 = arith.constant 5 : index
    %c0_57 = arith.constant 0 : index
    %187 = vector.load %arg13[%c5_56, %c0_57] : memref<8x128xf32, #tpu.memory_space<vmem>>, vector<1x128xf32>
    tpu.vector_store %arg13[%c5_56, %c0_57], %185 {strides = array<i32>} : memref<8x128xf32, #tpu.memory_space<vmem>>, vector<1x128xf32>,
    %c3 = arith.constant 3 : index
    %c0_58 = arith.constant 0 : index
    %188 = vector.load %arg10[%c3, %c0_58] : memref<8x512xf32, #tpu.memory_space<vmem>>, vector<1x512xf32>
    %cst_59 = arith.constant dense<0.000000e+00> : vector<1x512xf32>
    %189 = tpu.matmul %160, %11, %cst_59 {dimension_numbers = #tpu.dot_dimension_numbers<[1], [0], [0], [1], [0, 0, 1, 1], [], []>} : vector<1x128xf32>, vector<128x512xf32>, vector<1x512xf32> -> vector<1x512xf32>
    %190 = arith.addf %188, %189 : vector<1x512xf32>
    %c4 = arith.constant 4 : index
    %c0_60 = arith.constant 0 : index
    %191 = vector.load %arg11[%c4, %c0_60] : memref<8x512xf32, #tpu.memory_space<vmem>>, vector<1x512xf32>
    %cst_61 = arith.constant dense<0.000000e+00> : vector<1x512xf32>
    %192 = tpu.matmul %185, %12, %cst_61 {dimension_numbers = #tpu.dot_dimension_numbers<[1], [0], [0], [1], [0, 0, 1, 1], [], []>} : vector<1x128xf32>, vector<128x512xf32>, vector<1x512xf32> -> vector<1x512xf32>
    %193 = arith.addf %191, %192 : vector<1x512xf32>
    %194 = vector.extract_strided_slice %190 {offsets = [0, 0], sizes = [1, 128], strides = [1, 1]} : vector<1x512xf32> to vector<1x128xf32>
    %195 = arith.negf %194 : vector<1x128xf32>
    %196 = math.exp %195 : vector<1x128xf32>
    %cst_62 = arith.constant 1.000000e+00 : f32
    %197 = vector.broadcast %cst_62 : f32 to vector<1x128xf32>
    %198 = arith.addf %197, %196 : vector<1x128xf32>
    %199 = arith.divf %197, %198 : vector<1x128xf32>
    %200 = vector.extract_strided_slice %190 {offsets = [0, 128], sizes = [1, 128], strides = [1, 1]} : vector<1x512xf32> to vector<1x128xf32>
    %201 = arith.negf %200 : vector<1x128xf32>
    %202 = math.exp %201 : vector<1x128xf32>
    %cst_63 = arith.constant 1.000000e+00 : f32
    %203 = vector.broadcast %cst_63 : f32 to vector<1x128xf32>
    %204 = arith.addf %203, %202 : vector<1x128xf32>
    %205 = arith.divf %203, %204 : vector<1x128xf32>
    %206 = vector.extract_strided_slice %190 {offsets = [0, 256], sizes = [1, 128], strides = [1, 1]} : vector<1x512xf32> to vector<1x128xf32>
    %207 = math.tanh %206 : vector<1x128xf32>
    %208 = vector.extract_strided_slice %190 {offsets = [0, 384], sizes = [1, 128], strides = [1, 1]} : vector<1x512xf32> to vector<1x128xf32>
    %209 = arith.negf %208 : vector<1x128xf32>
    %210 = math.exp %209 : vector<1x128xf32>
    %cst_64 = arith.constant 1.000000e+00 : f32
    %211 = vector.broadcast %cst_64 : f32 to vector<1x128xf32>
    %212 = arith.addf %211, %210 : vector<1x128xf32>
    %213 = arith.divf %211, %212 : vector<1x128xf32>
    %214 = arith.mulf %205, %158 : vector<1x128xf32>
    %215 = arith.mulf %199, %207 : vector<1x128xf32>
    %216 = arith.addf %214, %215 : vector<1x128xf32>
    %217 = math.tanh %216 : vector<1x128xf32>
    %218 = arith.mulf %213, %217 : vector<1x128xf32>
    %219 = vector.extract_strided_slice %193 {offsets = [0, 0], sizes = [1, 128], strides = [1, 1]} : vector<1x512xf32> to vector<1x128xf32>
    %220 = arith.negf %219 : vector<1x128xf32>
    %221 = math.exp %220 : vector<1x128xf32>
    %cst_65 = arith.constant 1.000000e+00 : f32
    %222 = vector.broadcast %cst_65 : f32 to vector<1x128xf32>
    %223 = arith.addf %222, %221 : vector<1x128xf32>
    %224 = arith.divf %222, %223 : vector<1x128xf32>
    %225 = vector.extract_strided_slice %193 {offsets = [0, 128], sizes = [1, 128], strides = [1, 1]} : vector<1x512xf32> to vector<1x128xf32>
    %226 = arith.negf %225 : vector<1x128xf32>
    %227 = math.exp %226 : vector<1x128xf32>
    %cst_66 = arith.constant 1.000000e+00 : f32
    %228 = vector.broadcast %cst_66 : f32 to vector<1x128xf32>
    %229 = arith.addf %228, %227 : vector<1x128xf32>
    %230 = arith.divf %228, %229 : vector<1x128xf32>
    %231 = vector.extract_strided_slice %193 {offsets = [0, 256], sizes = [1, 128], strides = [1, 1]} : vector<1x512xf32> to vector<1x128xf32>
    %232 = math.tanh %231 : vector<1x128xf32>
    %233 = vector.extract_strided_slice %193 {offsets = [0, 384], sizes = [1, 128], strides = [1, 1]} : vector<1x512xf32> to vector<1x128xf32>
    %234 = arith.negf %233 : vector<1x128xf32>
    %235 = math.exp %234 : vector<1x128xf32>
    %cst_67 = arith.constant 1.000000e+00 : f32
    %236 = vector.broadcast %cst_67 : f32 to vector<1x128xf32>
    %237 = arith.addf %236, %235 : vector<1x128xf32>
    %238 = arith.divf %236, %237 : vector<1x128xf32>
    %239 = arith.mulf %230, %183 : vector<1x128xf32>
    %240 = arith.mulf %224, %232 : vector<1x128xf32>
    %241 = arith.addf %239, %240 : vector<1x128xf32>
    %242 = math.tanh %241 : vector<1x128xf32>
    %243 = arith.mulf %238, %242 : vector<1x128xf32>
    %c3_68 = arith.constant 3 : index
    %c0_69 = arith.constant 0 : index
    %244 = vector.load %arg12[%c3_68, %c0_69] : memref<8x128xf32, #tpu.memory_space<vmem>>, vector<1x128xf32>
    tpu.vector_store %arg12[%c3_68, %c0_69], %218 {strides = array<i32>} : memref<8x128xf32, #tpu.memory_space<vmem>>, vector<1x128xf32>,
    %c4_70 = arith.constant 4 : index
    %c0_71 = arith.constant 0 : index
    %245 = vector.load %arg13[%c4_70, %c0_71] : memref<8x128xf32, #tpu.memory_space<vmem>>, vector<1x128xf32>
    tpu.vector_store %arg13[%c4_70, %c0_71], %243 {strides = array<i32>} : memref<8x128xf32, #tpu.memory_space<vmem>>, vector<1x128xf32>,
    %c4_72 = arith.constant 4 : index
    %c0_73 = arith.constant 0 : index
    %246 = vector.load %arg10[%c4_72, %c0_73] : memref<8x512xf32, #tpu.memory_space<vmem>>, vector<1x512xf32>
    %cst_74 = arith.constant dense<0.000000e+00> : vector<1x512xf32>
    %247 = tpu.matmul %218, %11, %cst_74 {dimension_numbers = #tpu.dot_dimension_numbers<[1], [0], [0], [1], [0, 0, 1, 1], [], []>} : vector<1x128xf32>, vector<128x512xf32>, vector<1x512xf32> -> vector<1x512xf32>
    %248 = arith.addf %246, %247 : vector<1x512xf32>
    %c3_75 = arith.constant 3 : index
    %c0_76 = arith.constant 0 : index
    %249 = vector.load %arg11[%c3_75, %c0_76] : memref<8x512xf32, #tpu.memory_space<vmem>>, vector<1x512xf32>
    %cst_77 = arith.constant dense<0.000000e+00> : vector<1x512xf32>
    %250 = tpu.matmul %243, %12, %cst_77 {dimension_numbers = #tpu.dot_dimension_numbers<[1], [0], [0], [1], [0, 0, 1, 1], [], []>} : vector<1x128xf32>, vector<128x512xf32>, vector<1x512xf32> -> vector<1x512xf32>
    %251 = arith.addf %249, %250 : vector<1x512xf32>
    %252 = vector.extract_strided_slice %248 {offsets = [0, 0], sizes = [1, 128], strides = [1, 1]} : vector<1x512xf32> to vector<1x128xf32>
    %253 = arith.negf %252 : vector<1x128xf32>
    %254 = math.exp %253 : vector<1x128xf32>
    %cst_78 = arith.constant 1.000000e+00 : f32
    %255 = vector.broadcast %cst_78 : f32 to vector<1x128xf32>
    %256 = arith.addf %255, %254 : vector<1x128xf32>
    %257 = arith.divf %255, %256 : vector<1x128xf32>
    %258 = vector.extract_strided_slice %248 {offsets = [0, 128], sizes = [1, 128], strides = [1, 1]} : vector<1x512xf32> to vector<1x128xf32>
    %259 = arith.negf %258 : vector<1x128xf32>
    %260 = math.exp %259 : vector<1x128xf32>
    %cst_79 = arith.constant 1.000000e+00 : f32
    %261 = vector.broadcast %cst_79 : f32 to vector<1x128xf32>
    %262 = arith.addf %261, %260 : vector<1x128xf32>
    %263 = arith.divf %261, %262 : vector<1x128xf32>
    %264 = vector.extract_strided_slice %248 {offsets = [0, 256], sizes = [1, 128], strides = [1, 1]} : vector<1x512xf32> to vector<1x128xf32>
    %265 = math.tanh %264 : vector<1x128xf32>
    %266 = vector.extract_strided_slice %248 {offsets = [0, 384], sizes = [1, 128], strides = [1, 1]} : vector<1x512xf32> to vector<1x128xf32>
    %267 = arith.negf %266 : vector<1x128xf32>
    %268 = math.exp %267 : vector<1x128xf32>
    %cst_80 = arith.constant 1.000000e+00 : f32
    %269 = vector.broadcast %cst_80 : f32 to vector<1x128xf32>
    %270 = arith.addf %269, %268 : vector<1x128xf32>
    %271 = arith.divf %269, %270 : vector<1x128xf32>
    %272 = arith.mulf %263, %216 : vector<1x128xf32>
    %273 = arith.mulf %257, %265 : vector<1x128xf32>
    %274 = arith.addf %272, %273 : vector<1x128xf32>
    %275 = math.tanh %274 : vector<1x128xf32>
    %276 = arith.mulf %271, %275 : vector<1x128xf32>
    %277 = vector.extract_strided_slice %251 {offsets = [0, 0], sizes = [1, 128], strides = [1, 1]} : vector<1x512xf32> to vector<1x128xf32>
    %278 = arith.negf %277 : vector<1x128xf32>
    %279 = math.exp %278 : vector<1x128xf32>
    %cst_81 = arith.constant 1.000000e+00 : f32
    %280 = vector.broadcast %cst_81 : f32 to vector<1x128xf32>
    %281 = arith.addf %280, %279 : vector<1x128xf32>
    %282 = arith.divf %280, %281 : vector<1x128xf32>
    %283 = vector.extract_strided_slice %251 {offsets = [0, 128], sizes = [1, 128], strides = [1, 1]} : vector<1x512xf32> to vector<1x128xf32>
    %284 = arith.negf %283 : vector<1x128xf32>
    %285 = math.exp %284 : vector<1x128xf32>
    %cst_82 = arith.constant 1.000000e+00 : f32
    %286 = vector.broadcast %cst_82 : f32 to vector<1x128xf32>
    %287 = arith.addf %286, %285 : vector<1x128xf32>
    %288 = arith.divf %286, %287 : vector<1x128xf32>
    %289 = vector.extract_strided_slice %251 {offsets = [0, 256], sizes = [1, 128], strides = [1, 1]} : vector<1x512xf32> to vector<1x128xf32>
    %290 = math.tanh %289 : vector<1x128xf32>
    %291 = vector.extract_strided_slice %251 {offsets = [0, 384], sizes = [1, 128], strides = [1, 1]} : vector<1x512xf32> to vector<1x128xf32>
    %292 = arith.negf %291 : vector<1x128xf32>
    %293 = math.exp %292 : vector<1x128xf32>
    %cst_83 = arith.constant 1.000000e+00 : f32
    %294 = vector.broadcast %cst_83 : f32 to vector<1x128xf32>
    %295 = arith.addf %294, %293 : vector<1x128xf32>
    %296 = arith.divf %294, %295 : vector<1x128xf32>
    %297 = arith.mulf %288, %241 : vector<1x128xf32>
    %298 = arith.mulf %282, %290 : vector<1x128xf32>
    %299 = arith.addf %297, %298 : vector<1x128xf32>
    %300 = math.tanh %299 : vector<1x128xf32>
    %301 = arith.mulf %296, %300 : vector<1x128xf32>
    %c4_84 = arith.constant 4 : index
    %c0_85 = arith.constant 0 : index
    %302 = vector.load %arg12[%c4_84, %c0_85] : memref<8x128xf32, #tpu.memory_space<vmem>>, vector<1x128xf32>
    tpu.vector_store %arg12[%c4_84, %c0_85], %276 {strides = array<i32>} : memref<8x128xf32, #tpu.memory_space<vmem>>, vector<1x128xf32>,
    %c3_86 = arith.constant 3 : index
    %c0_87 = arith.constant 0 : index
    %303 = vector.load %arg13[%c3_86, %c0_87] : memref<8x128xf32, #tpu.memory_space<vmem>>, vector<1x128xf32>
    tpu.vector_store %arg13[%c3_86, %c0_87], %301 {strides = array<i32>} : memref<8x128xf32, #tpu.memory_space<vmem>>, vector<1x128xf32>,
    %c5_88 = arith.constant 5 : index
    %c0_89 = arith.constant 0 : index
    %304 = vector.load %arg10[%c5_88, %c0_89] : memref<8x512xf32, #tpu.memory_space<vmem>>, vector<1x512xf32>
    %cst_90 = arith.constant dense<0.000000e+00> : vector<1x512xf32>
    %305 = tpu.matmul %276, %11, %cst_90 {dimension_numbers = #tpu.dot_dimension_numbers<[1], [0], [0], [1], [0, 0, 1, 1], [], []>} : vector<1x128xf32>, vector<128x512xf32>, vector<1x512xf32> -> vector<1x512xf32>
    %306 = arith.addf %304, %305 : vector<1x512xf32>
    %c2_91 = arith.constant 2 : index
    %c0_92 = arith.constant 0 : index
    %307 = vector.load %arg11[%c2_91, %c0_92] : memref<8x512xf32, #tpu.memory_space<vmem>>, vector<1x512xf32>
    %cst_93 = arith.constant dense<0.000000e+00> : vector<1x512xf32>
    %308 = tpu.matmul %301, %12, %cst_93 {dimension_numbers = #tpu.dot_dimension_numbers<[1], [0], [0], [1], [0, 0, 1, 1], [], []>} : vector<1x128xf32>, vector<128x512xf32>, vector<1x512xf32> -> vector<1x512xf32>
    %309 = arith.addf %307, %308 : vector<1x512xf32>
    %310 = vector.extract_strided_slice %306 {offsets = [0, 0], sizes = [1, 128], strides = [1, 1]} : vector<1x512xf32> to vector<1x128xf32>
    %311 = arith.negf %310 : vector<1x128xf32>
    %312 = math.exp %311 : vector<1x128xf32>
    %cst_94 = arith.constant 1.000000e+00 : f32
    %313 = vector.broadcast %cst_94 : f32 to vector<1x128xf32>
    %314 = arith.addf %313, %312 : vector<1x128xf32>
    %315 = arith.divf %313, %314 : vector<1x128xf32>
    %316 = vector.extract_strided_slice %306 {offsets = [0, 128], sizes = [1, 128], strides = [1, 1]} : vector<1x512xf32> to vector<1x128xf32>
    %317 = arith.negf %316 : vector<1x128xf32>
    %318 = math.exp %317 : vector<1x128xf32>
    %cst_95 = arith.constant 1.000000e+00 : f32
    %319 = vector.broadcast %cst_95 : f32 to vector<1x128xf32>
    %320 = arith.addf %319, %318 : vector<1x128xf32>
    %321 = arith.divf %319, %320 : vector<1x128xf32>
    %322 = vector.extract_strided_slice %306 {offsets = [0, 256], sizes = [1, 128], strides = [1, 1]} : vector<1x512xf32> to vector<1x128xf32>
    %323 = math.tanh %322 : vector<1x128xf32>
    %324 = vector.extract_strided_slice %306 {offsets = [0, 384], sizes = [1, 128], strides = [1, 1]} : vector<1x512xf32> to vector<1x128xf32>
    %325 = arith.negf %324 : vector<1x128xf32>
    %326 = math.exp %325 : vector<1x128xf32>
    %cst_96 = arith.constant 1.000000e+00 : f32
    %327 = vector.broadcast %cst_96 : f32 to vector<1x128xf32>
    %328 = arith.addf %327, %326 : vector<1x128xf32>
    %329 = arith.divf %327, %328 : vector<1x128xf32>
    %330 = arith.mulf %321, %274 : vector<1x128xf32>
    %331 = arith.mulf %315, %323 : vector<1x128xf32>
    %332 = arith.addf %330, %331 : vector<1x128xf32>
    %333 = math.tanh %332 : vector<1x128xf32>
    %334 = arith.mulf %329, %333 : vector<1x128xf32>
    %335 = vector.extract_strided_slice %309 {offsets = [0, 0], sizes = [1, 128], strides = [1, 1]} : vector<1x512xf32> to vector<1x128xf32>
    %336 = arith.negf %335 : vector<1x128xf32>
    %337 = math.exp %336 : vector<1x128xf32>
    %cst_97 = arith.constant 1.000000e+00 : f32
    %338 = vector.broadcast %cst_97 : f32 to vector<1x128xf32>
    %339 = arith.addf %338, %337 : vector<1x128xf32>
    %340 = arith.divf %338, %339 : vector<1x128xf32>
    %341 = vector.extract_strided_slice %309 {offsets = [0, 128], sizes = [1, 128], strides = [1, 1]} : vector<1x512xf32> to vector<1x128xf32>
    %342 = arith.negf %341 : vector<1x128xf32>
    %343 = math.exp %342 : vector<1x128xf32>
    %cst_98 = arith.constant 1.000000e+00 : f32
    %344 = vector.broadcast %cst_98 : f32 to vector<1x128xf32>
    %345 = arith.addf %344, %343 : vector<1x128xf32>
    %346 = arith.divf %344, %345 : vector<1x128xf32>
    %347 = vector.extract_strided_slice %309 {offsets = [0, 256], sizes = [1, 128], strides = [1, 1]} : vector<1x512xf32> to vector<1x128xf32>
    %348 = math.tanh %347 : vector<1x128xf32>
    %349 = vector.extract_strided_slice %309 {offsets = [0, 384], sizes = [1, 128], strides = [1, 1]} : vector<1x512xf32> to vector<1x128xf32>
    %350 = arith.negf %349 : vector<1x128xf32>
    %351 = math.exp %350 : vector<1x128xf32>
    %cst_99 = arith.constant 1.000000e+00 : f32
    %352 = vector.broadcast %cst_99 : f32 to vector<1x128xf32>
    %353 = arith.addf %352, %351 : vector<1x128xf32>
    %354 = arith.divf %352, %353 : vector<1x128xf32>
    %355 = arith.mulf %346, %299 : vector<1x128xf32>
    %356 = arith.mulf %340, %348 : vector<1x128xf32>
    %357 = arith.addf %355, %356 : vector<1x128xf32>
    %358 = math.tanh %357 : vector<1x128xf32>
    %359 = arith.mulf %354, %358 : vector<1x128xf32>
    %c5_100 = arith.constant 5 : index
    %c0_101 = arith.constant 0 : index
    %360 = vector.load %arg12[%c5_100, %c0_101] : memref<8x128xf32, #tpu.memory_space<vmem>>, vector<1x128xf32>
    tpu.vector_store %arg12[%c5_100, %c0_101], %334 {strides = array<i32>} : memref<8x128xf32, #tpu.memory_space<vmem>>, vector<1x128xf32>,
    %c2_102 = arith.constant 2 : index
    %c0_103 = arith.constant 0 : index
    %361 = vector.load %arg13[%c2_102, %c0_103] : memref<8x128xf32, #tpu.memory_space<vmem>>, vector<1x128xf32>
    tpu.vector_store %arg13[%c2_102, %c0_103], %359 {strides = array<i32>} : memref<8x128xf32, #tpu.memory_space<vmem>>, vector<1x128xf32>,
    %c6_104 = arith.constant 6 : index
    %c0_105 = arith.constant 0 : index
    %362 = vector.load %arg10[%c6_104, %c0_105] : memref<8x512xf32, #tpu.memory_space<vmem>>, vector<1x512xf32>
    %cst_106 = arith.constant dense<0.000000e+00> : vector<1x512xf32>
    %363 = tpu.matmul %334, %11, %cst_106 {dimension_numbers = #tpu.dot_dimension_numbers<[1], [0], [0], [1], [0, 0, 1, 1], [], []>} : vector<1x128xf32>, vector<128x512xf32>, vector<1x512xf32> -> vector<1x512xf32>
    %364 = arith.addf %362, %363 : vector<1x512xf32>
    %c1_107 = arith.constant 1 : index
    %c0_108 = arith.constant 0 : index
    %365 = vector.load %arg11[%c1_107, %c0_108] : memref<8x512xf32, #tpu.memory_space<vmem>>, vector<1x512xf32>
    %cst_109 = arith.constant dense<0.000000e+00> : vector<1x512xf32>
    %366 = tpu.matmul %359, %12, %cst_109 {dimension_numbers = #tpu.dot_dimension_numbers<[1], [0], [0], [1], [0, 0, 1, 1], [], []>} : vector<1x128xf32>, vector<128x512xf32>, vector<1x512xf32> -> vector<1x512xf32>
    %367 = arith.addf %365, %366 : vector<1x512xf32>
    %368 = vector.extract_strided_slice %364 {offsets = [0, 0], sizes = [1, 128], strides = [1, 1]} : vector<1x512xf32> to vector<1x128xf32>
    %369 = arith.negf %368 : vector<1x128xf32>
    %370 = math.exp %369 : vector<1x128xf32>
    %cst_110 = arith.constant 1.000000e+00 : f32
    %371 = vector.broadcast %cst_110 : f32 to vector<1x128xf32>
    %372 = arith.addf %371, %370 : vector<1x128xf32>
    %373 = arith.divf %371, %372 : vector<1x128xf32>
    %374 = vector.extract_strided_slice %364 {offsets = [0, 128], sizes = [1, 128], strides = [1, 1]} : vector<1x512xf32> to vector<1x128xf32>
    %375 = arith.negf %374 : vector<1x128xf32>
    %376 = math.exp %375 : vector<1x128xf32>
    %cst_111 = arith.constant 1.000000e+00 : f32
    %377 = vector.broadcast %cst_111 : f32 to vector<1x128xf32>
    %378 = arith.addf %377, %376 : vector<1x128xf32>
    %379 = arith.divf %377, %378 : vector<1x128xf32>
    %380 = vector.extract_strided_slice %364 {offsets = [0, 256], sizes = [1, 128], strides = [1, 1]} : vector<1x512xf32> to vector<1x128xf32>
    %381 = math.tanh %380 : vector<1x128xf32>
    %382 = vector.extract_strided_slice %364 {offsets = [0, 384], sizes = [1, 128], strides = [1, 1]} : vector<1x512xf32> to vector<1x128xf32>
    %383 = arith.negf %382 : vector<1x128xf32>
    %384 = math.exp %383 : vector<1x128xf32>
    %cst_112 = arith.constant 1.000000e+00 : f32
    %385 = vector.broadcast %cst_112 : f32 to vector<1x128xf32>
    %386 = arith.addf %385, %384 : vector<1x128xf32>
    %387 = arith.divf %385, %386 : vector<1x128xf32>
    %388 = arith.mulf %379, %332 : vector<1x128xf32>
    %389 = arith.mulf %373, %381 : vector<1x128xf32>
    %390 = arith.addf %388, %389 : vector<1x128xf32>
    %391 = math.tanh %390 : vector<1x128xf32>
    %392 = arith.mulf %387, %391 : vector<1x128xf32>
    %393 = vector.extract_strided_slice %367 {offsets = [0, 0], sizes = [1, 128], strides = [1, 1]} : vector<1x512xf32> to vector<1x128xf32>
    %394 = arith.negf %393 : vector<1x128xf32>
    %395 = math.exp %394 : vector<1x128xf32>
    %cst_113 = arith.constant 1.000000e+00 : f32
    %396 = vector.broadcast %cst_113 : f32 to vector<1x128xf32>
    %397 = arith.addf %396, %395 : vector<1x128xf32>
    %398 = arith.divf %396, %397 : vector<1x128xf32>
    %399 = vector.extract_strided_slice %367 {offsets = [0, 128], sizes = [1, 128], strides = [1, 1]} : vector<1x512xf32> to vector<1x128xf32>
    %400 = arith.negf %399 : vector<1x128xf32>
    %401 = math.exp %400 : vector<1x128xf32>
    %cst_114 = arith.constant 1.000000e+00 : f32
    %402 = vector.broadcast %cst_114 : f32 to vector<1x128xf32>
    %403 = arith.addf %402, %401 : vector<1x128xf32>
    %404 = arith.divf %402, %403 : vector<1x128xf32>
    %405 = vector.extract_strided_slice %367 {offsets = [0, 256], sizes = [1, 128], strides = [1, 1]} : vector<1x512xf32> to vector<1x128xf32>
    %406 = math.tanh %405 : vector<1x128xf32>
    %407 = vector.extract_strided_slice %367 {offsets = [0, 384], sizes = [1, 128], strides = [1, 1]} : vector<1x512xf32> to vector<1x128xf32>
    %408 = arith.negf %407 : vector<1x128xf32>
    %409 = math.exp %408 : vector<1x128xf32>
    %cst_115 = arith.constant 1.000000e+00 : f32
    %410 = vector.broadcast %cst_115 : f32 to vector<1x128xf32>
    %411 = arith.addf %410, %409 : vector<1x128xf32>
    %412 = arith.divf %410, %411 : vector<1x128xf32>
    %413 = arith.mulf %404, %357 : vector<1x128xf32>
    %414 = arith.mulf %398, %406 : vector<1x128xf32>
    %415 = arith.addf %413, %414 : vector<1x128xf32>
    %416 = math.tanh %415 : vector<1x128xf32>
    %417 = arith.mulf %412, %416 : vector<1x128xf32>
    %c6_116 = arith.constant 6 : index
    %c0_117 = arith.constant 0 : index
    %418 = vector.load %arg12[%c6_116, %c0_117] : memref<8x128xf32, #tpu.memory_space<vmem>>, vector<1x128xf32>
    tpu.vector_store %arg12[%c6_116, %c0_117], %392 {strides = array<i32>} : memref<8x128xf32, #tpu.memory_space<vmem>>, vector<1x128xf32>,
    %c1_118 = arith.constant 1 : index
    %c0_119 = arith.constant 0 : index
    %419 = vector.load %arg13[%c1_118, %c0_119] : memref<8x128xf32, #tpu.memory_space<vmem>>, vector<1x128xf32>
    tpu.vector_store %arg13[%c1_118, %c0_119], %417 {strides = array<i32>} : memref<8x128xf32, #tpu.memory_space<vmem>>, vector<1x128xf32>,
    %c7_120 = arith.constant 7 : index
    %c0_121 = arith.constant 0 : index
    %420 = vector.load %arg10[%c7_120, %c0_121] : memref<8x512xf32, #tpu.memory_space<vmem>>, vector<1x512xf32>
    %cst_122 = arith.constant dense<0.000000e+00> : vector<1x512xf32>
    %421 = tpu.matmul %392, %11, %cst_122 {dimension_numbers = #tpu.dot_dimension_numbers<[1], [0], [0], [1], [0, 0, 1, 1], [], []>} : vector<1x128xf32>, vector<128x512xf32>, vector<1x512xf32> -> vector<1x512xf32>
    %422 = arith.addf %420, %421 : vector<1x512xf32>
    %c0_123 = arith.constant 0 : index
    %c0_124 = arith.constant 0 : index
    %423 = vector.load %arg11[%c0_123, %c0_124] : memref<8x512xf32, #tpu.memory_space<vmem>>, vector<1x512xf32>
    %cst_125 = arith.constant dense<0.000000e+00> : vector<1x512xf32>
    %424 = tpu.matmul %417, %12, %cst_125 {dimension_numbers = #tpu.dot_dimension_numbers<[1], [0], [0], [1], [0, 0, 1, 1], [], []>} : vector<1x128xf32>, vector<128x512xf32>, vector<1x512xf32> -> vector<1x512xf32>
    %425 = arith.addf %423, %424 : vector<1x512xf32>
    %426 = vector.extract_strided_slice %422 {offsets = [0, 0], sizes = [1, 128], strides = [1, 1]} : vector<1x512xf32> to vector<1x128xf32>
    %427 = arith.negf %426 : vector<1x128xf32>
    %428 = math.exp %427 : vector<1x128xf32>
    %cst_126 = arith.constant 1.000000e+00 : f32
    %429 = vector.broadcast %cst_126 : f32 to vector<1x128xf32>
    %430 = arith.addf %429, %428 : vector<1x128xf32>
    %431 = arith.divf %429, %430 : vector<1x128xf32>
    %432 = vector.extract_strided_slice %422 {offsets = [0, 128], sizes = [1, 128], strides = [1, 1]} : vector<1x512xf32> to vector<1x128xf32>
    %433 = arith.negf %432 : vector<1x128xf32>
    %434 = math.exp %433 : vector<1x128xf32>
    %cst_127 = arith.constant 1.000000e+00 : f32
    %435 = vector.broadcast %cst_127 : f32 to vector<1x128xf32>
    %436 = arith.addf %435, %434 : vector<1x128xf32>
    %437 = arith.divf %435, %436 : vector<1x128xf32>
    %438 = vector.extract_strided_slice %422 {offsets = [0, 256], sizes = [1, 128], strides = [1, 1]} : vector<1x512xf32> to vector<1x128xf32>
    %439 = math.tanh %438 : vector<1x128xf32>
    %440 = vector.extract_strided_slice %422 {offsets = [0, 384], sizes = [1, 128], strides = [1, 1]} : vector<1x512xf32> to vector<1x128xf32>
    %441 = arith.negf %440 : vector<1x128xf32>
    %442 = math.exp %441 : vector<1x128xf32>
    %cst_128 = arith.constant 1.000000e+00 : f32
    %443 = vector.broadcast %cst_128 : f32 to vector<1x128xf32>
    %444 = arith.addf %443, %442 : vector<1x128xf32>
    %445 = arith.divf %443, %444 : vector<1x128xf32>
    %446 = arith.mulf %437, %390 : vector<1x128xf32>
    %447 = arith.mulf %431, %439 : vector<1x128xf32>
    %448 = arith.addf %446, %447 : vector<1x128xf32>
    %449 = math.tanh %448 : vector<1x128xf32>
    %450 = arith.mulf %445, %449 : vector<1x128xf32>
    %451 = vector.extract_strided_slice %425 {offsets = [0, 0], sizes = [1, 128], strides = [1, 1]} : vector<1x512xf32> to vector<1x128xf32>
    %452 = arith.negf %451 : vector<1x128xf32>
    %453 = math.exp %452 : vector<1x128xf32>
    %cst_129 = arith.constant 1.000000e+00 : f32
    %454 = vector.broadcast %cst_129 : f32 to vector<1x128xf32>
    %455 = arith.addf %454, %453 : vector<1x128xf32>
    %456 = arith.divf %454, %455 : vector<1x128xf32>
    %457 = vector.extract_strided_slice %425 {offsets = [0, 128], sizes = [1, 128], strides = [1, 1]} : vector<1x512xf32> to vector<1x128xf32>
    %458 = arith.negf %457 : vector<1x128xf32>
    %459 = math.exp %458 : vector<1x128xf32>
    %cst_130 = arith.constant 1.000000e+00 : f32
    %460 = vector.broadcast %cst_130 : f32 to vector<1x128xf32>
    %461 = arith.addf %460, %459 : vector<1x128xf32>
    %462 = arith.divf %460, %461 : vector<1x128xf32>
    %463 = vector.extract_strided_slice %425 {offsets = [0, 256], sizes = [1, 128], strides = [1, 1]} : vector<1x512xf32> to vector<1x128xf32>
    %464 = math.tanh %463 : vector<1x128xf32>
    %465 = vector.extract_strided_slice %425 {offsets = [0, 384], sizes = [1, 128], strides = [1, 1]} : vector<1x512xf32> to vector<1x128xf32>
    %466 = arith.negf %465 : vector<1x128xf32>
    %467 = math.exp %466 : vector<1x128xf32>
    %cst_131 = arith.constant 1.000000e+00 : f32
    %468 = vector.broadcast %cst_131 : f32 to vector<1x128xf32>
    %469 = arith.addf %468, %467 : vector<1x128xf32>
    %470 = arith.divf %468, %469 : vector<1x128xf32>
    %471 = arith.mulf %462, %415 : vector<1x128xf32>
    %472 = arith.mulf %456, %464 : vector<1x128xf32>
    %473 = arith.addf %471, %472 : vector<1x128xf32>
    %474 = math.tanh %473 : vector<1x128xf32>
    %475 = arith.mulf %470, %474 : vector<1x128xf32>
    %c7_132 = arith.constant 7 : index
    %c0_133 = arith.constant 0 : index
    %476 = vector.load %arg12[%c7_132, %c0_133] : memref<8x128xf32, #tpu.memory_space<vmem>>, vector<1x128xf32>
    tpu.vector_store %arg12[%c7_132, %c0_133], %450 {strides = array<i32>} : memref<8x128xf32, #tpu.memory_space<vmem>>, vector<1x128xf32>,
    %c0_134 = arith.constant 0 : index
    %c0_135 = arith.constant 0 : index
    %477 = vector.load %arg13[%c0_134, %c0_135] : memref<8x128xf32, #tpu.memory_space<vmem>>, vector<1x128xf32>
    tpu.vector_store %arg13[%c0_134, %c0_135], %475 {strides = array<i32>} : memref<8x128xf32, #tpu.memory_space<vmem>>, vector<1x128xf32>,
    %c0_136 = arith.constant 0 : index
    %c0_137 = arith.constant 0 : index
    %478 = vector.load %arg12[%c0_136, %c0_137] : memref<8x128xf32, #tpu.memory_space<vmem>>, vector<8x128xf32>
    %c0_138 = arith.constant 0 : index
    %c0_139 = arith.constant 0 : index
    %479 = vector.load %arg6[%c0_138, %c0_139] : memref<128x128xf32, #tpu.memory_space<vmem>>, vector<128x128xf32>
    %cst_140 = arith.constant dense<0.000000e+00> : vector<8x128xf32>
    %480 = tpu.matmul %478, %479, %cst_140 {dimension_numbers = #tpu.dot_dimension_numbers<[1], [0], [0], [1], [0, 0, 1, 1], [], []>} : vector<8x128xf32>, vector<128x128xf32>, vector<8x128xf32> -> vector<8x128xf32>
    %c0_141 = arith.constant 0 : index
    %c0_142 = arith.constant 0 : index
    %481 = vector.load %arg13[%c0_141, %c0_142] : memref<8x128xf32, #tpu.memory_space<vmem>>, vector<8x128xf32>
    %c0_143 = arith.constant 0 : index
    %c0_144 = arith.constant 0 : index
    %482 = vector.load %arg7[%c0_143, %c0_144] : memref<128x128xf32, #tpu.memory_space<vmem>>, vector<128x128xf32>
    %cst_145 = arith.constant dense<0.000000e+00> : vector<8x128xf32>
    %483 = tpu.matmul %481, %482, %cst_145 {dimension_numbers = #tpu.dot_dimension_numbers<[1], [0], [0], [1], [0, 0, 1, 1], [], []>} : vector<8x128xf32>, vector<128x128xf32>, vector<8x128xf32> -> vector<8x128xf32>
    %484 = arith.addf %480, %483 : vector<8x128xf32>
    %c0_146 = arith.constant 0 : index
    %c0_147 = arith.constant 0 : index
    %485 = vector.load %arg8[%c0_146, %c0_147] : memref<1x128xf32, #tpu.memory_space<vmem>>, vector<1x128xf32>
    %486 = vector.broadcast %485 : vector<1x128xf32> to vector<8x128xf32>
    %487 = arith.addf %484, %486 : vector<8x128xf32>
    %c0_148 = arith.constant 0 : index
    %c0_149 = arith.constant 0 : index
    %c0_150 = arith.constant 0 : index
    %488 = vector.load %arg9[%c0_148, %c0_149, %c0_150] : memref<1x8x128xf32, #tpu.memory_space<vmem>>, vector<1x8x128xf32>
    %489 = vector.shape_cast %488 : vector<1x8x128xf32> to vector<8x128xf32>
    %490 = vector.shape_cast %487 : vector<8x128xf32> to vector<1x8x128xf32>
    tpu.vector_store %arg9[%c0_148, %c0_149, %c0_150], %490 {strides = array<i32>} : memref<1x8x128xf32, #tpu.memory_space<vmem>>, vector<1x8x128xf32>,
    return
  }
  func.func @transform_0(%arg0: i32) -> (i32, i32, i32) {
    %c0_i32 = arith.constant 0 : i32
    %c0_i32_0 = arith.constant 0 : i32
    %c0_i32_1 = arith.constant 0 : i32
    return %arg0, %c0_i32, %c0_i32_0 : i32, i32, i32
  }
  func.func @transform_1(%arg0: i32) -> (i32, i32) {
    %c0_i32 = arith.constant 0 : i32
    %c0_i32_0 = arith.constant 0 : i32
    %c0_i32_1 = arith.constant 0 : i32
    return %c0_i32, %c0_i32_0 : i32, i32
  }
  func.func @transform_2(%arg0: i32) -> (i32, i32) {
    %c0_i32 = arith.constant 0 : i32
    %c0_i32_0 = arith.constant 0 : i32
    %c0_i32_1 = arith.constant 0 : i32
    return %c0_i32, %c0_i32_0 : i32, i32
  }
  func.func @transform_3(%arg0: i32) -> (i32, i32) {
    %c0_i32 = arith.constant 0 : i32
    %c0_i32_0 = arith.constant 0 : i32
    %c0_i32_1 = arith.constant 0 : i32
    return %c0_i32, %c0_i32_0 : i32, i32
  }
  func.func @transform_4(%arg0: i32) -> (i32, i32) {
    %c0_i32 = arith.constant 0 : i32
    %c0_i32_0 = arith.constant 0 : i32
    %c0_i32_1 = arith.constant 0 : i32
    return %c0_i32, %c0_i32_0 : i32, i32
  }
  func.func @transform_5(%arg0: i32) -> (i32, i32) {
    %c0_i32 = arith.constant 0 : i32
    %c0_i32_0 = arith.constant 0 : i32
    %c0_i32_1 = arith.constant 0 : i32
    return %c0_i32, %c0_i32_0 : i32, i32
  }
  func.func @transform_6(%arg0: i32) -> (i32, i32) {
    %c0_i32 = arith.constant 0 : i32
    %c0_i32_0 = arith.constant 0 : i32
    %c0_i32_1 = arith.constant 0 : i32
    return %c0_i32, %c0_i32_0 : i32, i32
  }
  func.func @transform_7(%arg0: i32) -> (i32, i32) {
    %c0_i32 = arith.constant 0 : i32
    %c0_i32_0 = arith.constant 0 : i32
    %c0_i32_1 = arith.constant 0 : i32
    return %c0_i32, %c0_i32_0 : i32, i32
  }
  func.func @transform_8(%arg0: i32) -> (i32, i32, i32) {
    %c0_i32 = arith.constant 0 : i32
    %c0_i32_0 = arith.constant 0 : i32
    %c0_i32_1 = arith.constant 0 : i32
    return %arg0, %c0_i32, %c0_i32_0 : i32, i32, i32
  }
}

</mosaic_0001>

<llo_original>
// kernel: tpu_custom_call.1
$region0: #{tpu_custom_call.1}
  #allocation0 [shape = 'u32[]', space=smem, size = 0x4, offset = 0x4, fixed_abs, tag = 'smem constant byte address 0x4 - core index']
  #allocation1 [shape = 'u32[144,128]{1,0:T(1,128)}', space=vmem, size = 0x12000, scoped, tag = 'internal scratch']
  #allocation2 [shape = 'f32[8,512]{1,0:T(8,128)}', space=vmem, size = 0x4000, scoped, tag = 'scratch operand']
  #allocation3 [shape = 'f32[8,512]{1,0:T(8,128)}', space=vmem, size = 0x4000, scoped, tag = 'scratch operand']
  #allocation4 [shape = 'f32[8,128]{1,0:T(8,128)}', space=vmem, size = 0x1000, scoped, tag = 'scratch operand']
  #allocation5 [shape = 'f32[8,128]{1,0:T(8,128)}', space=vmem, size = 0x1000, scoped, tag = 'scratch operand']
  %s0 = inlined_call_operand.hbm [shape: f32[2,8,32], index: 0, kind: input, shape index: {}]
  %s1 = inlined_call_operand.hbm [shape: f32[32,1024], index: 1, kind: input, shape index: {}]
  %s2 = inlined_call_operand.hbm [shape: f32[1,1024], index: 2, kind: input, shape index: {}]
  %s3 = inlined_call_operand.hbm [shape: f32[128,512], index: 3, kind: input, shape index: {}]
  %s4 = inlined_call_operand.hbm [shape: f32[128,512], index: 4, kind: input, shape index: {}]
  %s5 = inlined_call_operand.hbm [shape: f32[128,128], index: 5, kind: input, shape index: {}]
  %s6 = inlined_call_operand.hbm [shape: f32[128,128], index: 6, kind: input, shape index: {}]
  %s7 = inlined_call_operand.vmem [shape: f32[1,128], index: 7, kind: input, shape index: {}]
  %s8 = inlined_call_operand.hbm [shape: f32[2,8,128], index: 8, kind: output, shape index: {}]
  %s9 = sld [smem:[#allocation0]]
  $region93: #{tpu_custom_call.1} parent=0
    _
  %s11 = ssub.s32 1, %s9
  %s12 = scalar_select 0, %s11, %s9
  $region1: #{tpu_custom_call.1} parent=0
    #allocation6 [shape = 'u8[8192]{0}', space=vmem, size = 0x2000, scoped, tag = 'input window, operand 0']
    #allocation7 [shape = 's32[2]{0}', space=sflag, size = 0x8, scoped, tag = 'scoped memory for tpu_custom_call.1']
    #allocation8 [shape = 's32[2]{0}', space=sflag, size = 0x8, scoped, tag = 'scoped memory for tpu_custom_call.1']
    #allocation9 [shape = 'u8[131072]{0}', space=vmem, size = 0x20000, scoped, tag = 'input window, operand 1, single buffered']
    #allocation10 [shape = 's32[1]{0}', space=sflag, size = 0x4, scoped, tag = 'scoped memory for tpu_custom_call.1']
    #allocation11 [shape = 'u8[4096]{0}', space=vmem, size = 0x1000, scoped, tag = 'input window, operand 2, single buffered']
    #allocation12 [shape = 'u8[262144]{0}', space=vmem, size = 0x40000, scoped, tag = 'input window, operand 3, single buffered']
    #allocation13 [shape = 's32[1]{0}', space=sflag, size = 0x4, scoped, tag = 'scoped memory for tpu_custom_call.1']
    #allocation14 [shape = 'u8[262144]{0}', space=vmem, size = 0x40000, scoped, tag = 'input window, operand 4, single buffered']
    #allocation15 [shape = 'u8[65536]{0}', space=vmem, size = 0x10000, scoped, tag = 'input window, operand 5, single buffered']
    #allocation16 [shape = 's32[1]{0}', space=sflag, size = 0x4, scoped, tag = 'scoped memory for tpu_custom_call.1']
    #allocation17 [shape = 'u8[65536]{0}', space=vmem, size = 0x10000, scoped, tag = 'input window, operand 6, single buffered']
    #allocation18 [shape = 'u8[8192]{0}', space=vmem, size = 0x2000, scoped, tag = 'output window, operand 0']
    %13 = vsyncpa [#allocation7], 0
    %s14 = scalar_lea.sflag [#allocation7], 1
    %15 = vsyncpa %s14, 0
    %16 = vsyncpa [#allocation10], 0
    %17 = vsyncpa [#allocation13], 0
    %18 = vsyncpa [#allocation16], 0
    %19 = vsyncpa [#allocation8], 0
    %s20 = scalar_lea.sflag [#allocation8], 1
    %21 = vsyncpa %s20, 0
    loop: start=0, step=1, limit=4
    $region2: #{tpu_custom_call.1} parent=1 // loop_pre_header
      _
    $region3: #{tpu_custom_call.1} parent=1 // loop_header
      %s23 = sphi 0, %s27
      %p24 = scmp.ge.s32.totalorder %s23, 4
      %s33 = sphi 0, %s35
      %s36 = sphi 0, %s33
      %s37 = sphi 0, %s36
      %s53 = sphi 0, %s37
      %s57 = sphi 0, %s57
      %s59 = sphi 0, %s57
      %s60 = sphi 0, %s59
      %s74 = sphi 0, %s60
      %s78 = sphi 0, %s78
      %s80 = sphi 0, %s78
      %s81 = sphi 0, %s80
      %s95 = sphi 0, %s81
      %s99 = sphi 0, %s99
      %s101 = sphi 0, %s99
      %s102 = sphi 0, %s101
      %s116 = sphi 0, %s102
      %s120 = sphi 0, %s120
      %s122 = sphi 0, %s120
      %s123 = sphi 0, %s122
      %s137 = sphi 0, %s123
      %s141 = sphi 0, %s141
      %s143 = sphi 0, %s141
      %s144 = sphi 0, %s143
      %s158 = sphi 0, %s144
      %s162 = sphi 0, %s162
      %s164 = sphi 0, %s162
      %s165 = sphi 0, %s164
      %s179 = sphi 0, %s165
      %s183 = sphi 0, %s183
      %s185 = sphi 0, %s183
      %s186 = sphi 0, %s185
      %s200 = sphi 0, %s186
      %s206 = sphi 0, %s208
      %s209 = sphi 0, %s206
      %s210 = sphi 0, %s209
      %s226 = sphi 0, %s210
    $region4: #{tpu_custom_call.1} parent=1 // loop_header_branch
      %26 = sbr.rel (%p24) target = $region8
    $region5: #{tpu_custom_call.1} parent=1 // loop_body
      %s28 = ssub.s32 %s23, 1
      %s29 = ssub.s32 %s23, 2
      %s30 = sadd.s32 %s23, 1
      %s31 = ssub.s32 %s23, %s30
      %p32 = scmp.eq.s32.totalorder %s31, 0
      %s34 = sadd.s32 %s33, 1
      %s35 = scalar_select %p32, %s33, %s34
      %p38 = pneg %p32
      %p39 = scmp.eq.s32.totalorder %s23, 1
      %p40 = por %p38, %p39
      %p41 = scmp.ne.s32.totalorder %s33, %s36
      %p42 = scmp.eq.s32.totalorder %s23, 0
      %p43 = por %p41, %p42
      %p44 = scmp.ne.s32.totalorder %s33, %s36
      %p45 = scmp.eq.s32.totalorder %s28, 1
      %p46 = por %p44, %p45
      %p47 = scmp.ne.s32.totalorder %s36, %s37
      %p48 = scmp.eq.s32.totalorder %s28, 0
      %p49 = por %p47, %p48
      %p50 = scmp.ne.s32.totalorder %s36, %s37
      %p51 = scmp.eq.s32.totalorder %s29, 1
      %p52 = por %p50, %p51
      %p54 = scmp.ne.s32.totalorder %s37, %s53
      %p55 = scmp.eq.s32.totalorder %s29, 0
      %p56 = por %p54, %p55
      %s58 = sadd.s32 %s57, 1
      %p61 = scmp.eq.s32.totalorder %s23, 1
      %p62 = scmp.ne.s32.totalorder %s57, %s59
      %p63 = scmp.eq.s32.totalorder %s23, 0
      %p64 = por %p62, %p63
      %p65 = scmp.ne.s32.totalorder %s57, %s59
      %p66 = scmp.eq.s32.totalorder %s28, 1
      %p67 = por %p65, %p66
      %p68 = scmp.ne.s32.totalorder %s59, %s60
      %p69 = scmp.eq.s32.totalorder %s28, 0
      %p70 = por %p68, %p69
      %p71 = scmp.ne.s32.totalorder %s59, %s60
      %p72 = scmp.eq.s32.totalorder %s29, 1
      %p73 = por %p71, %p72
      %p75 = scmp.ne.s32.totalorder %s60, %s74
      %p76 = scmp.eq.s32.totalorder %s29, 0
      %p77 = por %p75, %p76
      %s79 = sadd.s32 %s78, 1
      %p82 = scmp.eq.s32.totalorder %s23, 1
      %p83 = scmp.ne.s32.totalorder %s78, %s80
      %p84 = scmp.eq.s32.totalorder %s23, 0
      %p85 = por %p83, %p84
      %p86 = scmp.ne.s32.totalorder %s78, %s80
      %p87 = scmp.eq.s32.totalorder %s28, 1
      %p88 = por %p86, %p87
      %p89 = scmp.ne.s32.totalorder %s80, %s81
      %p90 = scmp.eq.s32.totalorder %s28, 0
      %p91 = por %p89, %p90
      %p92 = scmp.ne.s32.totalorder %s80, %s81
      %p93 = scmp.eq.s32.totalorder %s29, 1
      %p94 = por %p92, %p93
      %p96 = scmp.ne.s32.totalorder %s81, %s95
      %p97 = scmp.eq.s32.totalorder %s29, 0
      %p98 = por %p96, %p97
      %s100 = sadd.s32 %s99, 1
      %p103 = scmp.eq.s32.totalorder %s23, 1
      %p104 = scmp.ne.s32.totalorder %s99, %s101
      %p105 = scmp.eq.s32.totalorder %s23, 0
      %p106 = por %p104, %p105
      %p107 = scmp.ne.s32.totalorder %s99, %s101
      %p108 = scmp.eq.s32.totalorder %s28, 1
      %p109 = por %p107, %p108
      %p110 = scmp.ne.s32.totalorder %s101, %s102
      %p111 = scmp.eq.s32.totalorder %s28, 0
      %p112 = por %p110, %p111
      %p113 = scmp.ne.s32.totalorder %s101, %s102
      %p114 = scmp.eq.s32.totalorder %s29, 1
      %p115 = por %p113, %p114
      %p117 = scmp.ne.s32.totalorder %s102, %s116
      %p118 = scmp.eq.s32.totalorder %s29, 0
      %p119 = por %p117, %p118
      %s121 = sadd.s32 %s120, 1
      %p124 = scmp.eq.s32.totalorder %s23, 1
      %p125 = scmp.ne.s32.totalorder %s120, %s122
      %p126 = scmp.eq.s32.totalorder %s23, 0
      %p127 = por %p125, %p126
      %p128 = scmp.ne.s32.totalorder %s120, %s122
      %p129 = scmp.eq.s32.totalorder %s28, 1
      %p130 = por %p128, %p129
      %p131 = scmp.ne.s32.totalorder %s122, %s123
      %p132 = scmp.eq.s32.totalorder %s28, 0
      %p133 = por %p131, %p132
      %p134 = scmp.ne.s32.totalorder %s122, %s123
      %p135 = scmp.eq.s32.totalorder %s29, 1
      %p136 = por %p134, %p135
      %p138 = scmp.ne.s32.totalorder %s123, %s137
      %p139 = scmp.eq.s32.totalorder %s29, 0
      %p140 = por %p138, %p139
      %s142 = sadd.s32 %s141, 1
      %p145 = scmp.eq.s32.totalorder %s23, 1
      %p146 = scmp.ne.s32.totalorder %s141, %s143
      %p147 = scmp.eq.s32.totalorder %s23, 0
      %p148 = por %p146, %p147
      %p149 = scmp.ne.s32.totalorder %s141, %s143
      %p150 = scmp.eq.s32.totalorder %s28, 1
      %p151 = por %p149, %p150
      %p152 = scmp.ne.s32.totalorder %s143, %s144
      %p153 = scmp.eq.s32.totalorder %s28, 0
      %p154 = por %p152, %p153
      %p155 = scmp.ne.s32.totalorder %s143, %s144
      %p156 = scmp.eq.s32.totalorder %s29, 1
      %p157 = por %p155, %p156
      %p159 = scmp.ne.s32.totalorder %s144, %s158
      %p160 = scmp.eq.s32.totalorder %s29, 0
      %p161 = por %p159, %p160
      %s163 = sadd.s32 %s162, 1
      %p166 = scmp.eq.s32.totalorder %s23, 1
      %p167 = scmp.ne.s32.totalorder %s162, %s164
      %p168 = scmp.eq.s32.totalorder %s23, 0
      %p169 = por %p167, %p168
      %p170 = scmp.ne.s32.totalorder %s162, %s164
      %p171 = scmp.eq.s32.totalorder %s28, 1
      %p172 = por %p170, %p171
      %p173 = scmp.ne.s32.totalorder %s164, %s165
      %p174 = scmp.eq.s32.totalorder %s28, 0
      %p175 = por %p173, %p174
      %p176 = scmp.ne.s32.totalorder %s164, %s165
      %p177 = scmp.eq.s32.totalorder %s29, 1
      %p178 = por %p176, %p177
      %p180 = scmp.ne.s32.totalorder %s165, %s179
      %p181 = scmp.eq.s32.totalorder %s29, 0
      %p182 = por %p180, %p181
      %s184 = sadd.s32 %s183, 1
      %p187 = scmp.eq.s32.totalorder %s23, 1
      %p188 = scmp.ne.s32.totalorder %s183, %s185
      %p189 = scmp.eq.s32.totalorder %s23, 0
      %p190 = por %p188, %p189
      %p191 = scmp.ne.s32.totalorder %s183, %s185
      %p192 = scmp.eq.s32.totalorder %s28, 1
      %p193 = por %p191, %p192
      %p194 = scmp.ne.s32.totalorder %s185, %s186
      %p195 = scmp.eq.s32.totalorder %s28, 0
      %p196 = por %p194, %p195
      %p197 = scmp.ne.s32.totalorder %s185, %s186
      %p198 = scmp.eq.s32.totalorder %s29, 1
      %p199 = por %p197, %p198
      %p201 = scmp.ne.s32.totalorder %s186, %s200
      %p202 = scmp.eq.s32.totalorder %s29, 0
      %p203 = por %p201, %p202
      %s204 = ssub.s32 %s23, %s30
      %p205 = scmp.eq.s32.totalorder %s204, 0
      %s207 = sadd.s32 %s206, 1
      %s208 = scalar_select %p205, %s206, %s207
      %p211 = pneg %p205
      %p212 = scmp.eq.s32.totalorder %s23, 1
      %p213 = por %p211, %p212
      %p214 = scmp.ne.s32.totalorder %s206, %s209
      %p215 = scmp.eq.s32.totalorder %s23, 0
      %p216 = por %p214, %p215
      %p217 = scmp.ne.s32.totalorder %s206, %s209
      %p218 = scmp.eq.s32.totalorder %s28, 1
      %p219 = por %p217, %p218
      %p220 = scmp.ne.s32.totalorder %s209, %s210
      %p221 = scmp.eq.s32.totalorder %s28, 0
      %p222 = por %p220, %p221
      %p223 = scmp.ne.s32.totalorder %s209, %s210
      %p224 = scmp.eq.s32.totalorder %s29, 1
      %p225 = por %p223, %p224
      %p227 = scmp.ne.s32.totalorder %s210, %s226
      %p228 = scmp.eq.s32.totalorder %s29, 0
      %p229 = por %p227, %p228
      %p230 = scmp.le.s32.totalorder 1, %s23
      %p231 = scmp.lt.s32.totalorder %s23, 3
      %p232 = pnand %p230, %p231
      %p233 = pneg %p232
      // Predicated region
      $region9: #{tpu_custom_call.1} parent=5 // pred_check
        _
      $region10: #{tpu_custom_call.1} parent=5 // pred_check_branch
        %235 = sbr.rel (%p232) target = $region12
      $region11: #{tpu_custom_call.1} parent=5 // pred_region
        %s236 = ssub.s32 %s23, 1
        // Predicated region
        $region13: #{tpu_custom_call.1} parent=11 // pred_check
          %p237 = pneg %p70
        $region14: #{tpu_custom_call.1} parent=11 // pred_check_branch
          %239 = sbr.rel (%p237) target = $region16
        $region15: #{tpu_custom_call.1} parent=11 // pred_region
          %s241 = ssub.s32 4096, 4096
          %242 = vsyncadd [#allocation10], %s241
          %s243 = sshll.u32 [#allocation9], 4
          %s244 = int_to_ptr.vmem [resolvable:$true] %s243
          %249 = dma.hbm_to_vmem [thread:$0]  %s1, 4096, %s244, [#allocation10], 1024, 1024, 64
        $region16: #{tpu_custom_call.1} parent=11 // pred_fallthru
          _
        // Predicated region
        $region17: #{tpu_custom_call.1} parent=11 // pred_check
          %p250 = pneg %p91
        $region18: #{tpu_custom_call.1} parent=11 // pred_check_branch
          %252 = sbr.rel (%p250) target = $region20
        $region19: #{tpu_custom_call.1} parent=11 // pred_region
          %s254 = ssub.s32 128, 128
          %255 = vsyncadd [#allocation10], %s254
          %s257 = sshll.u32 [#allocation11], 4
          %s258 = int_to_ptr.vmem [resolvable:$true] %s257
          %260 = dma.hbm_to_vmem [thread:$0]  %s2, 128, %s258, [#allocation10]
        $region20: #{tpu_custom_call.1} parent=11 // pred_fallthru
          _
        // Predicated region
        $region21: #{tpu_custom_call.1} parent=11 // pred_check
          %p261 = pneg %p112
        $region22: #{tpu_custom_call.1} parent=11 // pred_check_branch
          %263 = sbr.rel (%p261) target = $region24
        $region23: #{tpu_custom_call.1} parent=11 // pred_region
          %s265 = ssub.s32 8192, 8192
          %266 = vsyncadd [#allocation13], %s265
          %s267 = sshll.u32 [#allocation12], 4
          %s268 = int_to_ptr.vmem [resolvable:$true] %s267
          %273 = dma.hbm_to_vmem [thread:$0]  %s3, 8192, %s268, [#allocation13], 512, 512, 32
        $region24: #{tpu_custom_call.1} parent=11 // pred_fallthru
          _
        // Predicated region
        $region25: #{tpu_custom_call.1} parent=11 // pred_check
          %p274 = pneg %p133
        $region26: #{tpu_custom_call.1} parent=11 // pred_check_branch
          %276 = sbr.rel (%p274) target = $region28
        $region27: #{tpu_custom_call.1} parent=11 // pred_region
          %s278 = ssub.s32 8192, 8192
          %279 = vsyncadd [#allocation13], %s278
          %s280 = sshll.u32 [#allocation14], 4
          %s281 = int_to_ptr.vmem [resolvable:$true] %s280
          %286 = dma.hbm_to_vmem [thread:$0]  %s4, 8192, %s281, [#allocation13], 512, 512, 32
        $region28: #{tpu_custom_call.1} parent=11 // pred_fallthru
          _
        // Predicated region
        $region29: #{tpu_custom_call.1} parent=11 // pred_check
          %p287 = pneg %p154
        $region30: #{tpu_custom_call.1} parent=11 // pred_check_branch
          %289 = sbr.rel (%p287) target = $region32
        $region31: #{tpu_custom_call.1} parent=11 // pred_region
          %s291 = ssub.s32 2048, 2048
          %292 = vsyncadd [#allocation16], %s291
          %s293 = sshll.u32 [#allocation15], 4
          %s294 = int_to_ptr.vmem [resolvable:$true] %s293
          %299 = dma.hbm_to_vmem [thread:$0]  %s5, 2048, %s294, [#allocation16], 128, 128, 8
        $region32: #{tpu_custom_call.1} parent=11 // pred_fallthru
          _
        // Predicated region
        $region33: #{tpu_custom_call.1} parent=11 // pred_check
          %p300 = pneg %p175
        $region34: #{tpu_custom_call.1} parent=11 // pred_check_branch
          %302 = sbr.rel (%p300) target = $region36
        $region35: #{tpu_custom_call.1} parent=11 // pred_region
          %s304 = ssub.s32 2048, 2048
          %305 = vsyncadd [#allocation16], %s304
          %s306 = sshll.u32 [#allocation17], 4
          %s307 = int_to_ptr.vmem [resolvable:$true] %s306
          %312 = dma.hbm_to_vmem [thread:$0]  %s6, 2048, %s307, [#allocation16], 128, 128, 8
        $region36: #{tpu_custom_call.1} parent=11 // pred_fallthru
          _
        // Predicated region
        $region37: #{tpu_custom_call.1} parent=11 // pred_check
          %p313 = pneg %p196
        $region38: #{tpu_custom_call.1} parent=11 // pred_check_branch
          %315 = sbr.rel (%p313) target = $region40
        $region39: #{tpu_custom_call.1} parent=11 // pred_region
          _
        $region40: #{tpu_custom_call.1} parent=11 // pred_fallthru
          _
      $region12: #{tpu_custom_call.1} parent=5 // pred_fallthru
        _
      %p316 = scmp.lt.s32.totalorder %s23, 2
      // Predicated region
      $region41: #{tpu_custom_call.1} parent=5 // pred_check
        %p317 = pneg %p316
      $region42: #{tpu_custom_call.1} parent=5 // pred_check_branch
        %319 = sbr.rel (%p317) target = $region44
      $region43: #{tpu_custom_call.1} parent=5 // pred_region
        // Predicated region
        $region45: #{tpu_custom_call.1} parent=43 // pred_check
          %p320 = pneg %p43
        $region46: #{tpu_custom_call.1} parent=43 // pred_check_branch
          %322 = sbr.rel (%p320) target = $region48
        $region47: #{tpu_custom_call.1} parent=43 // pred_region
          %s323 = sand.u32 %s33, 1
          %s324 = scalar_lea.sflag [#allocation7], %s323
          %s325 = sand.u32 %s33, 1
          %s326 = smul.addr %s325, 8
          %s327 = scalar_lea.vmem [#allocation6], %s326
          %s329 = ssub.s32 128, 128
          %330 = vsyncadd %s324, %s329
          %s331 = smul.addr %s23, 128
          %s332 = scalar_lea.hbm %s0, %s331
          %s334 = sshll.u32 %s327, 4
          %s335 = int_to_ptr.vmem [resolvable:$true] %s334
          %337 = dma.hbm_to_vmem [thread:$0]  %s332, 128, %s335, %s324
        $region48: #{tpu_custom_call.1} parent=43 // pred_fallthru
          _
      $region44: #{tpu_custom_call.1} parent=5 // pred_fallthru
        _
      %p338 = scmp.le.s32.totalorder 1, %s23
      %p339 = scmp.lt.s32.totalorder %s23, 3
      %p340 = pnand %p338, %p339
      %p341 = pneg %p340
      // Predicated region
      $region49: #{tpu_custom_call.1} parent=5 // pred_check
        _
      $region50: #{tpu_custom_call.1} parent=5 // pred_check_branch
        %343 = sbr.rel (%p340) target = $region52
      $region51: #{tpu_custom_call.1} parent=5 // pred_region
        %s344 = ssub.s32 %s23, 1
        %s345 = sand.u32 %s36, 1
        %s346 = scalar_lea.sflag [#allocation7], %s345
        %s347 = sand.u32 %s36, 1
        %s348 = smul.addr %s347, 8
        %s349 = scalar_lea.vmem [#allocation6], %s348
        // Predicated region
        $region53: #{tpu_custom_call.1} parent=51 // pred_check
          %p350 = pneg %p49
        $region54: #{tpu_custom_call.1} parent=51 // pred_check_branch
          %352 = sbr.rel (%p350) target = $region56
        $region55: #{tpu_custom_call.1} parent=51 // pred_region
          %353 = dma.done %s346, 128
        $region56: #{tpu_custom_call.1} parent=51 // pred_fallthru
          _
        // Predicated region
        $region57: #{tpu_custom_call.1} parent=51 // pred_check
          %p354 = pneg %p70
        $region58: #{tpu_custom_call.1} parent=51 // pred_check_branch
          %356 = sbr.rel (%p354) target = $region60
        $region59: #{tpu_custom_call.1} parent=51 // pred_region
          %357 = dma.done [#allocation10], 4096
        $region60: #{tpu_custom_call.1} parent=51 // pred_fallthru
          _
        // Predicated region
        $region61: #{tpu_custom_call.1} parent=51 // pred_check
          %p358 = pneg %p91
        $region62: #{tpu_custom_call.1} parent=51 // pred_check_branch
          %360 = sbr.rel (%p358) target = $region64
        $region63: #{tpu_custom_call.1} parent=51 // pred_region
          %361 = dma.done [#allocation10], 128
        $region64: #{tpu_custom_call.1} parent=51 // pred_fallthru
          _
        // Predicated region
        $region65: #{tpu_custom_call.1} parent=51 // pred_check
          %p362 = pneg %p112
        $region66: #{tpu_custom_call.1} parent=51 // pred_check_branch
          %364 = sbr.rel (%p362) target = $region68
        $region67: #{tpu_custom_call.1} parent=51 // pred_region
          %365 = dma.done [#allocation13], 8192
        $region68: #{tpu_custom_call.1} parent=51 // pred_fallthru
          _
        // Predicated region
        $region69: #{tpu_custom_call.1} parent=51 // pred_check
          %p366 = pneg %p133
        $region70: #{tpu_custom_call.1} parent=51 // pred_check_branch
          %368 = sbr.rel (%p366) target = $region72
        $region71: #{tpu_custom_call.1} parent=51 // pred_region
          %369 = dma.done [#allocation13], 8192
        $region72: #{tpu_custom_call.1} parent=51 // pred_fallthru
          _
        // Predicated region
        $region73: #{tpu_custom_call.1} parent=51 // pred_check
          %p370 = pneg %p154
        $region74: #{tpu_custom_call.1} parent=51 // pred_check_branch
          %372 = sbr.rel (%p370) target = $region76
        $region75: #{tpu_custom_call.1} parent=51 // pred_region
          %373 = dma.done [#allocation16], 2048
        $region76: #{tpu_custom_call.1} parent=51 // pred_fallthru
          _
        // Predicated region
        $region77: #{tpu_custom_call.1} parent=51 // pred_check
          %p374 = pneg %p175
        $region78: #{tpu_custom_call.1} parent=51 // pred_check_branch
          %376 = sbr.rel (%p374) target = $region80
        $region79: #{tpu_custom_call.1} parent=51 // pred_region
          %377 = dma.done [#allocation16], 2048
        $region80: #{tpu_custom_call.1} parent=51 // pred_fallthru
          _
        %s378 = sand.u32 %s36, 1
        %s379 = scalar_lea.sflag [#allocation7], %s378
        %s380 = sand.u32 %s36, 1
        %s381 = smul.addr %s380, 8
        %s382 = scalar_lea.vmem [#allocation6], %s381
        %p383 = pneg %p49
        %p384 = pneg %p46
        %p385 = pneg %p70
        %p386 = pneg %p67
        %p387 = pneg %p91
        %p388 = pneg %p88
        %p389 = pneg %p112
        %p390 = pneg %p109
        %p391 = pneg %p133
        %p392 = pneg %p130
        %p393 = pneg %p154
        %p394 = pneg %p151
        %p395 = pneg %p175
        %p396 = pneg %p172
        %p397 = pneg %p196
        %p398 = pneg %p193
        %p399 = pneg %p222
        %p400 = pneg %p219
        %s401 = sand.u32 %s209, 1
        %s402 = scalar_lea.sflag [#allocation8], %s401
        %s403 = sand.u32 %s209, 1
        %s404 = smul.addr %s403, 8
        %s405 = scalar_lea.vmem [#allocation18], %s404
        %v406 = vld [vmem:[%s349] sm:$0xff]
        %v407 = vld [vmem:[#allocation9] sm:$0xff]
        %v408 = vld [vmem:[#allocation9 + $0x8] sm:$0xff]
        %v409 = vld [vmem:[#allocation9 + $0x10] sm:$0xff]
        %v410 = vld [vmem:[#allocation9 + $0x18] sm:$0xff]
        %v411 = vld [vmem:[#allocation9 + $0x20] sm:$0xff]
        %v412 = vld [vmem:[#allocation9 + $0x28] sm:$0xff]
        %v413 = vld [vmem:[#allocation9 + $0x30] sm:$0xff]
        %v414 = vld [vmem:[#allocation9 + $0x38] sm:$0xff]
        %v415 = vld [vmem:[#allocation9 + $0x40] sm:$0xff]
        %v416 = vld [vmem:[#allocation9 + $0x48] sm:$0xff]
        %v417 = vld [vmem:[#allocation9 + $0x50] sm:$0xff]
        %v418 = vld [vmem:[#allocation9 + $0x58] sm:$0xff]
        %v419 = vld [vmem:[#allocation9 + $0x60] sm:$0xff]
        %v420 = vld [vmem:[#allocation9 + $0x68] sm:$0xff]
        %v421 = vld [vmem:[#allocation9 + $0x70] sm:$0xff]
        %v422 = vld [vmem:[#allocation9 + $0x78] sm:$0xff]
        %v423 = vld [vmem:[#allocation9 + $0x80] sm:$0xff]
        %v424 = vld [vmem:[#allocation9 + $0x88] sm:$0xff]
        %v425 = vld [vmem:[#allocation9 + $0x90] sm:$0xff]
        %v426 = vld [vmem:[#allocation9 + $0x98] sm:$0xff]
        %v427 = vld [vmem:[#allocation9 + $0xa0] sm:$0xff]
        %v428 = vld [vmem:[#allocation9 + $0xa8] sm:$0xff]
        %v429 = vld [vmem:[#allocation9 + $0xb0] sm:$0xff]
        %v430 = vld [vmem:[#allocation9 + $0xb8] sm:$0xff]
        %v431 = vld [vmem:[#allocation9 + $0xc0] sm:$0xff]
        %v432 = vld [vmem:[#allocation9 + $0xc8] sm:$0xff]
        %v433 = vld [vmem:[#allocation9 + $0xd0] sm:$0xff]
        %v434 = vld [vmem:[#allocation9 + $0xd8] sm:$0xff]
        %v435 = vld [vmem:[#allocation9 + $0xe0] sm:$0xff]
        %v436 = vld [vmem:[#allocation9 + $0xe8] sm:$0xff]
        %v437 = vld [vmem:[#allocation9 + $0xf0] sm:$0xff]
        %v438 = vld [vmem:[#allocation9 + $0xf8] sm:$0xff]
        %v439 = vld [vmem:[#allocation11] sm:$0xff]
        %v441 = vlaneseq
        %v442 = vshrl.u32 %v441, 7
        %v443 = vsub.s32 0, %v442
        %v444 = vrot.slane %v439, %v443
        %v445 = vlaneseq
        %v446 = vshrl.u32 %v445, 7
        %v447 = vsub.s32 1, %v446
        %v448 = vrot.slane %v439, %v447
        %v449 = vlaneseq
        %v450 = vshrl.u32 %v449, 7
        %v451 = vsub.s32 2, %v450
        %v452 = vrot.slane %v439, %v451
        %v453 = vlaneseq
        %v454 = vshrl.u32 %v453, 7
        %v455 = vsub.s32 3, %v454
        %v456 = vrot.slane %v439, %v455
        %v457 = vlaneseq
        %v458 = vshrl.u32 %v457, 7
        %v459 = vsub.s32 4, %v458
        %v460 = vrot.slane %v439, %v459
        %v461 = vlaneseq
        %v462 = vshrl.u32 %v461, 7
        %v463 = vsub.s32 5, %v462
        %v464 = vrot.slane %v439, %v463
        %v465 = vlaneseq
        %v466 = vshrl.u32 %v465, 7
        %v467 = vsub.s32 6, %v466
        %v468 = vrot.slane %v439, %v467
        %v469 = vlaneseq
        %v470 = vshrl.u32 %v469, 7
        %v471 = vsub.s32 7, %v470
        %v472 = vrot.slane %v439, %v471
        %vm481 = vcmask 261120
        %v483 = vsel %vm481, %v406, 0
        %485 = vmatprep.subr.mxu0 0.0
        %486 = vmatpush1.msra.mxu0 0.0
        %487 = vmatprep.subr.mxu0 0.0
        %488 = vmatpush1.msra.mxu0 0.0
        %489 = vmatprep.subr.mxu0 0.0
        %490 = vmatpush1.msra.mxu0 0.0
        %491 = vmatprep.subr.mxu0 0.0
        %492 = vmatpush1.msra.mxu0 0.0
        %493 = vmatprep.subr.mxu0 0.0
        %494 = vmatpush1.msra.mxu0 0.0
        %495 = vmatprep.subr.mxu0 0.0
        %496 = vmatpush1.msra.mxu0 0.0
        %497 = vmatprep.subr.mxu0 0.0
        %498 = vmatpush1.msra.mxu0 0.0
        %499 = vmatprep.subr.mxu0 0.0
        %500 = vmatpush1.msra.mxu0 0.0
        %501 = vmatprep.subr.mxu0 0.0
        %502 = vmatpush1.msra.mxu0 0.0
        %503 = vmatprep.subr.mxu0 0.0
        %504 = vmatpush1.msra.mxu0 0.0
        %505 = vmatprep.subr.mxu0 0.0
        %506 = vmatpush1.msra.mxu0 0.0
        %507 = vmatprep.subr.mxu0 0.0
        %508 = vmatpush1.msra.mxu0 0.0
        %509 = vmatprep.subr.mxu0 %v432
        %510 = vmatpush1.msra.mxu0 %v431
        %511 = vmatprep.subr.mxu0 %v424
        %512 = vmatpush1.msra.mxu0 %v423
        %513 = vmatprep.subr.mxu0 %v416
        %514 = vmatpush1.msra.mxu0 %v415
        %515 = vmatprep.subr.mxu0 %v408
        %516 = vmatpush1.msra.mxu0 %v407
        %517 = vmatprep.subr.mxu0 0.0
        %518 = vmatpush2.msra.mxu0 0.0
        %519 = vmatprep.subr.mxu0 0.0
        %520 = vmatpush2.msra.mxu0 0.0
        %521 = vmatprep.subr.mxu0 0.0
        %522 = vmatpush2.msra.mxu0 0.0
        %523 = vmatprep.subr.mxu0 0.0
        %524 = vmatpush2.msra.mxu0 0.0
        %525 = vmatprep.subr.mxu0 0.0
        %526 = vmatpush2.msra.mxu0 0.0
        %527 = vmatprep.subr.mxu0 0.0
        %528 = vmatpush2.msra.mxu0 0.0
        %529 = vmatprep.subr.mxu0 0.0
        %530 = vmatpush2.msra.mxu0 0.0
        %531 = vmatprep.subr.mxu0 0.0
        %532 = vmatpush2.msra.mxu0 0.0
        %533 = vmatprep.subr.mxu0 0.0
        %534 = vmatpush2.msra.mxu0 0.0
        %535 = vmatprep.subr.mxu0 0.0
        %536 = vmatpush2.msra.mxu0 0.0
        %537 = vmatprep.subr.mxu0 0.0
        %538 = vmatpush2.msra.mxu0 0.0
        %539 = vmatprep.subr.mxu0 0.0
        %540 = vmatpush2.msra.mxu0 0.0
        %541 = vmatprep.subr.mxu0 0.0
        %542 = vmatpush2.msra.mxu0 0.0
        %543 = vmatprep.subr.mxu0 0.0
        %544 = vmatpush2.msra.mxu0 0.0
        %545 = vmatprep.subr.mxu0 0.0
        %546 = vmatpush2.msra.mxu0 0.0
        %547 = vmatprep.subr.mxu0 0.0
        %548 = vmatpush2.msra.mxu0 0.0
        %549 = vmatprep.mubr.f32.mxu0 0.0
        %550 = vmatmul.mubr.f32.gmra.mxu0 %v483
        %v551 = vpop.f32.mrf.mxu0
        %v552 = vadd.f32 %v444, %v551
        %v553 = vpop.f32.mrf.mxu0
        %v554 = vadd.f32 %v448, %v553
        %555 = vdwg.mxu0
        %556 = vmatprep.subr.mxu0 0.0
        %557 = vmatpush1.msra.mxu0 0.0
        %558 = vmatprep.subr.mxu0 0.0
        %559 = vmatpush1.msra.mxu0 0.0
        %560 = vmatprep.subr.mxu0 0.0
        %561 = vmatpush1.msra.mxu0 0.0
        %562 = vmatprep.subr.mxu0 0.0
        %563 = vmatpush1.msra.mxu0 0.0
        %564 = vmatprep.subr.mxu0 0.0
        %565 = vmatpush1.msra.mxu0 0.0
        %566 = vmatprep.subr.mxu0 0.0
        %567 = vmatpush1.msra.mxu0 0.0
        %568 = vmatprep.subr.mxu0 0.0
        %569 = vmatpush1.msra.mxu0 0.0
        %570 = vmatprep.subr.mxu0 0.0
        %571 = vmatpush1.msra.mxu0 0.0
        %572 = vmatprep.subr.mxu0 0.0
        %573 = vmatpush1.msra.mxu0 0.0
        %574 = vmatprep.subr.mxu0 0.0
        %575 = vmatpush1.msra.mxu0 0.0
        %576 = vmatprep.subr.mxu0 0.0
        %577 = vmatpush1.msra.mxu0 0.0
        %578 = vmatprep.subr.mxu0 0.0
        %579 = vmatpush1.msra.mxu0 0.0
        %580 = vmatprep.subr.mxu0 %v434
        %581 = vmatpush1.msra.mxu0 %v433
        %582 = vmatprep.subr.mxu0 %v426
        %583 = vmatpush1.msra.mxu0 %v425
        %584 = vmatprep.subr.mxu0 %v418
        %585 = vmatpush1.msra.mxu0 %v417
        %586 = vmatprep.subr.mxu0 %v410
        %587 = vmatpush1.msra.mxu0 %v409
        %588 = vmatprep.subr.mxu0 0.0
        %589 = vmatpush2.msra.mxu0 0.0
        %590 = vmatprep.subr.mxu0 0.0
        %591 = vmatpush2.msra.mxu0 0.0
        %592 = vmatprep.subr.mxu0 0.0
        %593 = vmatpush2.msra.mxu0 0.0
        %594 = vmatprep.subr.mxu0 0.0
        %595 = vmatpush2.msra.mxu0 0.0
        %596 = vmatprep.subr.mxu0 0.0
        %597 = vmatpush2.msra.mxu0 0.0
        %598 = vmatprep.subr.mxu0 0.0
        %599 = vmatpush2.msra.mxu0 0.0
        %600 = vmatprep.subr.mxu0 0.0
        %601 = vmatpush2.msra.mxu0 0.0
        %602 = vmatprep.subr.mxu0 0.0
        %603 = vmatpush2.msra.mxu0 0.0
        %604 = vmatprep.subr.mxu0 0.0
        %605 = vmatpush2.msra.mxu0 0.0
        %606 = vmatprep.subr.mxu0 0.0
        %607 = vmatpush2.msra.mxu0 0.0
        %608 = vmatprep.subr.mxu0 0.0
        %609 = vmatpush2.msra.mxu0 0.0
        %610 = vmatprep.subr.mxu0 0.0
        %611 = vmatpush2.msra.mxu0 0.0
        %612 = vmatprep.subr.mxu0 0.0
        %613 = vmatpush2.msra.mxu0 0.0
        %614 = vmatprep.subr.mxu0 0.0
        %615 = vmatpush2.msra.mxu0 0.0
        %616 = vmatprep.subr.mxu0 0.0
        %617 = vmatpush2.msra.mxu0 0.0
        %618 = vmatprep.subr.mxu0 0.0
        %619 = vmatpush2.msra.mxu0 0.0
        %620 = vmatprep.mubr.f32.mxu0 0.0
        %621 = vmatmul.mubr.f32.gmra.mxu0 %v483
        %v622 = vpop.f32.mrf.mxu0
        %v623 = vadd.f32 %v452, %v622
        %v624 = vpop.f32.mrf.mxu0
        %v625 = vadd.f32 %v456, %v624
        %626 = vdwg.mxu0
        %627 = vmatprep.subr.mxu0 0.0
        %628 = vmatpush1.msra.mxu0 0.0
        %629 = vmatprep.subr.mxu0 0.0
        %630 = vmatpush1.msra.mxu0 0.0
        %631 = vmatprep.subr.mxu0 0.0
        %632 = vmatpush1.msra.mxu0 0.0
        %633 = vmatprep.subr.mxu0 0.0
        %634 = vmatpush1.msra.mxu0 0.0
        %635 = vmatprep.subr.mxu0 0.0
        %636 = vmatpush1.msra.mxu0 0.0
        %637 = vmatprep.subr.mxu0 0.0
        %638 = vmatpush1.msra.mxu0 0.0
        %639 = vmatprep.subr.mxu0 0.0
        %640 = vmatpush1.msra.mxu0 0.0
        %641 = vmatprep.subr.mxu0 0.0
        %642 = vmatpush1.msra.mxu0 0.0
        %643 = vmatprep.subr.mxu0 0.0
        %644 = vmatpush1.msra.mxu0 0.0
        %645 = vmatprep.subr.mxu0 0.0
        %646 = vmatpush1.msra.mxu0 0.0
        %647 = vmatprep.subr.mxu0 0.0
        %648 = vmatpush1.msra.mxu0 0.0
        %649 = vmatprep.subr.mxu0 0.0
        %650 = vmatpush1.msra.mxu0 0.0
        %651 = vmatprep.subr.mxu0 %v436
        %652 = vmatpush1.msra.mxu0 %v435
        %653 = vmatprep.subr.mxu0 %v428
        %654 = vmatpush1.msra.mxu0 %v427
        %655 = vmatprep.subr.mxu0 %v420
        %656 = vmatpush1.msra.mxu0 %v419
        %657 = vmatprep.subr.mxu0 %v412
        %658 = vmatpush1.msra.mxu0 %v411
        %659 = vmatprep.subr.mxu0 0.0
        %660 = vmatpush2.msra.mxu0 0.0
        %661 = vmatprep.subr.mxu0 0.0
        %662 = vmatpush2.msra.mxu0 0.0
        %663 = vmatprep.subr.mxu0 0.0
        %664 = vmatpush2.msra.mxu0 0.0
        %665 = vmatprep.subr.mxu0 0.0
        %666 = vmatpush2.msra.mxu0 0.0
        %667 = vmatprep.subr.mxu0 0.0
        %668 = vmatpush2.msra.mxu0 0.0
        %669 = vmatprep.subr.mxu0 0.0
        %670 = vmatpush2.msra.mxu0 0.0
        %671 = vmatprep.subr.mxu0 0.0
        %672 = vmatpush2.msra.mxu0 0.0
        %673 = vmatprep.subr.mxu0 0.0
        %674 = vmatpush2.msra.mxu0 0.0
        %675 = vmatprep.subr.mxu0 0.0
        %676 = vmatpush2.msra.mxu0 0.0
        %677 = vmatprep.subr.mxu0 0.0
        %678 = vmatpush2.msra.mxu0 0.0
        %679 = vmatprep.subr.mxu0 0.0
        %680 = vmatpush2.msra.mxu0 0.0
        %681 = vmatprep.subr.mxu0 0.0
        %682 = vmatpush2.msra.mxu0 0.0
        %683 = vmatprep.subr.mxu0 0.0
        %684 = vmatpush2.msra.mxu0 0.0
        %685 = vmatprep.subr.mxu0 0.0
        %686 = vmatpush2.msra.mxu0 0.0
        %687 = vmatprep.subr.mxu0 0.0
        %688 = vmatpush2.msra.mxu0 0.0
        %689 = vmatprep.subr.mxu0 0.0
        %690 = vmatpush2.msra.mxu0 0.0
        %691 = vmatprep.mubr.f32.mxu0 0.0
        %692 = vmatmul.mubr.f32.gmra.mxu0 %v483
        %v693 = vpop.f32.mrf.mxu0
        %v694 = vadd.f32 %v460, %v693
        %v695 = vpop.f32.mrf.mxu0
        %v696 = vadd.f32 %v464, %v695
        %697 = vdwg.mxu0
        %698 = vmatprep.subr.mxu0 0.0
        %699 = vmatpush1.msra.mxu0 0.0
        %700 = vmatprep.subr.mxu0 0.0
        %701 = vmatpush1.msra.mxu0 0.0
        %702 = vmatprep.subr.mxu0 0.0
        %703 = vmatpush1.msra.mxu0 0.0
        %704 = vmatprep.subr.mxu0 0.0
        %705 = vmatpush1.msra.mxu0 0.0
        %706 = vmatprep.subr.mxu0 0.0
        %707 = vmatpush1.msra.mxu0 0.0
        %708 = vmatprep.subr.mxu0 0.0
        %709 = vmatpush1.msra.mxu0 0.0
        %710 = vmatprep.subr.mxu0 0.0
        %711 = vmatpush1.msra.mxu0 0.0
        %712 = vmatprep.subr.mxu0 0.0
        %713 = vmatpush1.msra.mxu0 0.0
        %714 = vmatprep.subr.mxu0 0.0
        %715 = vmatpush1.msra.mxu0 0.0
        %716 = vmatprep.subr.mxu0 0.0
        %717 = vmatpush1.msra.mxu0 0.0
        %718 = vmatprep.subr.mxu0 0.0
        %719 = vmatpush1.msra.mxu0 0.0
        %720 = vmatprep.subr.mxu0 0.0
        %721 = vmatpush1.msra.mxu0 0.0
        %722 = vmatprep.subr.mxu0 %v438
        %723 = vmatpush1.msra.mxu0 %v437
        %724 = vmatprep.subr.mxu0 %v430
        %725 = vmatpush1.msra.mxu0 %v429
        %726 = vmatprep.subr.mxu0 %v422
        %727 = vmatpush1.msra.mxu0 %v421
        %728 = vmatprep.subr.mxu0 %v414
        %729 = vmatpush1.msra.mxu0 %v413
        %730 = vmatprep.subr.mxu0 0.0
        %731 = vmatpush2.msra.mxu0 0.0
        %732 = vmatprep.subr.mxu0 0.0
        %733 = vmatpush2.msra.mxu0 0.0
        %734 = vmatprep.subr.mxu0 0.0
        %735 = vmatpush2.msra.mxu0 0.0
        %736 = vmatprep.subr.mxu0 0.0
        %737 = vmatpush2.msra.mxu0 0.0
        %738 = vmatprep.subr.mxu0 0.0
        %739 = vmatpush2.msra.mxu0 0.0
        %740 = vmatprep.subr.mxu0 0.0
        %741 = vmatpush2.msra.mxu0 0.0
        %742 = vmatprep.subr.mxu0 0.0
        %743 = vmatpush2.msra.mxu0 0.0
        %744 = vmatprep.subr.mxu0 0.0
        %745 = vmatpush2.msra.mxu0 0.0
        %746 = vmatprep.subr.mxu0 0.0
        %747 = vmatpush2.msra.mxu0 0.0
        %748 = vmatprep.subr.mxu0 0.0
        %749 = vmatpush2.msra.mxu0 0.0
        %750 = vmatprep.subr.mxu0 0.0
        %751 = vmatpush2.msra.mxu0 0.0
        %752 = vmatprep.subr.mxu0 0.0
        %753 = vmatpush2.msra.mxu0 0.0
        %754 = vmatprep.subr.mxu0 0.0
        %755 = vmatpush2.msra.mxu0 0.0
        %756 = vmatprep.subr.mxu0 0.0
        %757 = vmatpush2.msra.mxu0 0.0
        %758 = vmatprep.subr.mxu0 0.0
        %759 = vmatpush2.msra.mxu0 0.0
        %760 = vmatprep.subr.mxu0 0.0
        %761 = vmatpush2.msra.mxu0 0.0
        %762 = vmatprep.mubr.f32.mxu0 0.0
        %763 = vmatmul.mubr.f32.gmra.mxu0 %v483
        %v764 = vpop.f32.mrf.mxu0
        %v765 = vadd.f32 %v468, %v764
        %v766 = vpop.f32.mrf.mxu0
        %v767 = vadd.f32 %v472, %v766
        %768 = vdwg.mxu0
        %769 = vst [vmem:[#allocation2] sm:$0xff] %v552
        %770 = vst [vmem:[#allocation2 + $0x8] sm:$0xff] %v554
        %771 = vst [vmem:[#allocation2 + $0x10] sm:$0xff] %v623
        %772 = vst [vmem:[#allocation2 + $0x18] sm:$0xff] %v625
        %773 = vst [vmem:[#allocation3] sm:$0xff] %v694
        %774 = vst [vmem:[#allocation3 + $0x8] sm:$0xff] %v696
        %775 = vst [vmem:[#allocation3 + $0x10] sm:$0xff] %v765
        %776 = vst [vmem:[#allocation3 + $0x18] sm:$0xff] %v767
        %v777 = vld [vmem:[#allocation12] sm:$0xff]
        %v778 = vld [vmem:[#allocation12 + $0x8] sm:$0xff]
        %v779 = vld [vmem:[#allocation12 + $0x10] sm:$0xff]
        %v780 = vld [vmem:[#allocation12 + $0x18] sm:$0xff]
        %v781 = vld [vmem:[#allocation12 + $0x20] sm:$0xff]
        %v782 = vld [vmem:[#allocation12 + $0x28] sm:$0xff]
        %v783 = vld [vmem:[#allocation12 + $0x30] sm:$0xff]
        %v784 = vld [vmem:[#allocation12 + $0x38] sm:$0xff]
        %v785 = vld [vmem:[#allocation12 + $0x40] sm:$0xff]
        %v786 = vld [vmem:[#allocation12 + $0x48] sm:$0xff]
        %v787 = vld [vmem:[#allocation12 + $0x50] sm:$0xff]
        %v788 = vld [vmem:[#allocation12 + $0x58] sm:$0xff]
        %v789 = vld [vmem:[#allocation12 + $0x60] sm:$0xff]
        %v790 = vld [vmem:[#allocation12 + $0x68] sm:$0xff]
        %v791 = vld [vmem:[#allocation12 + $0x70] sm:$0xff]
        %v792 = vld [vmem:[#allocation12 + $0x78] sm:$0xff]
        %v793 = vld [vmem:[#allocation12 + $0x80] sm:$0xff]
        %v794 = vld [vmem:[#allocation12 + $0x88] sm:$0xff]
        %v795 = vld [vmem:[#allocation12 + $0x90] sm:$0xff]
        %v796 = vld [vmem:[#allocation12 + $0x98] sm:$0xff]
        %v797 = vld [vmem:[#allocation12 + $0xa0] sm:$0xff]
        %v798 = vld [vmem:[#allocation12 + $0xa8] sm:$0xff]
        %v799 = vld [vmem:[#allocation12 + $0xb0] sm:$0xff]
        %v800 = vld [vmem:[#allocation12 + $0xb8] sm:$0xff]
        %v801 = vld [vmem:[#allocation12 + $0xc0] sm:$0xff]
        %v802 = vld [vmem:[#allocation12 + $0xc8] sm:$0xff]
        %v803 = vld [vmem:[#allocation12 + $0xd0] sm:$0xff]
        %v804 = vld [vmem:[#allocation12 + $0xd8] sm:$0xff]
        %v805 = vld [vmem:[#allocation12 + $0xe0] sm:$0xff]
        %v806 = vld [vmem:[#allocation12 + $0xe8] sm:$0xff]
        %v807 = vld [vmem:[#allocation12 + $0xf0] sm:$0xff]
        %v808 = vld [vmem:[#allocation12 + $0xf8] sm:$0xff]
        %v809 = vld [vmem:[#allocation12 + $0x100] sm:$0xff]
        %v810 = vld [vmem:[#allocation12 + $0x108] sm:$0xff]
        %v811 = vld [vmem:[#allocation12 + $0x110] sm:$0xff]
        %v812 = vld [vmem:[#allocation12 + $0x118] sm:$0xff]
        %v813 = vld [vmem:[#allocation12 + $0x120] sm:$0xff]
        %v814 = vld [vmem:[#allocation12 + $0x128] sm:$0xff]
        %v815 = vld [vmem:[#allocation12 + $0x130] sm:$0xff]
        %v816 = vld [vmem:[#allocation12 + $0x138] sm:$0xff]
        %v817 = vld [vmem:[#allocation12 + $0x140] sm:$0xff]
        %v818 = vld [vmem:[#allocation12 + $0x148] sm:$0xff]
        %v819 = vld [vmem:[#allocation12 + $0x150] sm:$0xff]
        %v820 = vld [vmem:[#allocation12 + $0x158] sm:$0xff]
        %v821 = vld [vmem:[#allocation12 + $0x160] sm:$0xff]
        %v822 = vld [vmem:[#allocation12 + $0x168] sm:$0xff]
        %v823 = vld [vmem:[#allocation12 + $0x170] sm:$0xff]
        %v824 = vld [vmem:[#allocation12 + $0x178] sm:$0xff]
        %v825 = vld [vmem:[#allocation12 + $0x180] sm:$0xff]
        %v826 = vld [vmem:[#allocation12 + $0x188] sm:$0xff]
        %v827 = vld [vmem:[#allocation12 + $0x190] sm:$0xff]
        %v828 = vld [vmem:[#allocation12 + $0x198] sm:$0xff]
        %v829 = vld [vmem:[#allocation12 + $0x1a0] sm:$0xff]
        %v830 = vld [vmem:[#allocation12 + $0x1a8] sm:$0xff]
        %v831 = vld [vmem:[#allocation12 + $0x1b0] sm:$0xff]
        %v832 = vld [vmem:[#allocation12 + $0x1b8] sm:$0xff]
        %v833 = vld [vmem:[#allocation12 + $0x1c0] sm:$0xff]
        %v834 = vld [vmem:[#allocation12 + $0x1c8] sm:$0xff]
        %v835 = vld [vmem:[#allocation12 + $0x1d0] sm:$0xff]
        %v836 = vld [vmem:[#allocation12 + $0x1d8] sm:$0xff]
        %v837 = vld [vmem:[#allocation12 + $0x1e0] sm:$0xff]
        %v838 = vld [vmem:[#allocation12 + $0x1e8] sm:$0xff]
        %v839 = vld [vmem:[#allocation12 + $0x1f0] sm:$0xff]
        %v840 = vld [vmem:[#allocation12 + $0x1f8] sm:$0xff]
        %v841 = vld [vmem:[#allocation14] sm:$0xff]
        %v842 = vld [vmem:[#allocation14 + $0x8] sm:$0xff]
        %v843 = vld [vmem:[#allocation14 + $0x10] sm:$0xff]
        %v844 = vld [vmem:[#allocation14 + $0x18] sm:$0xff]
        %v845 = vld [vmem:[#allocation14 + $0x20] sm:$0xff]
        %v846 = vld [vmem:[#allocation14 + $0x28] sm:$0xff]
        %v847 = vld [vmem:[#allocation14 + $0x30] sm:$0xff]
        %v848 = vld [vmem:[#allocation14 + $0x38] sm:$0xff]
        %v849 = vld [vmem:[#allocation14 + $0x40] sm:$0xff]
        %v850 = vld [vmem:[#allocation14 + $0x48] sm:$0xff]
        %v851 = vld [vmem:[#allocation14 + $0x50] sm:$0xff]
        %v852 = vld [vmem:[#allocation14 + $0x58] sm:$0xff]
        %v853 = vld [vmem:[#allocation14 + $0x60] sm:$0xff]
        %v854 = vld [vmem:[#allocation14 + $0x68] sm:$0xff]
        %v855 = vld [vmem:[#allocation14 + $0x70] sm:$0xff]
        %v856 = vld [vmem:[#allocation14 + $0x78] sm:$0xff]
        %v857 = vld [vmem:[#allocation14 + $0x80] sm:$0xff]
        %v858 = vld [vmem:[#allocation14 + $0x88] sm:$0xff]
        %v859 = vld [vmem:[#allocation14 + $0x90] sm:$0xff]
        %v860 = vld [vmem:[#allocation14 + $0x98] sm:$0xff]
        %v861 = vld [vmem:[#allocation14 + $0xa0] sm:$0xff]
        %v862 = vld [vmem:[#allocation14 + $0xa8] sm:$0xff]
        %v863 = vld [vmem:[#allocation14 + $0xb0] sm:$0xff]
        %v864 = vld [vmem:[#allocation14 + $0xb8] sm:$0xff]
        %v865 = vld [vmem:[#allocation14 + $0xc0] sm:$0xff]
        %v866 = vld [vmem:[#allocation14 + $0xc8] sm:$0xff]
        %v867 = vld [vmem:[#allocation14 + $0xd0] sm:$0xff]
        %v868 = vld [vmem:[#allocation14 + $0xd8] sm:$0xff]
        %v869 = vld [vmem:[#allocation14 + $0xe0] sm:$0xff]
        %v870 = vld [vmem:[#allocation14 + $0xe8] sm:$0xff]
        %v871 = vld [vmem:[#allocation14 + $0xf0] sm:$0xff]
        %v872 = vld [vmem:[#allocation14 + $0xf8] sm:$0xff]
        %v873 = vld [vmem:[#allocation14 + $0x100] sm:$0xff]
        %v874 = vld [vmem:[#allocation14 + $0x108] sm:$0xff]
        %v875 = vld [vmem:[#allocation14 + $0x110] sm:$0xff]
        %v876 = vld [vmem:[#allocation14 + $0x118] sm:$0xff]
        %v877 = vld [vmem:[#allocation14 + $0x120] sm:$0xff]
        %v878 = vld [vmem:[#allocation14 + $0x128] sm:$0xff]
        %v879 = vld [vmem:[#allocation14 + $0x130] sm:$0xff]
        %v880 = vld [vmem:[#allocation14 + $0x138] sm:$0xff]
        %v881 = vld [vmem:[#allocation14 + $0x140] sm:$0xff]
        %v882 = vld [vmem:[#allocation14 + $0x148] sm:$0xff]
        %v883 = vld [vmem:[#allocation14 + $0x150] sm:$0xff]
        %v884 = vld [vmem:[#allocation14 + $0x158] sm:$0xff]
        %v885 = vld [vmem:[#allocation14 + $0x160] sm:$0xff]
        %v886 = vld [vmem:[#allocation14 + $0x168] sm:$0xff]
        %v887 = vld [vmem:[#allocation14 + $0x170] sm:$0xff]
        %v888 = vld [vmem:[#allocation14 + $0x178] sm:$0xff]
        %v889 = vld [vmem:[#allocation14 + $0x180] sm:$0xff]
        %v890 = vld [vmem:[#allocation14 + $0x188] sm:$0xff]
        %v891 = vld [vmem:[#allocation14 + $0x190] sm:$0xff]
        %v892 = vld [vmem:[#allocation14 + $0x198] sm:$0xff]
        %v893 = vld [vmem:[#allocation14 + $0x1a0] sm:$0xff]
        %v894 = vld [vmem:[#allocation14 + $0x1a8] sm:$0xff]
        %v895 = vld [vmem:[#allocation14 + $0x1b0] sm:$0xff]
        %v896 = vld [vmem:[#allocation14 + $0x1b8] sm:$0xff]
        %v897 = vld [vmem:[#allocation14 + $0x1c0] sm:$0xff]
        %v898 = vld [vmem:[#allocation14 + $0x1c8] sm:$0xff]
        %v899 = vld [vmem:[#allocation14 + $0x1d0] sm:$0xff]
        %v900 = vld [vmem:[#allocation14 + $0x1d8] sm:$0xff]
        %v901 = vld [vmem:[#allocation14 + $0x1e0] sm:$0xff]
        %v902 = vld [vmem:[#allocation14 + $0x1e8] sm:$0xff]
        %v903 = vld [vmem:[#allocation14 + $0x1f0] sm:$0xff]
        %v904 = vld [vmem:[#allocation14 + $0x1f8] sm:$0xff]
        %v905 = vld [vmem:[#allocation2] ss:$8 sm:$0xf]
        %906 = vmatprep.subr.mxu0 %v838
        %907 = vmatpush1.msra.mxu0 %v837
        %908 = vmatprep.subr.mxu0 %v834
        %909 = vmatpush1.msra.mxu0 %v833
        %910 = vmatprep.subr.mxu0 %v830
        %911 = vmatpush1.msra.mxu0 %v829
        %912 = vmatprep.subr.mxu0 %v826
        %913 = vmatpush1.msra.mxu0 %v825
        %914 = vmatprep.subr.mxu0 %v822
        %915 = vmatpush1.msra.mxu0 %v821
        %916 = vmatprep.subr.mxu0 %v818
        %917 = vmatpush1.msra.mxu0 %v817
        %918 = vmatprep.subr.mxu0 %v814
        %919 = vmatpush1.msra.mxu0 %v813
        %920 = vmatprep.subr.mxu0 %v810
        %921 = vmatpush1.msra.mxu0 %v809
        %922 = vmatprep.subr.mxu0 %v806
        %923 = vmatpush1.msra.mxu0 %v805
        %924 = vmatprep.subr.mxu0 %v802
        %925 = vmatpush1.msra.mxu0 %v801
        %926 = vmatprep.subr.mxu0 %v798
        %927 = vmatpush1.msra.mxu0 %v797
        %928 = vmatprep.subr.mxu0 %v794
        %929 = vmatpush1.msra.mxu0 %v793
        %930 = vmatprep.subr.mxu0 %v790
        %931 = vmatpush1.msra.mxu0 %v789
        %932 = vmatprep.subr.mxu0 %v786
        %933 = vmatpush1.msra.mxu0 %v785
        %934 = vmatprep.subr.mxu0 %v782
        %935 = vmatpush1.msra.mxu0 %v781
        %936 = vmatprep.subr.mxu0 %v778
        %937 = vmatpush1.msra.mxu0 %v777
        %938 = vmatprep.subr.mxu0 0.0
        %939 = vmatpush2.msra.mxu0 0.0
        %940 = vmatprep.subr.mxu0 0.0
        %941 = vmatpush2.msra.mxu0 0.0
        %942 = vmatprep.subr.mxu0 0.0
        %943 = vmatpush2.msra.mxu0 0.0
        %944 = vmatprep.subr.mxu0 0.0
        %945 = vmatpush2.msra.mxu0 0.0
        %946 = vmatprep.subr.mxu0 0.0
        %947 = vmatpush2.msra.mxu0 0.0
        %948 = vmatprep.subr.mxu0 0.0
        %949 = vmatpush2.msra.mxu0 0.0
        %950 = vmatprep.subr.mxu0 0.0
        %951 = vmatpush2.msra.mxu0 0.0
        %952 = vmatprep.subr.mxu0 0.0
        %953 = vmatpush2.msra.mxu0 0.0
        %954 = vmatprep.subr.mxu0 0.0
        %955 = vmatpush2.msra.mxu0 0.0
        %956 = vmatprep.subr.mxu0 0.0
        %957 = vmatpush2.msra.mxu0 0.0
        %958 = vmatprep.subr.mxu0 0.0
        %959 = vmatpush2.msra.mxu0 0.0
        %960 = vmatprep.subr.mxu0 0.0
        %961 = vmatpush2.msra.mxu0 0.0
        %962 = vmatprep.subr.mxu0 0.0
        %963 = vmatpush2.msra.mxu0 0.0
        %964 = vmatprep.subr.mxu0 0.0
        %965 = vmatpush2.msra.mxu0 0.0
        %966 = vmatprep.subr.mxu0 0.0
        %967 = vmatpush2.msra.mxu0 0.0
        %968 = vmatprep.subr.mxu0 0.0
        %969 = vmatpush2.msra.mxu0 0.0
        %970 = vmatprep.mubr.f32.mxu0 0.0
        %971 = vmatmul.mubr.f32.gmra.mxu0 0.0
        %v972 = vpop.f32.mrf.mxu0
        %v973 = vadd.f32 0.0, %v972
        %v974 = vpop.f32.mrf.mxu0
        %v975 = vadd.f32 0.0, %v974
        %976 = vdwg.mxu0
        %977 = vmatprep.subr.mxu0 %v840
        %978 = vmatpush1.msra.mxu0 %v839
        %979 = vmatprep.subr.mxu0 %v836
        %980 = vmatpush1.msra.mxu0 %v835
        %981 = vmatprep.subr.mxu0 %v832
        %982 = vmatpush1.msra.mxu0 %v831
        %983 = vmatprep.subr.mxu0 %v828
        %984 = vmatpush1.msra.mxu0 %v827
        %985 = vmatprep.subr.mxu0 %v824
        %986 = vmatpush1.msra.mxu0 %v823
        %987 = vmatprep.subr.mxu0 %v820
        %988 = vmatpush1.msra.mxu0 %v819
        %989 = vmatprep.subr.mxu0 %v816
        %990 = vmatpush1.msra.mxu0 %v815
        %991 = vmatprep.subr.mxu0 %v812
        %992 = vmatpush1.msra.mxu0 %v811
        %993 = vmatprep.subr.mxu0 %v808
        %994 = vmatpush1.msra.mxu0 %v807
        %995 = vmatprep.subr.mxu0 %v804
        %996 = vmatpush1.msra.mxu0 %v803
        %997 = vmatprep.subr.mxu0 %v800
        %998 = vmatpush1.msra.mxu0 %v799
        %999 = vmatprep.subr.mxu0 %v796
        %1000 = vmatpush1.msra.mxu0 %v795
        %1001 = vmatprep.subr.mxu0 %v792
        %1002 = vmatpush1.msra.mxu0 %v791
        %1003 = vmatprep.subr.mxu0 %v788
        %1004 = vmatpush1.msra.mxu0 %v787
        %1005 = vmatprep.subr.mxu0 %v784
        %1006 = vmatpush1.msra.mxu0 %v783
        %1007 = vmatprep.subr.mxu0 %v780
        %1008 = vmatpush1.msra.mxu0 %v779
        %1009 = vmatprep.subr.mxu0 0.0
        %1010 = vmatpush2.msra.mxu0 0.0
        %1011 = vmatprep.subr.mxu0 0.0
        %1012 = vmatpush2.msra.mxu0 0.0
        %1013 = vmatprep.subr.mxu0 0.0
        %1014 = vmatpush2.msra.mxu0 0.0
        %1015 = vmatprep.subr.mxu0 0.0
        %1016 = vmatpush2.msra.mxu0 0.0
        %1017 = vmatprep.subr.mxu0 0.0
        %1018 = vmatpush2.msra.mxu0 0.0
        %1019 = vmatprep.subr.mxu0 0.0
        %1020 = vmatpush2.msra.mxu0 0.0
        %1021 = vmatprep.subr.mxu0 0.0
        %1022 = vmatpush2.msra.mxu0 0.0
        %1023 = vmatprep.subr.mxu0 0.0
        %1024 = vmatpush2.msra.mxu0 0.0
        %1025 = vmatprep.subr.mxu0 0.0
        %1026 = vmatpush2.msra.mxu0 0.0
        %1027 = vmatprep.subr.mxu0 0.0
        %1028 = vmatpush2.msra.mxu0 0.0
        %1029 = vmatprep.subr.mxu0 0.0
        %1030 = vmatpush2.msra.mxu0 0.0
        %1031 = vmatprep.subr.mxu0 0.0
        %1032 = vmatpush2.msra.mxu0 0.0
        %1033 = vmatprep.subr.mxu0 0.0
        %1034 = vmatpush2.msra.mxu0 0.0
        %1035 = vmatprep.subr.mxu0 0.0
        %1036 = vmatpush2.msra.mxu0 0.0
        %1037 = vmatprep.subr.mxu0 0.0
        %1038 = vmatpush2.msra.mxu0 0.0
        %1039 = vmatprep.subr.mxu0 0.0
        %1040 = vmatpush2.msra.mxu0 0.0
        %1041 = vmatprep.mubr.f32.mxu0 0.0
        %1042 = vmatmul.mubr.f32.gmra.mxu0 0.0
        %v1043 = vpop.f32.mrf.mxu0
        %v1044 = vadd.f32 0.0, %v1043
        %v1045 = vpop.f32.mrf.mxu0
        %v1046 = vadd.f32 0.0, %v1045
        %1047 = vdwg.mxu0
        %v1052 = vcombine.low %v973, %v975
        %v1053 = vcombine.low %v1044, %v1046
        %v1055 = vunpack.c.l.s4 1966171168
        %v1056 = vunpack.c.0.s8 %v1055
        %v1057 = vlaneseq
        %v1058 = vshrl.u32 %v1057, 7
        %v1059 = vsub.s32 %v1056, %v1058
        %v1060 = vrot.slane %v1052, %v1059
        %v1062 = vunpack.c.l.s4 1966171168
        %v1063 = vunpack.c.0.s8 %v1062
        %v1064 = vlaneseq
        %v1065 = vshrl.u32 %v1064, 7
        %v1066 = vsub.s32 %v1063, %v1065
        %v1067 = vrot.slane %v1053, %v1066
        %v1068 = vcombine.low %v1060, %v1067
        %v1070 = vunpack.c.l.s4 1966171168
        %v1071 = vunpack.c.0.s8 %v1070
        %v1072 = vlaneseq
        %v1073 = vshrl.u32 %v1072, 7
        %v1074 = vsub.s32 %v1071, %v1073
        %v1075 = vrot.slane %v1068, %v1074
        %v1077 = vadd.f32 %v905, %v1075
        %s1078 = scalar_lea.vmem [#allocation3], 7
        %v1079 = vld [vmem:[%s1078] ss:$8 sm:$0xf]
        %1080 = vmatprep.subr.mxu0 %v902
        %1081 = vmatpush1.msra.mxu0 %v901
        %1082 = vmatprep.subr.mxu0 %v898
        %1083 = vmatpush1.msra.mxu0 %v897
        %1084 = vmatprep.subr.mxu0 %v894
        %1085 = vmatpush1.msra.mxu0 %v893
        %1086 = vmatprep.subr.mxu0 %v890
        %1087 = vmatpush1.msra.mxu0 %v889
        %1088 = vmatprep.subr.mxu0 %v886
        %1089 = vmatpush1.msra.mxu0 %v885
        %1090 = vmatprep.subr.mxu0 %v882
        %1091 = vmatpush1.msra.mxu0 %v881
        %1092 = vmatprep.subr.mxu0 %v878
        %1093 = vmatpush1.msra.mxu0 %v877
        %1094 = vmatprep.subr.mxu0 %v874
        %1095 = vmatpush1.msra.mxu0 %v873
        %1096 = vmatprep.subr.mxu0 %v870
        %1097 = vmatpush1.msra.mxu0 %v869
        %1098 = vmatprep.subr.mxu0 %v866
        %1099 = vmatpush1.msra.mxu0 %v865
        %1100 = vmatprep.subr.mxu0 %v862
        %1101 = vmatpush1.msra.mxu0 %v861
        %1102 = vmatprep.subr.mxu0 %v858
        %1103 = vmatpush1.msra.mxu0 %v857
        %1104 = vmatprep.subr.mxu0 %v854
        %1105 = vmatpush1.msra.mxu0 %v853
        %1106 = vmatprep.subr.mxu0 %v850
        %1107 = vmatpush1.msra.mxu0 %v849
        %1108 = vmatprep.subr.mxu0 %v846
        %1109 = vmatpush1.msra.mxu0 %v845
        %1110 = vmatprep.subr.mxu0 %v842
        %1111 = vmatpush1.msra.mxu0 %v841
        %1112 = vmatprep.subr.mxu0 0.0
        %1113 = vmatpush2.msra.mxu0 0.0
        %1114 = vmatprep.subr.mxu0 0.0
        %1115 = vmatpush2.msra.mxu0 0.0
        %1116 = vmatprep.subr.mxu0 0.0
        %1117 = vmatpush2.msra.mxu0 0.0
        %1118 = vmatprep.subr.mxu0 0.0
        %1119 = vmatpush2.msra.mxu0 0.0
        %1120 = vmatprep.subr.mxu0 0.0
        %1121 = vmatpush2.msra.mxu0 0.0
        %1122 = vmatprep.subr.mxu0 0.0
        %1123 = vmatpush2.msra.mxu0 0.0
        %1124 = vmatprep.subr.mxu0 0.0
        %1125 = vmatpush2.msra.mxu0 0.0
        %1126 = vmatprep.subr.mxu0 0.0
        %1127 = vmatpush2.msra.mxu0 0.0
        %1128 = vmatprep.subr.mxu0 0.0
        %1129 = vmatpush2.msra.mxu0 0.0
        %1130 = vmatprep.subr.mxu0 0.0
        %1131 = vmatpush2.msra.mxu0 0.0
        %1132 = vmatprep.subr.mxu0 0.0
        %1133 = vmatpush2.msra.mxu0 0.0
        %1134 = vmatprep.subr.mxu0 0.0
        %1135 = vmatpush2.msra.mxu0 0.0
        %1136 = vmatprep.subr.mxu0 0.0
        %1137 = vmatpush2.msra.mxu0 0.0
        %1138 = vmatprep.subr.mxu0 0.0
        %1139 = vmatpush2.msra.mxu0 0.0
        %1140 = vmatprep.subr.mxu0 0.0
        %1141 = vmatpush2.msra.mxu0 0.0
        %1142 = vmatprep.subr.mxu0 0.0
        %1143 = vmatpush2.msra.mxu0 0.0
        %1144 = vmatprep.mubr.f32.mxu0 0.0
        %1145 = vmatmul.mubr.f32.gmra.mxu0 0.0
        %v1146 = vpop.f32.mrf.mxu0
        %v1147 = vadd.f32 0.0, %v1146
        %v1148 = vpop.f32.mrf.mxu0
        %v1149 = vadd.f32 0.0, %v1148
        %1150 = vdwg.mxu0
        %1151 = vmatprep.subr.mxu0 %v904
        %1152 = vmatpush1.msra.mxu0 %v903
        %1153 = vmatprep.subr.mxu0 %v900
        %1154 = vmatpush1.msra.mxu0 %v899
        %1155 = vmatprep.subr.mxu0 %v896
        %1156 = vmatpush1.msra.mxu0 %v895
        %1157 = vmatprep.subr.mxu0 %v892
        %1158 = vmatpush1.msra.mxu0 %v891
        %1159 = vmatprep.subr.mxu0 %v888
        %1160 = vmatpush1.msra.mxu0 %v887
        %1161 = vmatprep.subr.mxu0 %v884
        %1162 = vmatpush1.msra.mxu0 %v883
        %1163 = vmatprep.subr.mxu0 %v880
        %1164 = vmatpush1.msra.mxu0 %v879
        %1165 = vmatprep.subr.mxu0 %v876
        %1166 = vmatpush1.msra.mxu0 %v875
        %1167 = vmatprep.subr.mxu0 %v872
        %1168 = vmatpush1.msra.mxu0 %v871
        %1169 = vmatprep.subr.mxu0 %v868
        %1170 = vmatpush1.msra.mxu0 %v867
        %1171 = vmatprep.subr.mxu0 %v864
        %1172 = vmatpush1.msra.mxu0 %v863
        %1173 = vmatprep.subr.mxu0 %v860
        %1174 = vmatpush1.msra.mxu0 %v859
        %1175 = vmatprep.subr.mxu0 %v856
        %1176 = vmatpush1.msra.mxu0 %v855
        %1177 = vmatprep.subr.mxu0 %v852
        %1178 = vmatpush1.msra.mxu0 %v851
        %1179 = vmatprep.subr.mxu0 %v848
        %1180 = vmatpush1.msra.mxu0 %v847
        %1181 = vmatprep.subr.mxu0 %v844
        %1182 = vmatpush1.msra.mxu0 %v843
        %1183 = vmatprep.subr.mxu0 0.0
        %1184 = vmatpush2.msra.mxu0 0.0
        %1185 = vmatprep.subr.mxu0 0.0
        %1186 = vmatpush2.msra.mxu0 0.0
        %1187 = vmatprep.subr.mxu0 0.0
        %1188 = vmatpush2.msra.mxu0 0.0
        %1189 = vmatprep.subr.mxu0 0.0
        %1190 = vmatpush2.msra.mxu0 0.0
        %1191 = vmatprep.subr.mxu0 0.0
        %1192 = vmatpush2.msra.mxu0 0.0
        %1193 = vmatprep.subr.mxu0 0.0
        %1194 = vmatpush2.msra.mxu0 0.0
        %1195 = vmatprep.subr.mxu0 0.0
        %1196 = vmatpush2.msra.mxu0 0.0
        %1197 = vmatprep.subr.mxu0 0.0
        %1198 = vmatpush2.msra.mxu0 0.0
        %1199 = vmatprep.subr.mxu0 0.0
        %1200 = vmatpush2.msra.mxu0 0.0
        %1201 = vmatprep.subr.mxu0 0.0
        %1202 = vmatpush2.msra.mxu0 0.0
        %1203 = vmatprep.subr.mxu0 0.0
        %1204 = vmatpush2.msra.mxu0 0.0
        %1205 = vmatprep.subr.mxu0 0.0
        %1206 = vmatpush2.msra.mxu0 0.0
        %1207 = vmatprep.subr.mxu0 0.0
        %1208 = vmatpush2.msra.mxu0 0.0
        %1209 = vmatprep.subr.mxu0 0.0
        %1210 = vmatpush2.msra.mxu0 0.0
        %1211 = vmatprep.subr.mxu0 0.0
        %1212 = vmatpush2.msra.mxu0 0.0
        %1213 = vmatprep.subr.mxu0 0.0
        %1214 = vmatpush2.msra.mxu0 0.0
        %1215 = vmatprep.mubr.f32.mxu0 0.0
        %1216 = vmatmul.mubr.f32.gmra.mxu0 0.0
        %v1217 = vpop.f32.mrf.mxu0
        %v1218 = vadd.f32 0.0, %v1217
        %v1219 = vpop.f32.mrf.mxu0
        %v1220 = vadd.f32 0.0, %v1219
        %1221 = vdwg.mxu0
        %v1226 = vcombine.low %v1147, %v1149
        %v1227 = vcombine.low %v1218, %v1220
        %v1229 = vunpack.c.l.s4 1966171168
        %v1230 = vunpack.c.0.s8 %v1229
        %v1231 = vlaneseq
        %v1232 = vshrl.u32 %v1231, 7
        %v1233 = vsub.s32 %v1230, %v1232
        %v1234 = vrot.slane %v1226, %v1233
        %v1236 = vunpack.c.l.s4 1966171168
        %v1237 = vunpack.c.0.s8 %v1236
        %v1238 = vlaneseq
        %v1239 = vshrl.u32 %v1238, 7
        %v1240 = vsub.s32 %v1237, %v1239
        %v1241 = vrot.slane %v1227, %v1240
        %v1242 = vcombine.low %v1234, %v1241
        %v1244 = vunpack.c.l.s4 1966171168
        %v1245 = vunpack.c.0.s8 %v1244
        %v1246 = vlaneseq
        %v1247 = vshrl.u32 %v1246, 7
        %v1248 = vsub.s32 %v1245, %v1247
        %v1249 = vrot.slane %v1242, %v1248
        %v1251 = vadd.f32 %v1079, %v1249
        %v1252 = vxor.u32 %v1077, 2147483648
        %v1253 = vmul.f32 %v1252, 1.442695
        %v1254 = vpow.pop %v1253
        %v1255 = vadd.f32 %v1254, 1.0
        %v1256 = vrcp.pop %v1255
        %v1257 = vmul.f32 1.0, %v1256
        %v1259 = vrot.slane %v1077, 1
        %v1261 = vxor.u32 %v1259, 2147483648
        %v1262 = vmul.f32 %v1261, 1.442695
        %v1263 = vpow.pop %v1262
        %v1264 = vadd.f32 %v1263, 1.0
        %v1265 = vrcp.pop %v1264
        %v1266 = vmul.f32 1.0, %v1265
        %v1267 = vrot.slane %v1077, 2
        %v1269 = vtanh.pop %v1267
        %v1270 = vrot.slane %v1077, 3
        %v1272 = vxor.u32 %v1270, 2147483648
        %v1273 = vmul.f32 %v1272, 1.442695
        %v1274 = vpow.pop %v1273
        %v1275 = vadd.f32 %v1274, 1.0
        %v1276 = vrcp.pop %v1275
        %v1277 = vmul.f32 1.0, %v1276
        %v1278 = vmul.f32 %v1266, 0.0
        %v1279 = vmul.f32 %v1257, %v1269
        %v1280 = vadd.f32 %v1278, %v1279
        %v1281 = vtanh.pop %v1280
        %v1282 = vmul.f32 %v1277, %v1281
        %v1283 = vxor.u32 %v1251, 2147483648
        %v1284 = vmul.f32 %v1283, 1.442695
        %v1285 = vpow.pop %v1284
        %v1286 = vadd.f32 %v1285, 1.0
        %v1287 = vrcp.pop %v1286
        %v1288 = vmul.f32 1.0, %v1287
        %v1290 = vrot.slane %v1251, 1
        %v1292 = vxor.u32 %v1290, 2147483648
        %v1293 = vmul.f32 %v1292, 1.442695
        %v1294 = vpow.pop %v1293
        %v1295 = vadd.f32 %v1294, 1.0
        %v1296 = vrcp.pop %v1295
        %v1297 = vmul.f32 1.0, %v1296
        %v1298 = vrot.slane %v1251, 2
        %v1300 = vtanh.pop %v1298
        %v1301 = vrot.slane %v1251, 3
        %v1303 = vxor.u32 %v1301, 2147483648
        %v1304 = vmul.f32 %v1303, 1.442695
        %v1305 = vpow.pop %v1304
        %v1306 = vadd.f32 %v1305, 1.0
        %v1307 = vrcp.pop %v1306
        %v1308 = vmul.f32 1.0, %v1307
        %v1309 = vmul.f32 %v1297, 0.0
        %v1310 = vmul.f32 %v1288, %v1300
        %v1311 = vadd.f32 %v1309, %v1310
        %v1312 = vtanh.pop %v1311
        %v1313 = vmul.f32 %v1308, %v1312
        %1314 = vst [vmem:[#allocation4] sm:$0x1] %v1282
        %1315 = vst [vmem:[#allocation5 + $0x7] sm:$0x1] %v1313
        %s1316 = scalar_lea.vmem [#allocation2], 1
        %v1317 = vld [vmem:[%s1316] ss:$8 sm:$0xf]
        %1318 = vmatprep.subr.mxu0 %v838
        %1319 = vmatpush1.msra.mxu0 %v837
        %1320 = vmatprep.subr.mxu0 %v834
        %1321 = vmatpush1.msra.mxu0 %v833
        %1322 = vmatprep.subr.mxu0 %v830
        %1323 = vmatpush1.msra.mxu0 %v829
        %1324 = vmatprep.subr.mxu0 %v826
        %1325 = vmatpush1.msra.mxu0 %v825
        %1326 = vmatprep.subr.mxu0 %v822
        %1327 = vmatpush1.msra.mxu0 %v821
        %1328 = vmatprep.subr.mxu0 %v818
        %1329 = vmatpush1.msra.mxu0 %v817
        %1330 = vmatprep.subr.mxu0 %v814
        %1331 = vmatpush1.msra.mxu0 %v813
        %1332 = vmatprep.subr.mxu0 %v810
        %1333 = vmatpush1.msra.mxu0 %v809
        %1334 = vmatprep.subr.mxu0 %v806
        %1335 = vmatpush1.msra.mxu0 %v805
        %1336 = vmatprep.subr.mxu0 %v802
        %1337 = vmatpush1.msra.mxu0 %v801
        %1338 = vmatprep.subr.mxu0 %v798
        %1339 = vmatpush1.msra.mxu0 %v797
        %1340 = vmatprep.subr.mxu0 %v794
        %1341 = vmatpush1.msra.mxu0 %v793
        %1342 = vmatprep.subr.mxu0 %v790
        %1343 = vmatpush1.msra.mxu0 %v789
        %1344 = vmatprep.subr.mxu0 %v786
        %1345 = vmatpush1.msra.mxu0 %v785
        %1346 = vmatprep.subr.mxu0 %v782
        %1347 = vmatpush1.msra.mxu0 %v781
        %1348 = vmatprep.subr.mxu0 %v778
        %1349 = vmatpush1.msra.mxu0 %v777
        %1350 = vmatprep.subr.mxu0 0.0
        %1351 = vmatpush2.msra.mxu0 0.0
        %1352 = vmatprep.subr.mxu0 0.0
        %1353 = vmatpush2.msra.mxu0 0.0
        %1354 = vmatprep.subr.mxu0 0.0
        %1355 = vmatpush2.msra.mxu0 0.0
        %1356 = vmatprep.subr.mxu0 0.0
        %1357 = vmatpush2.msra.mxu0 0.0
        %1358 = vmatprep.subr.mxu0 0.0
        %1359 = vmatpush2.msra.mxu0 0.0
        %1360 = vmatprep.subr.mxu0 0.0
        %1361 = vmatpush2.msra.mxu0 0.0
        %1362 = vmatprep.subr.mxu0 0.0
        %1363 = vmatpush2.msra.mxu0 0.0
        %1364 = vmatprep.subr.mxu0 0.0
        %1365 = vmatpush2.msra.mxu0 0.0
        %1366 = vmatprep.subr.mxu0 0.0
        %1367 = vmatpush2.msra.mxu0 0.0
        %1368 = vmatprep.subr.mxu0 0.0
        %1369 = vmatpush2.msra.mxu0 0.0
        %1370 = vmatprep.subr.mxu0 0.0
        %1371 = vmatpush2.msra.mxu0 0.0
        %1372 = vmatprep.subr.mxu0 0.0
        %1373 = vmatpush2.msra.mxu0 0.0
        %1374 = vmatprep.subr.mxu0 0.0
        %1375 = vmatpush2.msra.mxu0 0.0
        %1376 = vmatprep.subr.mxu0 0.0
        %1377 = vmatpush2.msra.mxu0 0.0
        %1378 = vmatprep.subr.mxu0 0.0
        %1379 = vmatpush2.msra.mxu0 0.0
        %1380 = vmatprep.subr.mxu0 0.0
        %1381 = vmatpush2.msra.mxu0 0.0
        %1382 = vmatprep.mubr.f32.mxu0 0.0
        %1383 = vmatmul.mubr.f32.gmra.mxu0 %v1282
        %v1384 = vpop.f32.mrf.mxu0
        %v1385 = vadd.f32 0.0, %v1384
        %v1386 = vpop.f32.mrf.mxu0
        %v1387 = vadd.f32 0.0, %v1386
        %1388 = vdwg.mxu0
        %1389 = vmatprep.subr.mxu0 %v840
        %1390 = vmatpush1.msra.mxu0 %v839
        %1391 = vmatprep.subr.mxu0 %v836
        %1392 = vmatpush1.msra.mxu0 %v835
        %1393 = vmatprep.subr.mxu0 %v832
        %1394 = vmatpush1.msra.mxu0 %v831
        %1395 = vmatprep.subr.mxu0 %v828
        %1396 = vmatpush1.msra.mxu0 %v827
        %1397 = vmatprep.subr.mxu0 %v824
        %1398 = vmatpush1.msra.mxu0 %v823
        %1399 = vmatprep.subr.mxu0 %v820
        %1400 = vmatpush1.msra.mxu0 %v819
        %1401 = vmatprep.subr.mxu0 %v816
        %1402 = vmatpush1.msra.mxu0 %v815
        %1403 = vmatprep.subr.mxu0 %v812
        %1404 = vmatpush1.msra.mxu0 %v811
        %1405 = vmatprep.subr.mxu0 %v808
        %1406 = vmatpush1.msra.mxu0 %v807
        %1407 = vmatprep.subr.mxu0 %v804
        %1408 = vmatpush1.msra.mxu0 %v803
        %1409 = vmatprep.subr.mxu0 %v800
        %1410 = vmatpush1.msra.mxu0 %v799
        %1411 = vmatprep.subr.mxu0 %v796
        %1412 = vmatpush1.msra.mxu0 %v795
        %1413 = vmatprep.subr.mxu0 %v792
        %1414 = vmatpush1.msra.mxu0 %v791
        %1415 = vmatprep.subr.mxu0 %v788
        %1416 = vmatpush1.msra.mxu0 %v787
        %1417 = vmatprep.subr.mxu0 %v784
        %1418 = vmatpush1.msra.mxu0 %v783
        %1419 = vmatprep.subr.mxu0 %v780
        %1420 = vmatpush1.msra.mxu0 %v779
        %1421 = vmatprep.subr.mxu0 0.0
        %1422 = vmatpush2.msra.mxu0 0.0
        %1423 = vmatprep.subr.mxu0 0.0
        %1424 = vmatpush2.msra.mxu0 0.0
        %1425 = vmatprep.subr.mxu0 0.0
        %1426 = vmatpush2.msra.mxu0 0.0
        %1427 = vmatprep.subr.mxu0 0.0
        %1428 = vmatpush2.msra.mxu0 0.0
        %1429 = vmatprep.subr.mxu0 0.0
        %1430 = vmatpush2.msra.mxu0 0.0
        %1431 = vmatprep.subr.mxu0 0.0
        %1432 = vmatpush2.msra.mxu0 0.0
        %1433 = vmatprep.subr.mxu0 0.0
        %1434 = vmatpush2.msra.mxu0 0.0
        %1435 = vmatprep.subr.mxu0 0.0
        %1436 = vmatpush2.msra.mxu0 0.0
        %1437 = vmatprep.subr.mxu0 0.0
        %1438 = vmatpush2.msra.mxu0 0.0
        %1439 = vmatprep.subr.mxu0 0.0
        %1440 = vmatpush2.msra.mxu0 0.0
        %1441 = vmatprep.subr.mxu0 0.0
        %1442 = vmatpush2.msra.mxu0 0.0
        %1443 = vmatprep.subr.mxu0 0.0
        %1444 = vmatpush2.msra.mxu0 0.0
        %1445 = vmatprep.subr.mxu0 0.0
        %1446 = vmatpush2.msra.mxu0 0.0
        %1447 = vmatprep.subr.mxu0 0.0
        %1448 = vmatpush2.msra.mxu0 0.0
        %1449 = vmatprep.subr.mxu0 0.0
        %1450 = vmatpush2.msra.mxu0 0.0
        %1451 = vmatprep.subr.mxu0 0.0
        %1452 = vmatpush2.msra.mxu0 0.0
        %1453 = vmatprep.mubr.f32.mxu0 0.0
        %1454 = vmatmul.mubr.f32.gmra.mxu0 %v1282
        %v1455 = vpop.f32.mrf.mxu0
        %v1456 = vadd.f32 0.0, %v1455
        %v1457 = vpop.f32.mrf.mxu0
        %v1458 = vadd.f32 0.0, %v1457
        %1459 = vdwg.mxu0
        %v1464 = vcombine.low %v1385, %v1387
        %v1465 = vcombine.low %v1456, %v1458
        %v1467 = vunpack.c.l.s4 1966171168
        %v1468 = vunpack.c.0.s8 %v1467
        %v1469 = vlaneseq
        %v1470 = vshrl.u32 %v1469, 7
        %v1471 = vsub.s32 %v1468, %v1470
        %v1472 = vrot.slane %v1464, %v1471
        %v1474 = vunpack.c.l.s4 1966171168
        %v1475 = vunpack.c.0.s8 %v1474
        %v1476 = vlaneseq
        %v1477 = vshrl.u32 %v1476, 7
        %v1478 = vsub.s32 %v1475, %v1477
        %v1479 = vrot.slane %v1465, %v1478
        %v1480 = vcombine.low %v1472, %v1479
        %v1482 = vunpack.c.l.s4 1966171168
        %v1483 = vunpack.c.0.s8 %v1482
        %v1484 = vlaneseq
        %v1485 = vshrl.u32 %v1484, 7
        %v1486 = vsub.s32 %v1483, %v1485
        %v1487 = vrot.slane %v1480, %v1486
        %v1489 = vadd.f32 %v1317, %v1487
        %s1490 = scalar_lea.vmem [#allocation3], 6
        %v1491 = vld [vmem:[%s1490] ss:$8 sm:$0xf]
        %1492 = vmatprep.subr.mxu0 %v902
        %1493 = vmatpush1.msra.mxu0 %v901
        %1494 = vmatprep.subr.mxu0 %v898
        %1495 = vmatpush1.msra.mxu0 %v897
        %1496 = vmatprep.subr.mxu0 %v894
        %1497 = vmatpush1.msra.mxu0 %v893
        %1498 = vmatprep.subr.mxu0 %v890
        %1499 = vmatpush1.msra.mxu0 %v889
        %1500 = vmatprep.subr.mxu0 %v886
        %1501 = vmatpush1.msra.mxu0 %v885
        %1502 = vmatprep.subr.mxu0 %v882
        %1503 = vmatpush1.msra.mxu0 %v881
        %1504 = vmatprep.subr.mxu0 %v878
        %1505 = vmatpush1.msra.mxu0 %v877
        %1506 = vmatprep.subr.mxu0 %v874
        %1507 = vmatpush1.msra.mxu0 %v873
        %1508 = vmatprep.subr.mxu0 %v870
        %1509 = vmatpush1.msra.mxu0 %v869
        %1510 = vmatprep.subr.mxu0 %v866
        %1511 = vmatpush1.msra.mxu0 %v865
        %1512 = vmatprep.subr.mxu0 %v862
        %1513 = vmatpush1.msra.mxu0 %v861
        %1514 = vmatprep.subr.mxu0 %v858
        %1515 = vmatpush1.msra.mxu0 %v857
        %1516 = vmatprep.subr.mxu0 %v854
        %1517 = vmatpush1.msra.mxu0 %v853
        %1518 = vmatprep.subr.mxu0 %v850
        %1519 = vmatpush1.msra.mxu0 %v849
        %1520 = vmatprep.subr.mxu0 %v846
        %1521 = vmatpush1.msra.mxu0 %v845
        %1522 = vmatprep.subr.mxu0 %v842
        %1523 = vmatpush1.msra.mxu0 %v841
        %1524 = vmatprep.subr.mxu0 0.0
        %1525 = vmatpush2.msra.mxu0 0.0
        %1526 = vmatprep.subr.mxu0 0.0
        %1527 = vmatpush2.msra.mxu0 0.0
        %1528 = vmatprep.subr.mxu0 0.0
        %1529 = vmatpush2.msra.mxu0 0.0
        %1530 = vmatprep.subr.mxu0 0.0
        %1531 = vmatpush2.msra.mxu0 0.0
        %1532 = vmatprep.subr.mxu0 0.0
        %1533 = vmatpush2.msra.mxu0 0.0
        %1534 = vmatprep.subr.mxu0 0.0
        %1535 = vmatpush2.msra.mxu0 0.0
        %1536 = vmatprep.subr.mxu0 0.0
        %1537 = vmatpush2.msra.mxu0 0.0
        %1538 = vmatprep.subr.mxu0 0.0
        %1539 = vmatpush2.msra.mxu0 0.0
        %1540 = vmatprep.subr.mxu0 0.0
        %1541 = vmatpush2.msra.mxu0 0.0
        %1542 = vmatprep.subr.mxu0 0.0
        %1543 = vmatpush2.msra.mxu0 0.0
        %1544 = vmatprep.subr.mxu0 0.0
        %1545 = vmatpush2.msra.mxu0 0.0
        %1546 = vmatprep.subr.mxu0 0.0
        %1547 = vmatpush2.msra.mxu0 0.0
        %1548 = vmatprep.subr.mxu0 0.0
        %1549 = vmatpush2.msra.mxu0 0.0
        %1550 = vmatprep.subr.mxu0 0.0
        %1551 = vmatpush2.msra.mxu0 0.0
        %1552 = vmatprep.subr.mxu0 0.0
        %1553 = vmatpush2.msra.mxu0 0.0
        %1554 = vmatprep.subr.mxu0 0.0
        %1555 = vmatpush2.msra.mxu0 0.0
        %1556 = vmatprep.mubr.f32.mxu0 0.0
        %1557 = vmatmul.mubr.f32.gmra.mxu0 %v1313
        %v1558 = vpop.f32.mrf.mxu0
        %v1559 = vadd.f32 0.0, %v1558
        %v1560 = vpop.f32.mrf.mxu0
        %v1561 = vadd.f32 0.0, %v1560
        %1562 = vdwg.mxu0
        %1563 = vmatprep.subr.mxu0 %v904
        %1564 = vmatpush1.msra.mxu0 %v903
        %1565 = vmatprep.subr.mxu0 %v900
        %1566 = vmatpush1.msra.mxu0 %v899
        %1567 = vmatprep.subr.mxu0 %v896
        %1568 = vmatpush1.msra.mxu0 %v895
        %1569 = vmatprep.subr.mxu0 %v892
        %1570 = vmatpush1.msra.mxu0 %v891
        %1571 = vmatprep.subr.mxu0 %v888
        %1572 = vmatpush1.msra.mxu0 %v887
        %1573 = vmatprep.subr.mxu0 %v884
        %1574 = vmatpush1.msra.mxu0 %v883
        %1575 = vmatprep.subr.mxu0 %v880
        %1576 = vmatpush1.msra.mxu0 %v879
        %1577 = vmatprep.subr.mxu0 %v876
        %1578 = vmatpush1.msra.mxu0 %v875
        %1579 = vmatprep.subr.mxu0 %v872
        %1580 = vmatpush1.msra.mxu0 %v871
        %1581 = vmatprep.subr.mxu0 %v868
        %1582 = vmatpush1.msra.mxu0 %v867
        %1583 = vmatprep.subr.mxu0 %v864
        %1584 = vmatpush1.msra.mxu0 %v863
        %1585 = vmatprep.subr.mxu0 %v860
        %1586 = vmatpush1.msra.mxu0 %v859
        %1587 = vmatprep.subr.mxu0 %v856
        %1588 = vmatpush1.msra.mxu0 %v855
        %1589 = vmatprep.subr.mxu0 %v852
        %1590 = vmatpush1.msra.mxu0 %v851
        %1591 = vmatprep.subr.mxu0 %v848
        %1592 = vmatpush1.msra.mxu0 %v847
        %1593 = vmatprep.subr.mxu0 %v844
        %1594 = vmatpush1.msra.mxu0 %v843
        %1595 = vmatprep.subr.mxu0 0.0
        %1596 = vmatpush2.msra.mxu0 0.0
        %1597 = vmatprep.subr.mxu0 0.0
        %1598 = vmatpush2.msra.mxu0 0.0
        %1599 = vmatprep.subr.mxu0 0.0
        %1600 = vmatpush2.msra.mxu0 0.0
        %1601 = vmatprep.subr.mxu0 0.0
        %1602 = vmatpush2.msra.mxu0 0.0
        %1603 = vmatprep.subr.mxu0 0.0
        %1604 = vmatpush2.msra.mxu0 0.0
        %1605 = vmatprep.subr.mxu0 0.0
        %1606 = vmatpush2.msra.mxu0 0.0
        %1607 = vmatprep.subr.mxu0 0.0
        %1608 = vmatpush2.msra.mxu0 0.0
        %1609 = vmatprep.subr.mxu0 0.0
        %1610 = vmatpush2.msra.mxu0 0.0
        %1611 = vmatprep.subr.mxu0 0.0
        %1612 = vmatpush2.msra.mxu0 0.0
        %1613 = vmatprep.subr.mxu0 0.0
        %1614 = vmatpush2.msra.mxu0 0.0
        %1615 = vmatprep.subr.mxu0 0.0
        %1616 = vmatpush2.msra.mxu0 0.0
        %1617 = vmatprep.subr.mxu0 0.0
        %1618 = vmatpush2.msra.mxu0 0.0
        %1619 = vmatprep.subr.mxu0 0.0
        %1620 = vmatpush2.msra.mxu0 0.0
        %1621 = vmatprep.subr.mxu0 0.0
        %1622 = vmatpush2.msra.mxu0 0.0
        %1623 = vmatprep.subr.mxu0 0.0
        %1624 = vmatpush2.msra.mxu0 0.0
        %1625 = vmatprep.subr.mxu0 0.0
        %1626 = vmatpush2.msra.mxu0 0.0
        %1627 = vmatprep.mubr.f32.mxu0 0.0
        %1628 = vmatmul.mubr.f32.gmra.mxu0 %v1313
        %v1629 = vpop.f32.mrf.mxu0
        %v1630 = vadd.f32 0.0, %v1629
        %v1631 = vpop.f32.mrf.mxu0
        %v1632 = vadd.f32 0.0, %v1631
        %1633 = vdwg.mxu0
        %v1638 = vcombine.low %v1559, %v1561
        %v1639 = vcombine.low %v1630, %v1632
        %v1641 = vunpack.c.l.s4 1966171168
        %v1642 = vunpack.c.0.s8 %v1641
        %v1643 = vlaneseq
        %v1644 = vshrl.u32 %v1643, 7
        %v1645 = vsub.s32 %v1642, %v1644
        %v1646 = vrot.slane %v1638, %v1645
        %v1648 = vunpack.c.l.s4 1966171168
        %v1649 = vunpack.c.0.s8 %v1648
        %v1650 = vlaneseq
        %v1651 = vshrl.u32 %v1650, 7
        %v1652 = vsub.s32 %v1649, %v1651
        %v1653 = vrot.slane %v1639, %v1652
        %v1654 = vcombine.low %v1646, %v1653
        %v1656 = vunpack.c.l.s4 1966171168
        %v1657 = vunpack.c.0.s8 %v1656
        %v1658 = vlaneseq
        %v1659 = vshrl.u32 %v1658, 7
        %v1660 = vsub.s32 %v1657, %v1659
        %v1661 = vrot.slane %v1654, %v1660
        %v1663 = vadd.f32 %v1491, %v1661
        %v1664 = vxor.u32 %v1489, 2147483648
        %v1665 = vmul.f32 %v1664, 1.442695
        %v1666 = vpow.pop %v1665
        %v1667 = vadd.f32 %v1666, 1.0
        %v1668 = vrcp.pop %v1667
        %v1669 = vmul.f32 1.0, %v1668
        %v1671 = vrot.slane %v1489, 1
        %v1673 = vxor.u32 %v1671, 2147483648
        %v1674 = vmul.f32 %v1673, 1.442695
        %v1675 = vpow.pop %v1674
        %v1676 = vadd.f32 %v1675, 1.0
        %v1677 = vrcp.pop %v1676
        %v1678 = vmul.f32 1.0, %v1677
        %v1679 = vrot.slane %v1489, 2
        %v1681 = vtanh.pop %v1679
        %v1682 = vrot.slane %v1489, 3
        %v1684 = vxor.u32 %v1682, 2147483648
        %v1685 = vmul.f32 %v1684, 1.442695
        %v1686 = vpow.pop %v1685
        %v1687 = vadd.f32 %v1686, 1.0
        %v1688 = vrcp.pop %v1687
        %v1689 = vmul.f32 1.0, %v1688
        %v1690 = vmul.f32 %v1678, %v1280
        %v1691 = vmul.f32 %v1669, %v1681
        %v1692 = vadd.f32 %v1690, %v1691
        %v1693 = vtanh.pop %v1692
        %v1694 = vmul.f32 %v1689, %v1693
        %v1695 = vxor.u32 %v1663, 2147483648
        %v1696 = vmul.f32 %v1695, 1.442695
        %v1697 = vpow.pop %v1696
        %v1698 = vadd.f32 %v1697, 1.0
        %v1699 = vrcp.pop %v1698
        %v1700 = vmul.f32 1.0, %v1699
        %v1702 = vrot.slane %v1663, 1
        %v1704 = vxor.u32 %v1702, 2147483648
        %v1705 = vmul.f32 %v1704, 1.442695
        %v1706 = vpow.pop %v1705
        %v1707 = vadd.f32 %v1706, 1.0
        %v1708 = vrcp.pop %v1707
        %v1709 = vmul.f32 1.0, %v1708
        %v1710 = vrot.slane %v1663, 2
        %v1712 = vtanh.pop %v1710
        %v1713 = vrot.slane %v1663, 3
        %v1715 = vxor.u32 %v1713, 2147483648
        %v1716 = vmul.f32 %v1715, 1.442695
        %v1717 = vpow.pop %v1716
        %v1718 = vadd.f32 %v1717, 1.0
        %v1719 = vrcp.pop %v1718
        %v1720 = vmul.f32 1.0, %v1719
        %v1721 = vmul.f32 %v1709, %v1311
        %v1722 = vmul.f32 %v1700, %v1712
        %v1723 = vadd.f32 %v1721, %v1722
        %v1724 = vtanh.pop %v1723
        %v1725 = vmul.f32 %v1720, %v1724
        %1726 = vst [vmem:[#allocation4 + $0x1] sm:$0x1] %v1694
        %1727 = vst [vmem:[#allocation5 + $0x6] sm:$0x1] %v1725
        %s1728 = scalar_lea.vmem [#allocation2], 2
        %v1729 = vld [vmem:[%s1728] ss:$8 sm:$0xf]
        %1730 = vmatprep.subr.mxu0 %v838
        %1731 = vmatpush1.msra.mxu0 %v837
        %1732 = vmatprep.subr.mxu0 %v834
        %1733 = vmatpush1.msra.mxu0 %v833
        %1734 = vmatprep.subr.mxu0 %v830
        %1735 = vmatpush1.msra.mxu0 %v829
        %1736 = vmatprep.subr.mxu0 %v826
        %1737 = vmatpush1.msra.mxu0 %v825
        %1738 = vmatprep.subr.mxu0 %v822
        %1739 = vmatpush1.msra.mxu0 %v821
        %1740 = vmatprep.subr.mxu0 %v818
        %1741 = vmatpush1.msra.mxu0 %v817
        %1742 = vmatprep.subr.mxu0 %v814
        %1743 = vmatpush1.msra.mxu0 %v813
        %1744 = vmatprep.subr.mxu0 %v810
        %1745 = vmatpush1.msra.mxu0 %v809
        %1746 = vmatprep.subr.mxu0 %v806
        %1747 = vmatpush1.msra.mxu0 %v805
        %1748 = vmatprep.subr.mxu0 %v802
        %1749 = vmatpush1.msra.mxu0 %v801
        %1750 = vmatprep.subr.mxu0 %v798
        %1751 = vmatpush1.msra.mxu0 %v797
        %1752 = vmatprep.subr.mxu0 %v794
        %1753 = vmatpush1.msra.mxu0 %v793
        %1754 = vmatprep.subr.mxu0 %v790
        %1755 = vmatpush1.msra.mxu0 %v789
        %1756 = vmatprep.subr.mxu0 %v786
        %1757 = vmatpush1.msra.mxu0 %v785
        %1758 = vmatprep.subr.mxu0 %v782
        %1759 = vmatpush1.msra.mxu0 %v781
        %1760 = vmatprep.subr.mxu0 %v778
        %1761 = vmatpush1.msra.mxu0 %v777
        %1762 = vmatprep.subr.mxu0 0.0
        %1763 = vmatpush2.msra.mxu0 0.0
        %1764 = vmatprep.subr.mxu0 0.0
        %1765 = vmatpush2.msra.mxu0 0.0
        %1766 = vmatprep.subr.mxu0 0.0
        %1767 = vmatpush2.msra.mxu0 0.0
        %1768 = vmatprep.subr.mxu0 0.0
        %1769 = vmatpush2.msra.mxu0 0.0
        %1770 = vmatprep.subr.mxu0 0.0
        %1771 = vmatpush2.msra.mxu0 0.0
        %1772 = vmatprep.subr.mxu0 0.0
        %1773 = vmatpush2.msra.mxu0 0.0
        %1774 = vmatprep.subr.mxu0 0.0
        %1775 = vmatpush2.msra.mxu0 0.0
        %1776 = vmatprep.subr.mxu0 0.0
        %1777 = vmatpush2.msra.mxu0 0.0
        %1778 = vmatprep.subr.mxu0 0.0
        %1779 = vmatpush2.msra.mxu0 0.0
        %1780 = vmatprep.subr.mxu0 0.0
        %1781 = vmatpush2.msra.mxu0 0.0
        %1782 = vmatprep.subr.mxu0 0.0
        %1783 = vmatpush2.msra.mxu0 0.0
        %1784 = vmatprep.subr.mxu0 0.0
        %1785 = vmatpush2.msra.mxu0 0.0
        %1786 = vmatprep.subr.mxu0 0.0
        %1787 = vmatpush2.msra.mxu0 0.0
        %1788 = vmatprep.subr.mxu0 0.0
        %1789 = vmatpush2.msra.mxu0 0.0
        %1790 = vmatprep.subr.mxu0 0.0
        %1791 = vmatpush2.msra.mxu0 0.0
        %1792 = vmatprep.subr.mxu0 0.0
        %1793 = vmatpush2.msra.mxu0 0.0
        %1794 = vmatprep.mubr.f32.mxu0 0.0
        %1795 = vmatmul.mubr.f32.gmra.mxu0 %v1694
        %v1796 = vpop.f32.mrf.mxu0
        %v1797 = vadd.f32 0.0, %v1796
        %v1798 = vpop.f32.mrf.mxu0
        %v1799 = vadd.f32 0.0, %v1798
        %1800 = vdwg.mxu0
        %1801 = vmatprep.subr.mxu0 %v840
        %1802 = vmatpush1.msra.mxu0 %v839
        %1803 = vmatprep.subr.mxu0 %v836
        %1804 = vmatpush1.msra.mxu0 %v835
        %1805 = vmatprep.subr.mxu0 %v832
        %1806 = vmatpush1.msra.mxu0 %v831
        %1807 = vmatprep.subr.mxu0 %v828
        %1808 = vmatpush1.msra.mxu0 %v827
        %1809 = vmatprep.subr.mxu0 %v824
        %1810 = vmatpush1.msra.mxu0 %v823
        %1811 = vmatprep.subr.mxu0 %v820
        %1812 = vmatpush1.msra.mxu0 %v819
        %1813 = vmatprep.subr.mxu0 %v816
        %1814 = vmatpush1.msra.mxu0 %v815
        %1815 = vmatprep.subr.mxu0 %v812
        %1816 = vmatpush1.msra.mxu0 %v811
        %1817 = vmatprep.subr.mxu0 %v808
        %1818 = vmatpush1.msra.mxu0 %v807
        %1819 = vmatprep.subr.mxu0 %v804
        %1820 = vmatpush1.msra.mxu0 %v803
        %1821 = vmatprep.subr.mxu0 %v800
        %1822 = vmatpush1.msra.mxu0 %v799
        %1823 = vmatprep.subr.mxu0 %v796
        %1824 = vmatpush1.msra.mxu0 %v795
        %1825 = vmatprep.subr.mxu0 %v792
        %1826 = vmatpush1.msra.mxu0 %v791
        %1827 = vmatprep.subr.mxu0 %v788
        %1828 = vmatpush1.msra.mxu0 %v787
        %1829 = vmatprep.subr.mxu0 %v784
        %1830 = vmatpush1.msra.mxu0 %v783
        %1831 = vmatprep.subr.mxu0 %v780
        %1832 = vmatpush1.msra.mxu0 %v779
        %1833 = vmatprep.subr.mxu0 0.0
        %1834 = vmatpush2.msra.mxu0 0.0
        %1835 = vmatprep.subr.mxu0 0.0
        %1836 = vmatpush2.msra.mxu0 0.0
        %1837 = vmatprep.subr.mxu0 0.0
        %1838 = vmatpush2.msra.mxu0 0.0
        %1839 = vmatprep.subr.mxu0 0.0
        %1840 = vmatpush2.msra.mxu0 0.0
        %1841 = vmatprep.subr.mxu0 0.0
        %1842 = vmatpush2.msra.mxu0 0.0
        %1843 = vmatprep.subr.mxu0 0.0
        %1844 = vmatpush2.msra.mxu0 0.0
        %1845 = vmatprep.subr.mxu0 0.0
        %1846 = vmatpush2.msra.mxu0 0.0
        %1847 = vmatprep.subr.mxu0 0.0
        %1848 = vmatpush2.msra.mxu0 0.0
        %1849 = vmatprep.subr.mxu0 0.0
        %1850 = vmatpush2.msra.mxu0 0.0
        %1851 = vmatprep.subr.mxu0 0.0
        %1852 = vmatpush2.msra.mxu0 0.0
        %1853 = vmatprep.subr.mxu0 0.0
        %1854 = vmatpush2.msra.mxu0 0.0
        %1855 = vmatprep.subr.mxu0 0.0
        %1856 = vmatpush2.msra.mxu0 0.0
        %1857 = vmatprep.subr.mxu0 0.0
        %1858 = vmatpush2.msra.mxu0 0.0
        %1859 = vmatprep.subr.mxu0 0.0
        %1860 = vmatpush2.msra.mxu0 0.0
        %1861 = vmatprep.subr.mxu0 0.0
        %1862 = vmatpush2.msra.mxu0 0.0
        %1863 = vmatprep.subr.mxu0 0.0
        %1864 = vmatpush2.msra.mxu0 0.0
        %1865 = vmatprep.mubr.f32.mxu0 0.0
        %1866 = vmatmul.mubr.f32.gmra.mxu0 %v1694
        %v1867 = vpop.f32.mrf.mxu0
        %v1868 = vadd.f32 0.0, %v1867
        %v1869 = vpop.f32.mrf.mxu0
        %v1870 = vadd.f32 0.0, %v1869
        %1871 = vdwg.mxu0
        %v1876 = vcombine.low %v1797, %v1799
        %v1877 = vcombine.low %v1868, %v1870
        %v1879 = vunpack.c.l.s4 1966171168
        %v1880 = vunpack.c.0.s8 %v1879
        %v1881 = vlaneseq
        %v1882 = vshrl.u32 %v1881, 7
        %v1883 = vsub.s32 %v1880, %v1882
        %v1884 = vrot.slane %v1876, %v1883
        %v1886 = vunpack.c.l.s4 1966171168
        %v1887 = vunpack.c.0.s8 %v1886
        %v1888 = vlaneseq
        %v1889 = vshrl.u32 %v1888, 7
        %v1890 = vsub.s32 %v1887, %v1889
        %v1891 = vrot.slane %v1877, %v1890
        %v1892 = vcombine.low %v1884, %v1891
        %v1894 = vunpack.c.l.s4 1966171168
        %v1895 = vunpack.c.0.s8 %v1894
        %v1896 = vlaneseq
        %v1897 = vshrl.u32 %v1896, 7
        %v1898 = vsub.s32 %v1895, %v1897
        %v1899 = vrot.slane %v1892, %v1898
        %v1901 = vadd.f32 %v1729, %v1899
        %s1902 = scalar_lea.vmem [#allocation3], 5
        %v1903 = vld [vmem:[%s1902] ss:$8 sm:$0xf]
        %1904 = vmatprep.subr.mxu0 %v902
        %1905 = vmatpush1.msra.mxu0 %v901
        %1906 = vmatprep.subr.mxu0 %v898
        %1907 = vmatpush1.msra.mxu0 %v897
        %1908 = vmatprep.subr.mxu0 %v894
        %1909 = vmatpush1.msra.mxu0 %v893
        %1910 = vmatprep.subr.mxu0 %v890
        %1911 = vmatpush1.msra.mxu0 %v889
        %1912 = vmatprep.subr.mxu0 %v886
        %1913 = vmatpush1.msra.mxu0 %v885
        %1914 = vmatprep.subr.mxu0 %v882
        %1915 = vmatpush1.msra.mxu0 %v881
        %1916 = vmatprep.subr.mxu0 %v878
        %1917 = vmatpush1.msra.mxu0 %v877
        %1918 = vmatprep.subr.mxu0 %v874
        %1919 = vmatpush1.msra.mxu0 %v873
        %1920 = vmatprep.subr.mxu0 %v870
        %1921 = vmatpush1.msra.mxu0 %v869
        %1922 = vmatprep.subr.mxu0 %v866
        %1923 = vmatpush1.msra.mxu0 %v865
        %1924 = vmatprep.subr.mxu0 %v862
        %1925 = vmatpush1.msra.mxu0 %v861
        %1926 = vmatprep.subr.mxu0 %v858
        %1927 = vmatpush1.msra.mxu0 %v857
        %1928 = vmatprep.subr.mxu0 %v854
        %1929 = vmatpush1.msra.mxu0 %v853
        %1930 = vmatprep.subr.mxu0 %v850
        %1931 = vmatpush1.msra.mxu0 %v849
        %1932 = vmatprep.subr.mxu0 %v846
        %1933 = vmatpush1.msra.mxu0 %v845
        %1934 = vmatprep.subr.mxu0 %v842
        %1935 = vmatpush1.msra.mxu0 %v841
        %1936 = vmatprep.subr.mxu0 0.0
        %1937 = vmatpush2.msra.mxu0 0.0
        %1938 = vmatprep.subr.mxu0 0.0
        %1939 = vmatpush2.msra.mxu0 0.0
        %1940 = vmatprep.subr.mxu0 0.0
        %1941 = vmatpush2.msra.mxu0 0.0
        %1942 = vmatprep.subr.mxu0 0.0
        %1943 = vmatpush2.msra.mxu0 0.0
        %1944 = vmatprep.subr.mxu0 0.0
        %1945 = vmatpush2.msra.mxu0 0.0
        %1946 = vmatprep.subr.mxu0 0.0
        %1947 = vmatpush2.msra.mxu0 0.0
        %1948 = vmatprep.subr.mxu0 0.0
        %1949 = vmatpush2.msra.mxu0 0.0
        %1950 = vmatprep.subr.mxu0 0.0
        %1951 = vmatpush2.msra.mxu0 0.0
        %1952 = vmatprep.subr.mxu0 0.0
        %1953 = vmatpush2.msra.mxu0 0.0
        %1954 = vmatprep.subr.mxu0 0.0
        %1955 = vmatpush2.msra.mxu0 0.0
        %1956 = vmatprep.subr.mxu0 0.0
        %1957 = vmatpush2.msra.mxu0 0.0
        %1958 = vmatprep.subr.mxu0 0.0
        %1959 = vmatpush2.msra.mxu0 0.0
        %1960 = vmatprep.subr.mxu0 0.0
        %1961 = vmatpush2.msra.mxu0 0.0
        %1962 = vmatprep.subr.mxu0 0.0
        %1963 = vmatpush2.msra.mxu0 0.0
        %1964 = vmatprep.subr.mxu0 0.0
        %1965 = vmatpush2.msra.mxu0 0.0
        %1966 = vmatprep.subr.mxu0 0.0
        %1967 = vmatpush2.msra.mxu0 0.0
        %1968 = vmatprep.mubr.f32.mxu0 0.0
        %1969 = vmatmul.mubr.f32.gmra.mxu0 %v1725
        %v1970 = vpop.f32.mrf.mxu0
        %v1971 = vadd.f32 0.0, %v1970
        %v1972 = vpop.f32.mrf.mxu0
        %v1973 = vadd.f32 0.0, %v1972
        %1974 = vdwg.mxu0
        %1975 = vmatprep.subr.mxu0 %v904
        %1976 = vmatpush1.msra.mxu0 %v903
        %1977 = vmatprep.subr.mxu0 %v900
        %1978 = vmatpush1.msra.mxu0 %v899
        %1979 = vmatprep.subr.mxu0 %v896
        %1980 = vmatpush1.msra.mxu0 %v895
        %1981 = vmatprep.subr.mxu0 %v892
        %1982 = vmatpush1.msra.mxu0 %v891
        %1983 = vmatprep.subr.mxu0 %v888
        %1984 = vmatpush1.msra.mxu0 %v887
        %1985 = vmatprep.subr.mxu0 %v884
        %1986 = vmatpush1.msra.mxu0 %v883
        %1987 = vmatprep.subr.mxu0 %v880
        %1988 = vmatpush1.msra.mxu0 %v879
        %1989 = vmatprep.subr.mxu0 %v876
        %1990 = vmatpush1.msra.mxu0 %v875
        %1991 = vmatprep.subr.mxu0 %v872
        %1992 = vmatpush1.msra.mxu0 %v871
        %1993 = vmatprep.subr.mxu0 %v868
        %1994 = vmatpush1.msra.mxu0 %v867
        %1995 = vmatprep.subr.mxu0 %v864
        %1996 = vmatpush1.msra.mxu0 %v863
        %1997 = vmatprep.subr.mxu0 %v860
        %1998 = vmatpush1.msra.mxu0 %v859
        %1999 = vmatprep.subr.mxu0 %v856
        %2000 = vmatpush1.msra.mxu0 %v855
        %2001 = vmatprep.subr.mxu0 %v852
        %2002 = vmatpush1.msra.mxu0 %v851
        %2003 = vmatprep.subr.mxu0 %v848
        %2004 = vmatpush1.msra.mxu0 %v847
        %2005 = vmatprep.subr.mxu0 %v844
        %2006 = vmatpush1.msra.mxu0 %v843
        %2007 = vmatprep.subr.mxu0 0.0
        %2008 = vmatpush2.msra.mxu0 0.0
        %2009 = vmatprep.subr.mxu0 0.0
        %2010 = vmatpush2.msra.mxu0 0.0
        %2011 = vmatprep.subr.mxu0 0.0
        %2012 = vmatpush2.msra.mxu0 0.0
        %2013 = vmatprep.subr.mxu0 0.0
        %2014 = vmatpush2.msra.mxu0 0.0
        %2015 = vmatprep.subr.mxu0 0.0
        %2016 = vmatpush2.msra.mxu0 0.0
        %2017 = vmatprep.subr.mxu0 0.0
        %2018 = vmatpush2.msra.mxu0 0.0
        %2019 = vmatprep.subr.mxu0 0.0
        %2020 = vmatpush2.msra.mxu0 0.0
        %2021 = vmatprep.subr.mxu0 0.0
        %2022 = vmatpush2.msra.mxu0 0.0
        %2023 = vmatprep.subr.mxu0 0.0
        %2024 = vmatpush2.msra.mxu0 0.0
        %2025 = vmatprep.subr.mxu0 0.0
        %2026 = vmatpush2.msra.mxu0 0.0
        %2027 = vmatprep.subr.mxu0 0.0
        %2028 = vmatpush2.msra.mxu0 0.0
        %2029 = vmatprep.subr.mxu0 0.0
        %2030 = vmatpush2.msra.mxu0 0.0
        %2031 = vmatprep.subr.mxu0 0.0
        %2032 = vmatpush2.msra.mxu0 0.0
        %2033 = vmatprep.subr.mxu0 0.0
        %2034 = vmatpush2.msra.mxu0 0.0
        %2035 = vmatprep.subr.mxu0 0.0
        %2036 = vmatpush2.msra.mxu0 0.0
        %2037 = vmatprep.subr.mxu0 0.0
        %2038 = vmatpush2.msra.mxu0 0.0
        %2039 = vmatprep.mubr.f32.mxu0 0.0
        %2040 = vmatmul.mubr.f32.gmra.mxu0 %v1725
        %v2041 = vpop.f32.mrf.mxu0
        %v2042 = vadd.f32 0.0, %v2041
        %v2043 = vpop.f32.mrf.mxu0
        %v2044 = vadd.f32 0.0, %v2043
        %2045 = vdwg.mxu0
        %v2050 = vcombine.low %v1971, %v1973
        %v2051 = vcombine.low %v2042, %v2044
        %v2053 = vunpack.c.l.s4 1966171168
        %v2054 = vunpack.c.0.s8 %v2053
        %v2055 = vlaneseq
        %v2056 = vshrl.u32 %v2055, 7
        %v2057 = vsub.s32 %v2054, %v2056
        %v2058 = vrot.slane %v2050, %v2057
        %v2060 = vunpack.c.l.s4 1966171168
        %v2061 = vunpack.c.0.s8 %v2060
        %v2062 = vlaneseq
        %v2063 = vshrl.u32 %v2062, 7
        %v2064 = vsub.s32 %v2061, %v2063
        %v2065 = vrot.slane %v2051, %v2064
        %v2066 = vcombine.low %v2058, %v2065
        %v2068 = vunpack.c.l.s4 1966171168
        %v2069 = vunpack.c.0.s8 %v2068
        %v2070 = vlaneseq
        %v2071 = vshrl.u32 %v2070, 7
        %v2072 = vsub.s32 %v2069, %v2071
        %v2073 = vrot.slane %v2066, %v2072
        %v2075 = vadd.f32 %v1903, %v2073
        %v2076 = vxor.u32 %v1901, 2147483648
        %v2077 = vmul.f32 %v2076, 1.442695
        %v2078 = vpow.pop %v2077
        %v2079 = vadd.f32 %v2078, 1.0
        %v2080 = vrcp.pop %v2079
        %v2081 = vmul.f32 1.0, %v2080
        %v2083 = vrot.slane %v1901, 1
        %v2085 = vxor.u32 %v2083, 2147483648
        %v2086 = vmul.f32 %v2085, 1.442695
        %v2087 = vpow.pop %v2086
        %v2088 = vadd.f32 %v2087, 1.0
        %v2089 = vrcp.pop %v2088
        %v2090 = vmul.f32 1.0, %v2089
        %v2091 = vrot.slane %v1901, 2
        %v2093 = vtanh.pop %v2091
        %v2094 = vrot.slane %v1901, 3
        %v2096 = vxor.u32 %v2094, 2147483648
        %v2097 = vmul.f32 %v2096, 1.442695
        %v2098 = vpow.pop %v2097
        %v2099 = vadd.f32 %v2098, 1.0
        %v2100 = vrcp.pop %v2099
        %v2101 = vmul.f32 1.0, %v2100
        %v2102 = vmul.f32 %v2090, %v1692
        %v2103 = vmul.f32 %v2081, %v2093
        %v2104 = vadd.f32 %v2102, %v2103
        %v2105 = vtanh.pop %v2104
        %v2106 = vmul.f32 %v2101, %v2105
        %v2107 = vxor.u32 %v2075, 2147483648
        %v2108 = vmul.f32 %v2107, 1.442695
        %v2109 = vpow.pop %v2108
        %v2110 = vadd.f32 %v2109, 1.0
        %v2111 = vrcp.pop %v2110
        %v2112 = vmul.f32 1.0, %v2111
        %v2114 = vrot.slane %v2075, 1
        %v2116 = vxor.u32 %v2114, 2147483648
        %v2117 = vmul.f32 %v2116, 1.442695
        %v2118 = vpow.pop %v2117
        %v2119 = vadd.f32 %v2118, 1.0
        %v2120 = vrcp.pop %v2119
        %v2121 = vmul.f32 1.0, %v2120
        %v2122 = vrot.slane %v2075, 2
        %v2124 = vtanh.pop %v2122
        %v2125 = vrot.slane %v2075, 3
        %v2127 = vxor.u32 %v2125, 2147483648
        %v2128 = vmul.f32 %v2127, 1.442695
        %v2129 = vpow.pop %v2128
        %v2130 = vadd.f32 %v2129, 1.0
        %v2131 = vrcp.pop %v2130
        %v2132 = vmul.f32 1.0, %v2131
        %v2133 = vmul.f32 %v2121, %v1723
        %v2134 = vmul.f32 %v2112, %v2124
        %v2135 = vadd.f32 %v2133, %v2134
        %v2136 = vtanh.pop %v2135
        %v2137 = vmul.f32 %v2132, %v2136
        %2138 = vst [vmem:[#allocation4 + $0x2] sm:$0x1] %v2106
        %2139 = vst [vmem:[#allocation5 + $0x5] sm:$0x1] %v2137
        %s2140 = scalar_lea.vmem [#allocation2], 3
        %v2141 = vld [vmem:[%s2140] ss:$8 sm:$0xf]
        %2142 = vmatprep.subr.mxu0 %v838
        %2143 = vmatpush1.msra.mxu0 %v837
        %2144 = vmatprep.subr.mxu0 %v834
        %2145 = vmatpush1.msra.mxu0 %v833
        %2146 = vmatprep.subr.mxu0 %v830
        %2147 = vmatpush1.msra.mxu0 %v829
        %2148 = vmatprep.subr.mxu0 %v826
        %2149 = vmatpush1.msra.mxu0 %v825
        %2150 = vmatprep.subr.mxu0 %v822
        %2151 = vmatpush1.msra.mxu0 %v821
        %2152 = vmatprep.subr.mxu0 %v818
        %2153 = vmatpush1.msra.mxu0 %v817
        %2154 = vmatprep.subr.mxu0 %v814
        %2155 = vmatpush1.msra.mxu0 %v813
        %2156 = vmatprep.subr.mxu0 %v810
        %2157 = vmatpush1.msra.mxu0 %v809
        %2158 = vmatprep.subr.mxu0 %v806
        %2159 = vmatpush1.msra.mxu0 %v805
        %2160 = vmatprep.subr.mxu0 %v802
        %2161 = vmatpush1.msra.mxu0 %v801
        %2162 = vmatprep.subr.mxu0 %v798
        %2163 = vmatpush1.msra.mxu0 %v797
        %2164 = vmatprep.subr.mxu0 %v794
        %2165 = vmatpush1.msra.mxu0 %v793
        %2166 = vmatprep.subr.mxu0 %v790
        %2167 = vmatpush1.msra.mxu0 %v789
        %2168 = vmatprep.subr.mxu0 %v786
        %2169 = vmatpush1.msra.mxu0 %v785
        %2170 = vmatprep.subr.mxu0 %v782
        %2171 = vmatpush1.msra.mxu0 %v781
        %2172 = vmatprep.subr.mxu0 %v778
        %2173 = vmatpush1.msra.mxu0 %v777
        %2174 = vmatprep.subr.mxu0 0.0
        %2175 = vmatpush2.msra.mxu0 0.0
        %2176 = vmatprep.subr.mxu0 0.0
        %2177 = vmatpush2.msra.mxu0 0.0
        %2178 = vmatprep.subr.mxu0 0.0
        %2179 = vmatpush2.msra.mxu0 0.0
        %2180 = vmatprep.subr.mxu0 0.0
        %2181 = vmatpush2.msra.mxu0 0.0
        %2182 = vmatprep.subr.mxu0 0.0
        %2183 = vmatpush2.msra.mxu0 0.0
        %2184 = vmatprep.subr.mxu0 0.0
        %2185 = vmatpush2.msra.mxu0 0.0
        %2186 = vmatprep.subr.mxu0 0.0
        %2187 = vmatpush2.msra.mxu0 0.0
        %2188 = vmatprep.subr.mxu0 0.0
        %2189 = vmatpush2.msra.mxu0 0.0
        %2190 = vmatprep.subr.mxu0 0.0
        %2191 = vmatpush2.msra.mxu0 0.0
        %2192 = vmatprep.subr.mxu0 0.0
        %2193 = vmatpush2.msra.mxu0 0.0
        %2194 = vmatprep.subr.mxu0 0.0
        %2195 = vmatpush2.msra.mxu0 0.0
        %2196 = vmatprep.subr.mxu0 0.0
        %2197 = vmatpush2.msra.mxu0 0.0
        %2198 = vmatprep.subr.mxu0 0.0
        %2199 = vmatpush2.msra.mxu0 0.0
        %2200 = vmatprep.subr.mxu0 0.0
        %2201 = vmatpush2.msra.mxu0 0.0
        %2202 = vmatprep.subr.mxu0 0.0
        %2203 = vmatpush2.msra.mxu0 0.0
        %2204 = vmatprep.subr.mxu0 0.0
        %2205 = vmatpush2.msra.mxu0 0.0
        %2206 = vmatprep.mubr.f32.mxu0 0.0
        %2207 = vmatmul.mubr.f32.gmra.mxu0 %v2106
        %v2208 = vpop.f32.mrf.mxu0
        %v2209 = vadd.f32 0.0, %v2208
        %v2210 = vpop.f32.mrf.mxu0
        %v2211 = vadd.f32 0.0, %v2210
        %2212 = vdwg.mxu0
        %2213 = vmatprep.subr.mxu0 %v840
        %2214 = vmatpush1.msra.mxu0 %v839
        %2215 = vmatprep.subr.mxu0 %v836
        %2216 = vmatpush1.msra.mxu0 %v835
        %2217 = vmatprep.subr.mxu0 %v832
        %2218 = vmatpush1.msra.mxu0 %v831
        %2219 = vmatprep.subr.mxu0 %v828
        %2220 = vmatpush1.msra.mxu0 %v827
        %2221 = vmatprep.subr.mxu0 %v824
        %2222 = vmatpush1.msra.mxu0 %v823
        %2223 = vmatprep.subr.mxu0 %v820
        %2224 = vmatpush1.msra.mxu0 %v819
        %2225 = vmatprep.subr.mxu0 %v816
        %2226 = vmatpush1.msra.mxu0 %v815
        %2227 = vmatprep.subr.mxu0 %v812
        %2228 = vmatpush1.msra.mxu0 %v811
        %2229 = vmatprep.subr.mxu0 %v808
        %2230 = vmatpush1.msra.mxu0 %v807
        %2231 = vmatprep.subr.mxu0 %v804
        %2232 = vmatpush1.msra.mxu0 %v803
        %2233 = vmatprep.subr.mxu0 %v800
        %2234 = vmatpush1.msra.mxu0 %v799
        %2235 = vmatprep.subr.mxu0 %v796
        %2236 = vmatpush1.msra.mxu0 %v795
        %2237 = vmatprep.subr.mxu0 %v792
        %2238 = vmatpush1.msra.mxu0 %v791
        %2239 = vmatprep.subr.mxu0 %v788
        %2240 = vmatpush1.msra.mxu0 %v787
        %2241 = vmatprep.subr.mxu0 %v784
        %2242 = vmatpush1.msra.mxu0 %v783
        %2243 = vmatprep.subr.mxu0 %v780
        %2244 = vmatpush1.msra.mxu0 %v779
        %2245 = vmatprep.subr.mxu0 0.0
        %2246 = vmatpush2.msra.mxu0 0.0
        %2247 = vmatprep.subr.mxu0 0.0
        %2248 = vmatpush2.msra.mxu0 0.0
        %2249 = vmatprep.subr.mxu0 0.0
        %2250 = vmatpush2.msra.mxu0 0.0
        %2251 = vmatprep.subr.mxu0 0.0
        %2252 = vmatpush2.msra.mxu0 0.0
        %2253 = vmatprep.subr.mxu0 0.0
        %2254 = vmatpush2.msra.mxu0 0.0
        %2255 = vmatprep.subr.mxu0 0.0
        %2256 = vmatpush2.msra.mxu0 0.0
        %2257 = vmatprep.subr.mxu0 0.0
        %2258 = vmatpush2.msra.mxu0 0.0
        %2259 = vmatprep.subr.mxu0 0.0
        %2260 = vmatpush2.msra.mxu0 0.0
        %2261 = vmatprep.subr.mxu0 0.0
        %2262 = vmatpush2.msra.mxu0 0.0
        %2263 = vmatprep.subr.mxu0 0.0
        %2264 = vmatpush2.msra.mxu0 0.0
        %2265 = vmatprep.subr.mxu0 0.0
        %2266 = vmatpush2.msra.mxu0 0.0
        %2267 = vmatprep.subr.mxu0 0.0
        %2268 = vmatpush2.msra.mxu0 0.0
        %2269 = vmatprep.subr.mxu0 0.0
        %2270 = vmatpush2.msra.mxu0 0.0
        %2271 = vmatprep.subr.mxu0 0.0
        %2272 = vmatpush2.msra.mxu0 0.0
        %2273 = vmatprep.subr.mxu0 0.0
        %2274 = vmatpush2.msra.mxu0 0.0
        %2275 = vmatprep.subr.mxu0 0.0
        %2276 = vmatpush2.msra.mxu0 0.0
        %2277 = vmatprep.mubr.f32.mxu0 0.0
        %2278 = vmatmul.mubr.f32.gmra.mxu0 %v2106
        %v2279 = vpop.f32.mrf.mxu0
        %v2280 = vadd.f32 0.0, %v2279
        %v2281 = vpop.f32.mrf.mxu0
        %v2282 = vadd.f32 0.0, %v2281
        %2283 = vdwg.mxu0
        %v2288 = vcombine.low %v2209, %v2211
        %v2289 = vcombine.low %v2280, %v2282
        %v2291 = vunpack.c.l.s4 1966171168
        %v2292 = vunpack.c.0.s8 %v2291
        %v2293 = vlaneseq
        %v2294 = vshrl.u32 %v2293, 7
        %v2295 = vsub.s32 %v2292, %v2294
        %v2296 = vrot.slane %v2288, %v2295
        %v2298 = vunpack.c.l.s4 1966171168
        %v2299 = vunpack.c.0.s8 %v2298
        %v2300 = vlaneseq
        %v2301 = vshrl.u32 %v2300, 7
        %v2302 = vsub.s32 %v2299, %v2301
        %v2303 = vrot.slane %v2289, %v2302
        %v2304 = vcombine.low %v2296, %v2303
        %v2306 = vunpack.c.l.s4 1966171168
        %v2307 = vunpack.c.0.s8 %v2306
        %v2308 = vlaneseq
        %v2309 = vshrl.u32 %v2308, 7
        %v2310 = vsub.s32 %v2307, %v2309
        %v2311 = vrot.slane %v2304, %v2310
        %v2313 = vadd.f32 %v2141, %v2311
        %s2314 = scalar_lea.vmem [#allocation3], 4
        %v2315 = vld [vmem:[%s2314] ss:$8 sm:$0xf]
        %2316 = vmatprep.subr.mxu0 %v902
        %2317 = vmatpush1.msra.mxu0 %v901
        %2318 = vmatprep.subr.mxu0 %v898
        %2319 = vmatpush1.msra.mxu0 %v897
        %2320 = vmatprep.subr.mxu0 %v894
        %2321 = vmatpush1.msra.mxu0 %v893
        %2322 = vmatprep.subr.mxu0 %v890
        %2323 = vmatpush1.msra.mxu0 %v889
        %2324 = vmatprep.subr.mxu0 %v886
        %2325 = vmatpush1.msra.mxu0 %v885
        %2326 = vmatprep.subr.mxu0 %v882
        %2327 = vmatpush1.msra.mxu0 %v881
        %2328 = vmatprep.subr.mxu0 %v878
        %2329 = vmatpush1.msra.mxu0 %v877
        %2330 = vmatprep.subr.mxu0 %v874
        %2331 = vmatpush1.msra.mxu0 %v873
        %2332 = vmatprep.subr.mxu0 %v870
        %2333 = vmatpush1.msra.mxu0 %v869
        %2334 = vmatprep.subr.mxu0 %v866
        %2335 = vmatpush1.msra.mxu0 %v865
        %2336 = vmatprep.subr.mxu0 %v862
        %2337 = vmatpush1.msra.mxu0 %v861
        %2338 = vmatprep.subr.mxu0 %v858
        %2339 = vmatpush1.msra.mxu0 %v857
        %2340 = vmatprep.subr.mxu0 %v854
        %2341 = vmatpush1.msra.mxu0 %v853
        %2342 = vmatprep.subr.mxu0 %v850
        %2343 = vmatpush1.msra.mxu0 %v849
        %2344 = vmatprep.subr.mxu0 %v846
        %2345 = vmatpush1.msra.mxu0 %v845
        %2346 = vmatprep.subr.mxu0 %v842
        %2347 = vmatpush1.msra.mxu0 %v841
        %2348 = vmatprep.subr.mxu0 0.0
        %2349 = vmatpush2.msra.mxu0 0.0
        %2350 = vmatprep.subr.mxu0 0.0
        %2351 = vmatpush2.msra.mxu0 0.0
        %2352 = vmatprep.subr.mxu0 0.0
        %2353 = vmatpush2.msra.mxu0 0.0
        %2354 = vmatprep.subr.mxu0 0.0
        %2355 = vmatpush2.msra.mxu0 0.0
        %2356 = vmatprep.subr.mxu0 0.0
        %2357 = vmatpush2.msra.mxu0 0.0
        %2358 = vmatprep.subr.mxu0 0.0
        %2359 = vmatpush2.msra.mxu0 0.0
        %2360 = vmatprep.subr.mxu0 0.0
        %2361 = vmatpush2.msra.mxu0 0.0
        %2362 = vmatprep.subr.mxu0 0.0
        %2363 = vmatpush2.msra.mxu0 0.0
        %2364 = vmatprep.subr.mxu0 0.0
        %2365 = vmatpush2.msra.mxu0 0.0
        %2366 = vmatprep.subr.mxu0 0.0
        %2367 = vmatpush2.msra.mxu0 0.0
        %2368 = vmatprep.subr.mxu0 0.0
        %2369 = vmatpush2.msra.mxu0 0.0
        %2370 = vmatprep.subr.mxu0 0.0
        %2371 = vmatpush2.msra.mxu0 0.0
        %2372 = vmatprep.subr.mxu0 0.0
        %2373 = vmatpush2.msra.mxu0 0.0
        %2374 = vmatprep.subr.mxu0 0.0
        %2375 = vmatpush2.msra.mxu0 0.0
        %2376 = vmatprep.subr.mxu0 0.0
        %2377 = vmatpush2.msra.mxu0 0.0
        %2378 = vmatprep.subr.mxu0 0.0
        %2379 = vmatpush2.msra.mxu0 0.0
        %2380 = vmatprep.mubr.f32.mxu0 0.0
        %2381 = vmatmul.mubr.f32.gmra.mxu0 %v2137
        %v2382 = vpop.f32.mrf.mxu0
        %v2383 = vadd.f32 0.0, %v2382
        %v2384 = vpop.f32.mrf.mxu0
        %v2385 = vadd.f32 0.0, %v2384
        %2386 = vdwg.mxu0
        %2387 = vmatprep.subr.mxu0 %v904
        %2388 = vmatpush1.msra.mxu0 %v903
        %2389 = vmatprep.subr.mxu0 %v900
        %2390 = vmatpush1.msra.mxu0 %v899
        %2391 = vmatprep.subr.mxu0 %v896
        %2392 = vmatpush1.msra.mxu0 %v895
        %2393 = vmatprep.subr.mxu0 %v892
        %2394 = vmatpush1.msra.mxu0 %v891
        %2395 = vmatprep.subr.mxu0 %v888
        %2396 = vmatpush1.msra.mxu0 %v887
        %2397 = vmatprep.subr.mxu0 %v884
        %2398 = vmatpush1.msra.mxu0 %v883
        %2399 = vmatprep.subr.mxu0 %v880
        %2400 = vmatpush1.msra.mxu0 %v879
        %2401 = vmatprep.subr.mxu0 %v876
        %2402 = vmatpush1.msra.mxu0 %v875
        %2403 = vmatprep.subr.mxu0 %v872
        %2404 = vmatpush1.msra.mxu0 %v871
        %2405 = vmatprep.subr.mxu0 %v868
        %2406 = vmatpush1.msra.mxu0 %v867
        %2407 = vmatprep.subr.mxu0 %v864
        %2408 = vmatpush1.msra.mxu0 %v863
        %2409 = vmatprep.subr.mxu0 %v860
        %2410 = vmatpush1.msra.mxu0 %v859
        %2411 = vmatprep.subr.mxu0 %v856
        %2412 = vmatpush1.msra.mxu0 %v855
        %2413 = vmatprep.subr.mxu0 %v852
        %2414 = vmatpush1.msra.mxu0 %v851
        %2415 = vmatprep.subr.mxu0 %v848
        %2416 = vmatpush1.msra.mxu0 %v847
        %2417 = vmatprep.subr.mxu0 %v844
        %2418 = vmatpush1.msra.mxu0 %v843
        %2419 = vmatprep.subr.mxu0 0.0
        %2420 = vmatpush2.msra.mxu0 0.0
        %2421 = vmatprep.subr.mxu0 0.0
        %2422 = vmatpush2.msra.mxu0 0.0
        %2423 = vmatprep.subr.mxu0 0.0
        %2424 = vmatpush2.msra.mxu0 0.0
        %2425 = vmatprep.subr.mxu0 0.0
        %2426 = vmatpush2.msra.mxu0 0.0
        %2427 = vmatprep.subr.mxu0 0.0
        %2428 = vmatpush2.msra.mxu0 0.0
        %2429 = vmatprep.subr.mxu0 0.0
        %2430 = vmatpush2.msra.mxu0 0.0
        %2431 = vmatprep.subr.mxu0 0.0
        %2432 = vmatpush2.msra.mxu0 0.0
        %2433 = vmatprep.subr.mxu0 0.0
        %2434 = vmatpush2.msra.mxu0 0.0
        %2435 = vmatprep.subr.mxu0 0.0
        %2436 = vmatpush2.msra.mxu0 0.0
        %2437 = vmatprep.subr.mxu0 0.0
        %2438 = vmatpush2.msra.mxu0 0.0
        %2439 = vmatprep.subr.mxu0 0.0
        %2440 = vmatpush2.msra.mxu0 0.0
        %2441 = vmatprep.subr.mxu0 0.0
        %2442 = vmatpush2.msra.mxu0 0.0
        %2443 = vmatprep.subr.mxu0 0.0
        %2444 = vmatpush2.msra.mxu0 0.0
        %2445 = vmatprep.subr.mxu0 0.0
        %2446 = vmatpush2.msra.mxu0 0.0
        %2447 = vmatprep.subr.mxu0 0.0
        %2448 = vmatpush2.msra.mxu0 0.0
        %2449 = vmatprep.subr.mxu0 0.0
        %2450 = vmatpush2.msra.mxu0 0.0
        %2451 = vmatprep.mubr.f32.mxu0 0.0
        %2452 = vmatmul.mubr.f32.gmra.mxu0 %v2137
        %v2453 = vpop.f32.mrf.mxu0
        %v2454 = vadd.f32 0.0, %v2453
        %v2455 = vpop.f32.mrf.mxu0
        %v2456 = vadd.f32 0.0, %v2455
        %2457 = vdwg.mxu0
        %v2462 = vcombine.low %v2383, %v2385
        %v2463 = vcombine.low %v2454, %v2456
        %v2465 = vunpack.c.l.s4 1966171168
        %v2466 = vunpack.c.0.s8 %v2465
        %v2467 = vlaneseq
        %v2468 = vshrl.u32 %v2467, 7
        %v2469 = vsub.s32 %v2466, %v2468
        %v2470 = vrot.slane %v2462, %v2469
        %v2472 = vunpack.c.l.s4 1966171168
        %v2473 = vunpack.c.0.s8 %v2472
        %v2474 = vlaneseq
        %v2475 = vshrl.u32 %v2474, 7
        %v2476 = vsub.s32 %v2473, %v2475
        %v2477 = vrot.slane %v2463, %v2476
        %v2478 = vcombine.low %v2470, %v2477
        %v2480 = vunpack.c.l.s4 1966171168
        %v2481 = vunpack.c.0.s8 %v2480
        %v2482 = vlaneseq
        %v2483 = vshrl.u32 %v2482, 7
        %v2484 = vsub.s32 %v2481, %v2483
        %v2485 = vrot.slane %v2478, %v2484
        %v2487 = vadd.f32 %v2315, %v2485
        %v2488 = vxor.u32 %v2313, 2147483648
        %v2489 = vmul.f32 %v2488, 1.442695
        %v2490 = vpow.pop %v2489
        %v2491 = vadd.f32 %v2490, 1.0
        %v2492 = vrcp.pop %v2491
        %v2493 = vmul.f32 1.0, %v2492
        %v2495 = vrot.slane %v2313, 1
        %v2497 = vxor.u32 %v2495, 2147483648
        %v2498 = vmul.f32 %v2497, 1.442695
        %v2499 = vpow.pop %v2498
        %v2500 = vadd.f32 %v2499, 1.0
        %v2501 = vrcp.pop %v2500
        %v2502 = vmul.f32 1.0, %v2501
        %v2503 = vrot.slane %v2313, 2
        %v2505 = vtanh.pop %v2503
        %v2506 = vrot.slane %v2313, 3
        %v2508 = vxor.u32 %v2506, 2147483648
        %v2509 = vmul.f32 %v2508, 1.442695
        %v2510 = vpow.pop %v2509
        %v2511 = vadd.f32 %v2510, 1.0
        %v2512 = vrcp.pop %v2511
        %v2513 = vmul.f32 1.0, %v2512
        %v2514 = vmul.f32 %v2502, %v2104
        %v2515 = vmul.f32 %v2493, %v2505
        %v2516 = vadd.f32 %v2514, %v2515
        %v2517 = vtanh.pop %v2516
        %v2518 = vmul.f32 %v2513, %v2517
        %v2519 = vxor.u32 %v2487, 2147483648
        %v2520 = vmul.f32 %v2519, 1.442695
        %v2521 = vpow.pop %v2520
        %v2522 = vadd.f32 %v2521, 1.0
        %v2523 = vrcp.pop %v2522
        %v2524 = vmul.f32 1.0, %v2523
        %v2526 = vrot.slane %v2487, 1
        %v2528 = vxor.u32 %v2526, 2147483648
        %v2529 = vmul.f32 %v2528, 1.442695
        %v2530 = vpow.pop %v2529
        %v2531 = vadd.f32 %v2530, 1.0
        %v2532 = vrcp.pop %v2531
        %v2533 = vmul.f32 1.0, %v2532
        %v2534 = vrot.slane %v2487, 2
        %v2536 = vtanh.pop %v2534
        %v2537 = vrot.slane %v2487, 3
        %v2539 = vxor.u32 %v2537, 2147483648
        %v2540 = vmul.f32 %v2539, 1.442695
        %v2541 = vpow.pop %v2540
        %v2542 = vadd.f32 %v2541, 1.0
        %v2543 = vrcp.pop %v2542
        %v2544 = vmul.f32 1.0, %v2543
        %v2545 = vmul.f32 %v2533, %v2135
        %v2546 = vmul.f32 %v2524, %v2536
        %v2547 = vadd.f32 %v2545, %v2546
        %v2548 = vtanh.pop %v2547
        %v2549 = vmul.f32 %v2544, %v2548
        %2550 = vst [vmem:[#allocation4 + $0x3] sm:$0x1] %v2518
        %2551 = vst [vmem:[#allocation5 + $0x4] sm:$0x1] %v2549
        %s2552 = scalar_lea.vmem [#allocation2], 4
        %v2553 = vld [vmem:[%s2552] ss:$8 sm:$0xf]
        %2554 = vmatprep.subr.mxu0 %v838
        %2555 = vmatpush1.msra.mxu0 %v837
        %2556 = vmatprep.subr.mxu0 %v834
        %2557 = vmatpush1.msra.mxu0 %v833
        %2558 = vmatprep.subr.mxu0 %v830
        %2559 = vmatpush1.msra.mxu0 %v829
        %2560 = vmatprep.subr.mxu0 %v826
        %2561 = vmatpush1.msra.mxu0 %v825
        %2562 = vmatprep.subr.mxu0 %v822
        %2563 = vmatpush1.msra.mxu0 %v821
        %2564 = vmatprep.subr.mxu0 %v818
        %2565 = vmatpush1.msra.mxu0 %v817
        %2566 = vmatprep.subr.mxu0 %v814
        %2567 = vmatpush1.msra.mxu0 %v813
        %2568 = vmatprep.subr.mxu0 %v810
        %2569 = vmatpush1.msra.mxu0 %v809
        %2570 = vmatprep.subr.mxu0 %v806
        %2571 = vmatpush1.msra.mxu0 %v805
        %2572 = vmatprep.subr.mxu0 %v802
        %2573 = vmatpush1.msra.mxu0 %v801
        %2574 = vmatprep.subr.mxu0 %v798
        %2575 = vmatpush1.msra.mxu0 %v797
        %2576 = vmatprep.subr.mxu0 %v794
        %2577 = vmatpush1.msra.mxu0 %v793
        %2578 = vmatprep.subr.mxu0 %v790
        %2579 = vmatpush1.msra.mxu0 %v789
        %2580 = vmatprep.subr.mxu0 %v786
        %2581 = vmatpush1.msra.mxu0 %v785
        %2582 = vmatprep.subr.mxu0 %v782
        %2583 = vmatpush1.msra.mxu0 %v781
        %2584 = vmatprep.subr.mxu0 %v778
        %2585 = vmatpush1.msra.mxu0 %v777
        %2586 = vmatprep.subr.mxu0 0.0
        %2587 = vmatpush2.msra.mxu0 0.0
        %2588 = vmatprep.subr.mxu0 0.0
        %2589 = vmatpush2.msra.mxu0 0.0
        %2590 = vmatprep.subr.mxu0 0.0
        %2591 = vmatpush2.msra.mxu0 0.0
        %2592 = vmatprep.subr.mxu0 0.0
        %2593 = vmatpush2.msra.mxu0 0.0
        %2594 = vmatprep.subr.mxu0 0.0
        %2595 = vmatpush2.msra.mxu0 0.0
        %2596 = vmatprep.subr.mxu0 0.0
        %2597 = vmatpush2.msra.mxu0 0.0
        %2598 = vmatprep.subr.mxu0 0.0
        %2599 = vmatpush2.msra.mxu0 0.0
        %2600 = vmatprep.subr.mxu0 0.0
        %2601 = vmatpush2.msra.mxu0 0.0
        %2602 = vmatprep.subr.mxu0 0.0
        %2603 = vmatpush2.msra.mxu0 0.0
        %2604 = vmatprep.subr.mxu0 0.0
        %2605 = vmatpush2.msra.mxu0 0.0
        %2606 = vmatprep.subr.mxu0 0.0
        %2607 = vmatpush2.msra.mxu0 0.0
        %2608 = vmatprep.subr.mxu0 0.0
        %2609 = vmatpush2.msra.mxu0 0.0
        %2610 = vmatprep.subr.mxu0 0.0
        %2611 = vmatpush2.msra.mxu0 0.0
        %2612 = vmatprep.subr.mxu0 0.0
        %2613 = vmatpush2.msra.mxu0 0.0
        %2614 = vmatprep.subr.mxu0 0.0
        %2615 = vmatpush2.msra.mxu0 0.0
        %2616 = vmatprep.subr.mxu0 0.0
        %2617 = vmatpush2.msra.mxu0 0.0
        %2618 = vmatprep.mubr.f32.mxu0 0.0
        %2619 = vmatmul.mubr.f32.gmra.mxu0 %v2518
        %v2620 = vpop.f32.mrf.mxu0
        %v2621 = vadd.f32 0.0, %v2620
        %v2622 = vpop.f32.mrf.mxu0
        %v2623 = vadd.f32 0.0, %v2622
        %2624 = vdwg.mxu0
        %2625 = vmatprep.subr.mxu0 %v840
        %2626 = vmatpush1.msra.mxu0 %v839
        %2627 = vmatprep.subr.mxu0 %v836
        %2628 = vmatpush1.msra.mxu0 %v835
        %2629 = vmatprep.subr.mxu0 %v832
        %2630 = vmatpush1.msra.mxu0 %v831
        %2631 = vmatprep.subr.mxu0 %v828
        %2632 = vmatpush1.msra.mxu0 %v827
        %2633 = vmatprep.subr.mxu0 %v824
        %2634 = vmatpush1.msra.mxu0 %v823
        %2635 = vmatprep.subr.mxu0 %v820
        %2636 = vmatpush1.msra.mxu0 %v819
        %2637 = vmatprep.subr.mxu0 %v816
        %2638 = vmatpush1.msra.mxu0 %v815
        %2639 = vmatprep.subr.mxu0 %v812
        %2640 = vmatpush1.msra.mxu0 %v811
        %2641 = vmatprep.subr.mxu0 %v808
        %2642 = vmatpush1.msra.mxu0 %v807
        %2643 = vmatprep.subr.mxu0 %v804
        %2644 = vmatpush1.msra.mxu0 %v803
        %2645 = vmatprep.subr.mxu0 %v800
        %2646 = vmatpush1.msra.mxu0 %v799
        %2647 = vmatprep.subr.mxu0 %v796
        %2648 = vmatpush1.msra.mxu0 %v795
        %2649 = vmatprep.subr.mxu0 %v792
        %2650 = vmatpush1.msra.mxu0 %v791
        %2651 = vmatprep.subr.mxu0 %v788
        %2652 = vmatpush1.msra.mxu0 %v787
        %2653 = vmatprep.subr.mxu0 %v784
        %2654 = vmatpush1.msra.mxu0 %v783
        %2655 = vmatprep.subr.mxu0 %v780
        %2656 = vmatpush1.msra.mxu0 %v779
        %2657 = vmatprep.subr.mxu0 0.0
        %2658 = vmatpush2.msra.mxu0 0.0
        %2659 = vmatprep.subr.mxu0 0.0
        %2660 = vmatpush2.msra.mxu0 0.0
        %2661 = vmatprep.subr.mxu0 0.0
        %2662 = vmatpush2.msra.mxu0 0.0
        %2663 = vmatprep.subr.mxu0 0.0
        %2664 = vmatpush2.msra.mxu0 0.0
        %2665 = vmatprep.subr.mxu0 0.0
        %2666 = vmatpush2.msra.mxu0 0.0
        %2667 = vmatprep.subr.mxu0 0.0
        %2668 = vmatpush2.msra.mxu0 0.0
        %2669 = vmatprep.subr.mxu0 0.0
        %2670 = vmatpush2.msra.mxu0 0.0
        %2671 = vmatprep.subr.mxu0 0.0
        %2672 = vmatpush2.msra.mxu0 0.0
        %2673 = vmatprep.subr.mxu0 0.0
        %2674 = vmatpush2.msra.mxu0 0.0
        %2675 = vmatprep.subr.mxu0 0.0
        %2676 = vmatpush2.msra.mxu0 0.0
        %2677 = vmatprep.subr.mxu0 0.0
        %2678 = vmatpush2.msra.mxu0 0.0
        %2679 = vmatprep.subr.mxu0 0.0
        %2680 = vmatpush2.msra.mxu0 0.0
        %2681 = vmatprep.subr.mxu0 0.0
        %2682 = vmatpush2.msra.mxu0 0.0
        %2683 = vmatprep.subr.mxu0 0.0
        %2684 = vmatpush2.msra.mxu0 0.0
        %2685 = vmatprep.subr.mxu0 0.0
        %2686 = vmatpush2.msra.mxu0 0.0
        %2687 = vmatprep.subr.mxu0 0.0
        %2688 = vmatpush2.msra.mxu0 0.0
        %2689 = vmatprep.mubr.f32.mxu0 0.0
        %2690 = vmatmul.mubr.f32.gmra.mxu0 %v2518
        %v2691 = vpop.f32.mrf.mxu0
        %v2692 = vadd.f32 0.0, %v2691
        %v2693 = vpop.f32.mrf.mxu0
        %v2694 = vadd.f32 0.0, %v2693
        %2695 = vdwg.mxu0
        %v2700 = vcombine.low %v2621, %v2623
        %v2701 = vcombine.low %v2692, %v2694
        %v2703 = vunpack.c.l.s4 1966171168
        %v2704 = vunpack.c.0.s8 %v2703
        %v2705 = vlaneseq
        %v2706 = vshrl.u32 %v2705, 7
        %v2707 = vsub.s32 %v2704, %v2706
        %v2708 = vrot.slane %v2700, %v2707
        %v2710 = vunpack.c.l.s4 1966171168
        %v2711 = vunpack.c.0.s8 %v2710
        %v2712 = vlaneseq
        %v2713 = vshrl.u32 %v2712, 7
        %v2714 = vsub.s32 %v2711, %v2713
        %v2715 = vrot.slane %v2701, %v2714
        %v2716 = vcombine.low %v2708, %v2715
        %v2718 = vunpack.c.l.s4 1966171168
        %v2719 = vunpack.c.0.s8 %v2718
        %v2720 = vlaneseq
        %v2721 = vshrl.u32 %v2720, 7
        %v2722 = vsub.s32 %v2719, %v2721
        %v2723 = vrot.slane %v2716, %v2722
        %v2725 = vadd.f32 %v2553, %v2723
        %s2726 = scalar_lea.vmem [#allocation3], 3
        %v2727 = vld [vmem:[%s2726] ss:$8 sm:$0xf]
        %2728 = vmatprep.subr.mxu0 %v902
        %2729 = vmatpush1.msra.mxu0 %v901
        %2730 = vmatprep.subr.mxu0 %v898
        %2731 = vmatpush1.msra.mxu0 %v897
        %2732 = vmatprep.subr.mxu0 %v894
        %2733 = vmatpush1.msra.mxu0 %v893
        %2734 = vmatprep.subr.mxu0 %v890
        %2735 = vmatpush1.msra.mxu0 %v889
        %2736 = vmatprep.subr.mxu0 %v886
        %2737 = vmatpush1.msra.mxu0 %v885
        %2738 = vmatprep.subr.mxu0 %v882
        %2739 = vmatpush1.msra.mxu0 %v881
        %2740 = vmatprep.subr.mxu0 %v878
        %2741 = vmatpush1.msra.mxu0 %v877
        %2742 = vmatprep.subr.mxu0 %v874
        %2743 = vmatpush1.msra.mxu0 %v873
        %2744 = vmatprep.subr.mxu0 %v870
        %2745 = vmatpush1.msra.mxu0 %v869
        %2746 = vmatprep.subr.mxu0 %v866
        %2747 = vmatpush1.msra.mxu0 %v865
        %2748 = vmatprep.subr.mxu0 %v862
        %2749 = vmatpush1.msra.mxu0 %v861
        %2750 = vmatprep.subr.mxu0 %v858
        %2751 = vmatpush1.msra.mxu0 %v857
        %2752 = vmatprep.subr.mxu0 %v854
        %2753 = vmatpush1.msra.mxu0 %v853
        %2754 = vmatprep.subr.mxu0 %v850
        %2755 = vmatpush1.msra.mxu0 %v849
        %2756 = vmatprep.subr.mxu0 %v846
        %2757 = vmatpush1.msra.mxu0 %v845
        %2758 = vmatprep.subr.mxu0 %v842
        %2759 = vmatpush1.msra.mxu0 %v841
        %2760 = vmatprep.subr.mxu0 0.0
        %2761 = vmatpush2.msra.mxu0 0.0
        %2762 = vmatprep.subr.mxu0 0.0
        %2763 = vmatpush2.msra.mxu0 0.0
        %2764 = vmatprep.subr.mxu0 0.0
        %2765 = vmatpush2.msra.mxu0 0.0
        %2766 = vmatprep.subr.mxu0 0.0
        %2767 = vmatpush2.msra.mxu0 0.0
        %2768 = vmatprep.subr.mxu0 0.0
        %2769 = vmatpush2.msra.mxu0 0.0
        %2770 = vmatprep.subr.mxu0 0.0
        %2771 = vmatpush2.msra.mxu0 0.0
        %2772 = vmatprep.subr.mxu0 0.0
        %2773 = vmatpush2.msra.mxu0 0.0
        %2774 = vmatprep.subr.mxu0 0.0
        %2775 = vmatpush2.msra.mxu0 0.0
        %2776 = vmatprep.subr.mxu0 0.0
        %2777 = vmatpush2.msra.mxu0 0.0
        %2778 = vmatprep.subr.mxu0 0.0
        %2779 = vmatpush2.msra.mxu0 0.0
        %2780 = vmatprep.subr.mxu0 0.0
        %2781 = vmatpush2.msra.mxu0 0.0
        %2782 = vmatprep.subr.mxu0 0.0
        %2783 = vmatpush2.msra.mxu0 0.0
        %2784 = vmatprep.subr.mxu0 0.0
        %2785 = vmatpush2.msra.mxu0 0.0
        %2786 = vmatprep.subr.mxu0 0.0
        %2787 = vmatpush2.msra.mxu0 0.0
        %2788 = vmatprep.subr.mxu0 0.0
        %2789 = vmatpush2.msra.mxu0 0.0
        %2790 = vmatprep.subr.mxu0 0.0
        %2791 = vmatpush2.msra.mxu0 0.0
        %2792 = vmatprep.mubr.f32.mxu0 0.0
        %2793 = vmatmul.mubr.f32.gmra.mxu0 %v2549
        %v2794 = vpop.f32.mrf.mxu0
        %v2795 = vadd.f32 0.0, %v2794
        %v2796 = vpop.f32.mrf.mxu0
        %v2797 = vadd.f32 0.0, %v2796
        %2798 = vdwg.mxu0
        %2799 = vmatprep.subr.mxu0 %v904
        %2800 = vmatpush1.msra.mxu0 %v903
        %2801 = vmatprep.subr.mxu0 %v900
        %2802 = vmatpush1.msra.mxu0 %v899
        %2803 = vmatprep.subr.mxu0 %v896
        %2804 = vmatpush1.msra.mxu0 %v895
        %2805 = vmatprep.subr.mxu0 %v892
        %2806 = vmatpush1.msra.mxu0 %v891
        %2807 = vmatprep.subr.mxu0 %v888
        %2808 = vmatpush1.msra.mxu0 %v887
        %2809 = vmatprep.subr.mxu0 %v884
        %2810 = vmatpush1.msra.mxu0 %v883
        %2811 = vmatprep.subr.mxu0 %v880
        %2812 = vmatpush1.msra.mxu0 %v879
        %2813 = vmatprep.subr.mxu0 %v876
        %2814 = vmatpush1.msra.mxu0 %v875
        %2815 = vmatprep.subr.mxu0 %v872
        %2816 = vmatpush1.msra.mxu0 %v871
        %2817 = vmatprep.subr.mxu0 %v868
        %2818 = vmatpush1.msra.mxu0 %v867
        %2819 = vmatprep.subr.mxu0 %v864
        %2820 = vmatpush1.msra.mxu0 %v863
        %2821 = vmatprep.subr.mxu0 %v860
        %2822 = vmatpush1.msra.mxu0 %v859
        %2823 = vmatprep.subr.mxu0 %v856
        %2824 = vmatpush1.msra.mxu0 %v855
        %2825 = vmatprep.subr.mxu0 %v852
        %2826 = vmatpush1.msra.mxu0 %v851
        %2827 = vmatprep.subr.mxu0 %v848
        %2828 = vmatpush1.msra.mxu0 %v847
        %2829 = vmatprep.subr.mxu0 %v844
        %2830 = vmatpush1.msra.mxu0 %v843
        %2831 = vmatprep.subr.mxu0 0.0
        %2832 = vmatpush2.msra.mxu0 0.0
        %2833 = vmatprep.subr.mxu0 0.0
        %2834 = vmatpush2.msra.mxu0 0.0
        %2835 = vmatprep.subr.mxu0 0.0
        %2836 = vmatpush2.msra.mxu0 0.0
        %2837 = vmatprep.subr.mxu0 0.0
        %2838 = vmatpush2.msra.mxu0 0.0
        %2839 = vmatprep.subr.mxu0 0.0
        %2840 = vmatpush2.msra.mxu0 0.0
        %2841 = vmatprep.subr.mxu0 0.0
        %2842 = vmatpush2.msra.mxu0 0.0
        %2843 = vmatprep.subr.mxu0 0.0
        %2844 = vmatpush2.msra.mxu0 0.0
        %2845 = vmatprep.subr.mxu0 0.0
        %2846 = vmatpush2.msra.mxu0 0.0
        %2847 = vmatprep.subr.mxu0 0.0
        %2848 = vmatpush2.msra.mxu0 0.0
        %2849 = vmatprep.subr.mxu0 0.0
        %2850 = vmatpush2.msra.mxu0 0.0
        %2851 = vmatprep.subr.mxu0 0.0
        %2852 = vmatpush2.msra.mxu0 0.0
        %2853 = vmatprep.subr.mxu0 0.0
        %2854 = vmatpush2.msra.mxu0 0.0
        %2855 = vmatprep.subr.mxu0 0.0
        %2856 = vmatpush2.msra.mxu0 0.0
        %2857 = vmatprep.subr.mxu0 0.0
        %2858 = vmatpush2.msra.mxu0 0.0
        %2859 = vmatprep.subr.mxu0 0.0
        %2860 = vmatpush2.msra.mxu0 0.0
        %2861 = vmatprep.subr.mxu0 0.0
        %2862 = vmatpush2.msra.mxu0 0.0
        %2863 = vmatprep.mubr.f32.mxu0 0.0
        %2864 = vmatmul.mubr.f32.gmra.mxu0 %v2549
        %v2865 = vpop.f32.mrf.mxu0
        %v2866 = vadd.f32 0.0, %v2865
        %v2867 = vpop.f32.mrf.mxu0
        %v2868 = vadd.f32 0.0, %v2867
        %2869 = vdwg.mxu0
        %v2874 = vcombine.low %v2795, %v2797
        %v2875 = vcombine.low %v2866, %v2868
        %v2877 = vunpack.c.l.s4 1966171168
        %v2878 = vunpack.c.0.s8 %v2877
        %v2879 = vlaneseq
        %v2880 = vshrl.u32 %v2879, 7
        %v2881 = vsub.s32 %v2878, %v2880
        %v2882 = vrot.slane %v2874, %v2881
        %v2884 = vunpack.c.l.s4 1966171168
        %v2885 = vunpack.c.0.s8 %v2884
        %v2886 = vlaneseq
        %v2887 = vshrl.u32 %v2886, 7
        %v2888 = vsub.s32 %v2885, %v2887
        %v2889 = vrot.slane %v2875, %v2888
        %v2890 = vcombine.low %v2882, %v2889
        %v2892 = vunpack.c.l.s4 1966171168
        %v2893 = vunpack.c.0.s8 %v2892
        %v2894 = vlaneseq
        %v2895 = vshrl.u32 %v2894, 7
        %v2896 = vsub.s32 %v2893, %v2895
        %v2897 = vrot.slane %v2890, %v2896
        %v2899 = vadd.f32 %v2727, %v2897
        %v2900 = vxor.u32 %v2725, 2147483648
        %v2901 = vmul.f32 %v2900, 1.442695
        %v2902 = vpow.pop %v2901
        %v2903 = vadd.f32 %v2902, 1.0
        %v2904 = vrcp.pop %v2903
        %v2905 = vmul.f32 1.0, %v2904
        %v2907 = vrot.slane %v2725, 1
        %v2909 = vxor.u32 %v2907, 2147483648
        %v2910 = vmul.f32 %v2909, 1.442695
        %v2911 = vpow.pop %v2910
        %v2912 = vadd.f32 %v2911, 1.0
        %v2913 = vrcp.pop %v2912
        %v2914 = vmul.f32 1.0, %v2913
        %v2915 = vrot.slane %v2725, 2
        %v2917 = vtanh.pop %v2915
        %v2918 = vrot.slane %v2725, 3
        %v2920 = vxor.u32 %v2918, 2147483648
        %v2921 = vmul.f32 %v2920, 1.442695
        %v2922 = vpow.pop %v2921
        %v2923 = vadd.f32 %v2922, 1.0
        %v2924 = vrcp.pop %v2923
        %v2925 = vmul.f32 1.0, %v2924
        %v2926 = vmul.f32 %v2914, %v2516
        %v2927 = vmul.f32 %v2905, %v2917
        %v2928 = vadd.f32 %v2926, %v2927
        %v2929 = vtanh.pop %v2928
        %v2930 = vmul.f32 %v2925, %v2929
        %v2931 = vxor.u32 %v2899, 2147483648
        %v2932 = vmul.f32 %v2931, 1.442695
        %v2933 = vpow.pop %v2932
        %v2934 = vadd.f32 %v2933, 1.0
        %v2935 = vrcp.pop %v2934
        %v2936 = vmul.f32 1.0, %v2935
        %v2938 = vrot.slane %v2899, 1
        %v2940 = vxor.u32 %v2938, 2147483648
        %v2941 = vmul.f32 %v2940, 1.442695
        %v2942 = vpow.pop %v2941
        %v2943 = vadd.f32 %v2942, 1.0
        %v2944 = vrcp.pop %v2943
        %v2945 = vmul.f32 1.0, %v2944
        %v2946 = vrot.slane %v2899, 2
        %v2948 = vtanh.pop %v2946
        %v2949 = vrot.slane %v2899, 3
        %v2951 = vxor.u32 %v2949, 2147483648
        %v2952 = vmul.f32 %v2951, 1.442695
        %v2953 = vpow.pop %v2952
        %v2954 = vadd.f32 %v2953, 1.0
        %v2955 = vrcp.pop %v2954
        %v2956 = vmul.f32 1.0, %v2955
        %v2957 = vmul.f32 %v2945, %v2547
        %v2958 = vmul.f32 %v2936, %v2948
        %v2959 = vadd.f32 %v2957, %v2958
        %v2960 = vtanh.pop %v2959
        %v2961 = vmul.f32 %v2956, %v2960
        %2962 = vst [vmem:[#allocation4 + $0x4] sm:$0x1] %v2930
        %2963 = vst [vmem:[#allocation5 + $0x3] sm:$0x1] %v2961
        %s2964 = scalar_lea.vmem [#allocation2], 5
        %v2965 = vld [vmem:[%s2964] ss:$8 sm:$0xf]
        %2966 = vmatprep.subr.mxu0 %v838
        %2967 = vmatpush1.msra.mxu0 %v837
        %2968 = vmatprep.subr.mxu0 %v834
        %2969 = vmatpush1.msra.mxu0 %v833
        %2970 = vmatprep.subr.mxu0 %v830
        %2971 = vmatpush1.msra.mxu0 %v829
        %2972 = vmatprep.subr.mxu0 %v826
        %2973 = vmatpush1.msra.mxu0 %v825
        %2974 = vmatprep.subr.mxu0 %v822
        %2975 = vmatpush1.msra.mxu0 %v821
        %2976 = vmatprep.subr.mxu0 %v818
        %2977 = vmatpush1.msra.mxu0 %v817
        %2978 = vmatprep.subr.mxu0 %v814
        %2979 = vmatpush1.msra.mxu0 %v813
        %2980 = vmatprep.subr.mxu0 %v810
        %2981 = vmatpush1.msra.mxu0 %v809
        %2982 = vmatprep.subr.mxu0 %v806
        %2983 = vmatpush1.msra.mxu0 %v805
        %2984 = vmatprep.subr.mxu0 %v802
        %2985 = vmatpush1.msra.mxu0 %v801
        %2986 = vmatprep.subr.mxu0 %v798
        %2987 = vmatpush1.msra.mxu0 %v797
        %2988 = vmatprep.subr.mxu0 %v794
        %2989 = vmatpush1.msra.mxu0 %v793
        %2990 = vmatprep.subr.mxu0 %v790
        %2991 = vmatpush1.msra.mxu0 %v789
        %2992 = vmatprep.subr.mxu0 %v786
        %2993 = vmatpush1.msra.mxu0 %v785
        %2994 = vmatprep.subr.mxu0 %v782
        %2995 = vmatpush1.msra.mxu0 %v781
        %2996 = vmatprep.subr.mxu0 %v778
        %2997 = vmatpush1.msra.mxu0 %v777
        %2998 = vmatprep.subr.mxu0 0.0
        %2999 = vmatpush2.msra.mxu0 0.0
        %3000 = vmatprep.subr.mxu0 0.0
        %3001 = vmatpush2.msra.mxu0 0.0
        %3002 = vmatprep.subr.mxu0 0.0
        %3003 = vmatpush2.msra.mxu0 0.0
        %3004 = vmatprep.subr.mxu0 0.0
        %3005 = vmatpush2.msra.mxu0 0.0
        %3006 = vmatprep.subr.mxu0 0.0
        %3007 = vmatpush2.msra.mxu0 0.0
        %3008 = vmatprep.subr.mxu0 0.0
        %3009 = vmatpush2.msra.mxu0 0.0
        %3010 = vmatprep.subr.mxu0 0.0
        %3011 = vmatpush2.msra.mxu0 0.0
        %3012 = vmatprep.subr.mxu0 0.0
        %3013 = vmatpush2.msra.mxu0 0.0
        %3014 = vmatprep.subr.mxu0 0.0
        %3015 = vmatpush2.msra.mxu0 0.0
        %3016 = vmatprep.subr.mxu0 0.0
        %3017 = vmatpush2.msra.mxu0 0.0
        %3018 = vmatprep.subr.mxu0 0.0
        %3019 = vmatpush2.msra.mxu0 0.0
        %3020 = vmatprep.subr.mxu0 0.0
        %3021 = vmatpush2.msra.mxu0 0.0
        %3022 = vmatprep.subr.mxu0 0.0
        %3023 = vmatpush2.msra.mxu0 0.0
        %3024 = vmatprep.subr.mxu0 0.0
        %3025 = vmatpush2.msra.mxu0 0.0
        %3026 = vmatprep.subr.mxu0 0.0
        %3027 = vmatpush2.msra.mxu0 0.0
        %3028 = vmatprep.subr.mxu0 0.0
        %3029 = vmatpush2.msra.mxu0 0.0
        %3030 = vmatprep.mubr.f32.mxu0 0.0
        %3031 = vmatmul.mubr.f32.gmra.mxu0 %v2930
        %v3032 = vpop.f32.mrf.mxu0
        %v3033 = vadd.f32 0.0, %v3032
        %v3034 = vpop.f32.mrf.mxu0
        %v3035 = vadd.f32 0.0, %v3034
        %3036 = vdwg.mxu0
        %3037 = vmatprep.subr.mxu0 %v840
        %3038 = vmatpush1.msra.mxu0 %v839
        %3039 = vmatprep.subr.mxu0 %v836
        %3040 = vmatpush1.msra.mxu0 %v835
        %3041 = vmatprep.subr.mxu0 %v832
        %3042 = vmatpush1.msra.mxu0 %v831
        %3043 = vmatprep.subr.mxu0 %v828
        %3044 = vmatpush1.msra.mxu0 %v827
        %3045 = vmatprep.subr.mxu0 %v824
        %3046 = vmatpush1.msra.mxu0 %v823
        %3047 = vmatprep.subr.mxu0 %v820
        %3048 = vmatpush1.msra.mxu0 %v819
        %3049 = vmatprep.subr.mxu0 %v816
        %3050 = vmatpush1.msra.mxu0 %v815
        %3051 = vmatprep.subr.mxu0 %v812
        %3052 = vmatpush1.msra.mxu0 %v811
        %3053 = vmatprep.subr.mxu0 %v808
        %3054 = vmatpush1.msra.mxu0 %v807
        %3055 = vmatprep.subr.mxu0 %v804
        %3056 = vmatpush1.msra.mxu0 %v803
        %3057 = vmatprep.subr.mxu0 %v800
        %3058 = vmatpush1.msra.mxu0 %v799
        %3059 = vmatprep.subr.mxu0 %v796
        %3060 = vmatpush1.msra.mxu0 %v795
        %3061 = vmatprep.subr.mxu0 %v792
        %3062 = vmatpush1.msra.mxu0 %v791
        %3063 = vmatprep.subr.mxu0 %v788
        %3064 = vmatpush1.msra.mxu0 %v787
        %3065 = vmatprep.subr.mxu0 %v784
        %3066 = vmatpush1.msra.mxu0 %v783
        %3067 = vmatprep.subr.mxu0 %v780
        %3068 = vmatpush1.msra.mxu0 %v779
        %3069 = vmatprep.subr.mxu0 0.0
        %3070 = vmatpush2.msra.mxu0 0.0
        %3071 = vmatprep.subr.mxu0 0.0
        %3072 = vmatpush2.msra.mxu0 0.0
        %3073 = vmatprep.subr.mxu0 0.0
        %3074 = vmatpush2.msra.mxu0 0.0
        %3075 = vmatprep.subr.mxu0 0.0
        %3076 = vmatpush2.msra.mxu0 0.0
        %3077 = vmatprep.subr.mxu0 0.0
        %3078 = vmatpush2.msra.mxu0 0.0
        %3079 = vmatprep.subr.mxu0 0.0
        %3080 = vmatpush2.msra.mxu0 0.0
        %3081 = vmatprep.subr.mxu0 0.0
        %3082 = vmatpush2.msra.mxu0 0.0
        %3083 = vmatprep.subr.mxu0 0.0
        %3084 = vmatpush2.msra.mxu0 0.0
        %3085 = vmatprep.subr.mxu0 0.0
        %3086 = vmatpush2.msra.mxu0 0.0
        %3087 = vmatprep.subr.mxu0 0.0
        %3088 = vmatpush2.msra.mxu0 0.0
        %3089 = vmatprep.subr.mxu0 0.0
        %3090 = vmatpush2.msra.mxu0 0.0
        %3091 = vmatprep.subr.mxu0 0.0
        %3092 = vmatpush2.msra.mxu0 0.0
        %3093 = vmatprep.subr.mxu0 0.0
        %3094 = vmatpush2.msra.mxu0 0.0
        %3095 = vmatprep.subr.mxu0 0.0
        %3096 = vmatpush2.msra.mxu0 0.0
        %3097 = vmatprep.subr.mxu0 0.0
        %3098 = vmatpush2.msra.mxu0 0.0
        %3099 = vmatprep.subr.mxu0 0.0
        %3100 = vmatpush2.msra.mxu0 0.0
        %3101 = vmatprep.mubr.f32.mxu0 0.0
        %3102 = vmatmul.mubr.f32.gmra.mxu0 %v2930
        %v3103 = vpop.f32.mrf.mxu0
        %v3104 = vadd.f32 0.0, %v3103
        %v3105 = vpop.f32.mrf.mxu0
        %v3106 = vadd.f32 0.0, %v3105
        %3107 = vdwg.mxu0
        %v3112 = vcombine.low %v3033, %v3035
        %v3113 = vcombine.low %v3104, %v3106
        %v3115 = vunpack.c.l.s4 1966171168
        %v3116 = vunpack.c.0.s8 %v3115
        %v3117 = vlaneseq
        %v3118 = vshrl.u32 %v3117, 7
        %v3119 = vsub.s32 %v3116, %v3118
        %v3120 = vrot.slane %v3112, %v3119
        %v3122 = vunpack.c.l.s4 1966171168
        %v3123 = vunpack.c.0.s8 %v3122
        %v3124 = vlaneseq
        %v3125 = vshrl.u32 %v3124, 7
        %v3126 = vsub.s32 %v3123, %v3125
        %v3127 = vrot.slane %v3113, %v3126
        %v3128 = vcombine.low %v3120, %v3127
        %v3130 = vunpack.c.l.s4 1966171168
        %v3131 = vunpack.c.0.s8 %v3130
        %v3132 = vlaneseq
        %v3133 = vshrl.u32 %v3132, 7
        %v3134 = vsub.s32 %v3131, %v3133
        %v3135 = vrot.slane %v3128, %v3134
        %v3137 = vadd.f32 %v2965, %v3135
        %s3138 = scalar_lea.vmem [#allocation3], 2
        %v3139 = vld [vmem:[%s3138] ss:$8 sm:$0xf]
        %3140 = vmatprep.subr.mxu0 %v902
        %3141 = vmatpush1.msra.mxu0 %v901
        %3142 = vmatprep.subr.mxu0 %v898
        %3143 = vmatpush1.msra.mxu0 %v897
        %3144 = vmatprep.subr.mxu0 %v894
        %3145 = vmatpush1.msra.mxu0 %v893
        %3146 = vmatprep.subr.mxu0 %v890
        %3147 = vmatpush1.msra.mxu0 %v889
        %3148 = vmatprep.subr.mxu0 %v886
        %3149 = vmatpush1.msra.mxu0 %v885
        %3150 = vmatprep.subr.mxu0 %v882
        %3151 = vmatpush1.msra.mxu0 %v881
        %3152 = vmatprep.subr.mxu0 %v878
        %3153 = vmatpush1.msra.mxu0 %v877
        %3154 = vmatprep.subr.mxu0 %v874
        %3155 = vmatpush1.msra.mxu0 %v873
        %3156 = vmatprep.subr.mxu0 %v870
        %3157 = vmatpush1.msra.mxu0 %v869
        %3158 = vmatprep.subr.mxu0 %v866
        %3159 = vmatpush1.msra.mxu0 %v865
        %3160 = vmatprep.subr.mxu0 %v862
        %3161 = vmatpush1.msra.mxu0 %v861
        %3162 = vmatprep.subr.mxu0 %v858
        %3163 = vmatpush1.msra.mxu0 %v857
        %3164 = vmatprep.subr.mxu0 %v854
        %3165 = vmatpush1.msra.mxu0 %v853
        %3166 = vmatprep.subr.mxu0 %v850
        %3167 = vmatpush1.msra.mxu0 %v849
        %3168 = vmatprep.subr.mxu0 %v846
        %3169 = vmatpush1.msra.mxu0 %v845
        %3170 = vmatprep.subr.mxu0 %v842
        %3171 = vmatpush1.msra.mxu0 %v841
        %3172 = vmatprep.subr.mxu0 0.0
        %3173 = vmatpush2.msra.mxu0 0.0
        %3174 = vmatprep.subr.mxu0 0.0
        %3175 = vmatpush2.msra.mxu0 0.0
        %3176 = vmatprep.subr.mxu0 0.0
        %3177 = vmatpush2.msra.mxu0 0.0
        %3178 = vmatprep.subr.mxu0 0.0
        %3179 = vmatpush2.msra.mxu0 0.0
        %3180 = vmatprep.subr.mxu0 0.0
        %3181 = vmatpush2.msra.mxu0 0.0
        %3182 = vmatprep.subr.mxu0 0.0
        %3183 = vmatpush2.msra.mxu0 0.0
        %3184 = vmatprep.subr.mxu0 0.0
        %3185 = vmatpush2.msra.mxu0 0.0
        %3186 = vmatprep.subr.mxu0 0.0
        %3187 = vmatpush2.msra.mxu0 0.0
        %3188 = vmatprep.subr.mxu0 0.0
        %3189 = vmatpush2.msra.mxu0 0.0
        %3190 = vmatprep.subr.mxu0 0.0
        %3191 = vmatpush2.msra.mxu0 0.0
        %3192 = vmatprep.subr.mxu0 0.0
        %3193 = vmatpush2.msra.mxu0 0.0
        %3194 = vmatprep.subr.mxu0 0.0
        %3195 = vmatpush2.msra.mxu0 0.0
        %3196 = vmatprep.subr.mxu0 0.0
        %3197 = vmatpush2.msra.mxu0 0.0
        %3198 = vmatprep.subr.mxu0 0.0
        %3199 = vmatpush2.msra.mxu0 0.0
        %3200 = vmatprep.subr.mxu0 0.0
        %3201 = vmatpush2.msra.mxu0 0.0
        %3202 = vmatprep.subr.mxu0 0.0
        %3203 = vmatpush2.msra.mxu0 0.0
        %3204 = vmatprep.mubr.f32.mxu0 0.0
        %3205 = vmatmul.mubr.f32.gmra.mxu0 %v2961
        %v3206 = vpop.f32.mrf.mxu0
        %v3207 = vadd.f32 0.0, %v3206
        %v3208 = vpop.f32.mrf.mxu0
        %v3209 = vadd.f32 0.0, %v3208
        %3210 = vdwg.mxu0
        %3211 = vmatprep.subr.mxu0 %v904
        %3212 = vmatpush1.msra.mxu0 %v903
        %3213 = vmatprep.subr.mxu0 %v900
        %3214 = vmatpush1.msra.mxu0 %v899
        %3215 = vmatprep.subr.mxu0 %v896
        %3216 = vmatpush1.msra.mxu0 %v895
        %3217 = vmatprep.subr.mxu0 %v892
        %3218 = vmatpush1.msra.mxu0 %v891
        %3219 = vmatprep.subr.mxu0 %v888
        %3220 = vmatpush1.msra.mxu0 %v887
        %3221 = vmatprep.subr.mxu0 %v884
        %3222 = vmatpush1.msra.mxu0 %v883
        %3223 = vmatprep.subr.mxu0 %v880
        %3224 = vmatpush1.msra.mxu0 %v879
        %3225 = vmatprep.subr.mxu0 %v876
        %3226 = vmatpush1.msra.mxu0 %v875
        %3227 = vmatprep.subr.mxu0 %v872
        %3228 = vmatpush1.msra.mxu0 %v871
        %3229 = vmatprep.subr.mxu0 %v868
        %3230 = vmatpush1.msra.mxu0 %v867
        %3231 = vmatprep.subr.mxu0 %v864
        %3232 = vmatpush1.msra.mxu0 %v863
        %3233 = vmatprep.subr.mxu0 %v860
        %3234 = vmatpush1.msra.mxu0 %v859
        %3235 = vmatprep.subr.mxu0 %v856
        %3236 = vmatpush1.msra.mxu0 %v855
        %3237 = vmatprep.subr.mxu0 %v852
        %3238 = vmatpush1.msra.mxu0 %v851
        %3239 = vmatprep.subr.mxu0 %v848
        %3240 = vmatpush1.msra.mxu0 %v847
        %3241 = vmatprep.subr.mxu0 %v844
        %3242 = vmatpush1.msra.mxu0 %v843
        %3243 = vmatprep.subr.mxu0 0.0
        %3244 = vmatpush2.msra.mxu0 0.0
        %3245 = vmatprep.subr.mxu0 0.0
        %3246 = vmatpush2.msra.mxu0 0.0
        %3247 = vmatprep.subr.mxu0 0.0
        %3248 = vmatpush2.msra.mxu0 0.0
        %3249 = vmatprep.subr.mxu0 0.0
        %3250 = vmatpush2.msra.mxu0 0.0
        %3251 = vmatprep.subr.mxu0 0.0
        %3252 = vmatpush2.msra.mxu0 0.0
        %3253 = vmatprep.subr.mxu0 0.0
        %3254 = vmatpush2.msra.mxu0 0.0
        %3255 = vmatprep.subr.mxu0 0.0
        %3256 = vmatpush2.msra.mxu0 0.0
        %3257 = vmatprep.subr.mxu0 0.0
        %3258 = vmatpush2.msra.mxu0 0.0
        %3259 = vmatprep.subr.mxu0 0.0
        %3260 = vmatpush2.msra.mxu0 0.0
        %3261 = vmatprep.subr.mxu0 0.0
        %3262 = vmatpush2.msra.mxu0 0.0
        %3263 = vmatprep.subr.mxu0 0.0
        %3264 = vmatpush2.msra.mxu0 0.0
        %3265 = vmatprep.subr.mxu0 0.0
        %3266 = vmatpush2.msra.mxu0 0.0
        %3267 = vmatprep.subr.mxu0 0.0
        %3268 = vmatpush2.msra.mxu0 0.0
        %3269 = vmatprep.subr.mxu0 0.0
        %3270 = vmatpush2.msra.mxu0 0.0
        %3271 = vmatprep.subr.mxu0 0.0
        %3272 = vmatpush2.msra.mxu0 0.0
        %3273 = vmatprep.subr.mxu0 0.0
        %3274 = vmatpush2.msra.mxu0 0.0
        %3275 = vmatprep.mubr.f32.mxu0 0.0
        %3276 = vmatmul.mubr.f32.gmra.mxu0 %v2961
        %v3277 = vpop.f32.mrf.mxu0
        %v3278 = vadd.f32 0.0, %v3277
        %v3279 = vpop.f32.mrf.mxu0
        %v3280 = vadd.f32 0.0, %v3279
        %3281 = vdwg.mxu0
        %v3286 = vcombine.low %v3207, %v3209
        %v3287 = vcombine.low %v3278, %v3280
        %v3289 = vunpack.c.l.s4 1966171168
        %v3290 = vunpack.c.0.s8 %v3289
        %v3291 = vlaneseq
        %v3292 = vshrl.u32 %v3291, 7
        %v3293 = vsub.s32 %v3290, %v3292
        %v3294 = vrot.slane %v3286, %v3293
        %v3296 = vunpack.c.l.s4 1966171168
        %v3297 = vunpack.c.0.s8 %v3296
        %v3298 = vlaneseq
        %v3299 = vshrl.u32 %v3298, 7
        %v3300 = vsub.s32 %v3297, %v3299
        %v3301 = vrot.slane %v3287, %v3300
        %v3302 = vcombine.low %v3294, %v3301
        %v3304 = vunpack.c.l.s4 1966171168
        %v3305 = vunpack.c.0.s8 %v3304
        %v3306 = vlaneseq
        %v3307 = vshrl.u32 %v3306, 7
        %v3308 = vsub.s32 %v3305, %v3307
        %v3309 = vrot.slane %v3302, %v3308
        %v3311 = vadd.f32 %v3139, %v3309
        %v3312 = vxor.u32 %v3137, 2147483648
        %v3313 = vmul.f32 %v3312, 1.442695
        %v3314 = vpow.pop %v3313
        %v3315 = vadd.f32 %v3314, 1.0
        %v3316 = vrcp.pop %v3315
        %v3317 = vmul.f32 1.0, %v3316
        %v3319 = vrot.slane %v3137, 1
        %v3321 = vxor.u32 %v3319, 2147483648
        %v3322 = vmul.f32 %v3321, 1.442695
        %v3323 = vpow.pop %v3322
        %v3324 = vadd.f32 %v3323, 1.0
        %v3325 = vrcp.pop %v3324
        %v3326 = vmul.f32 1.0, %v3325
        %v3327 = vrot.slane %v3137, 2
        %v3329 = vtanh.pop %v3327
        %v3330 = vrot.slane %v3137, 3
        %v3332 = vxor.u32 %v3330, 2147483648
        %v3333 = vmul.f32 %v3332, 1.442695
        %v3334 = vpow.pop %v3333
        %v3335 = vadd.f32 %v3334, 1.0
        %v3336 = vrcp.pop %v3335
        %v3337 = vmul.f32 1.0, %v3336
        %v3338 = vmul.f32 %v3326, %v2928
        %v3339 = vmul.f32 %v3317, %v3329
        %v3340 = vadd.f32 %v3338, %v3339
        %v3341 = vtanh.pop %v3340
        %v3342 = vmul.f32 %v3337, %v3341
        %v3343 = vxor.u32 %v3311, 2147483648
        %v3344 = vmul.f32 %v3343, 1.442695
        %v3345 = vpow.pop %v3344
        %v3346 = vadd.f32 %v3345, 1.0
        %v3347 = vrcp.pop %v3346
        %v3348 = vmul.f32 1.0, %v3347
        %v3350 = vrot.slane %v3311, 1
        %v3352 = vxor.u32 %v3350, 2147483648
        %v3353 = vmul.f32 %v3352, 1.442695
        %v3354 = vpow.pop %v3353
        %v3355 = vadd.f32 %v3354, 1.0
        %v3356 = vrcp.pop %v3355
        %v3357 = vmul.f32 1.0, %v3356
        %v3358 = vrot.slane %v3311, 2
        %v3360 = vtanh.pop %v3358
        %v3361 = vrot.slane %v3311, 3
        %v3363 = vxor.u32 %v3361, 2147483648
        %v3364 = vmul.f32 %v3363, 1.442695
        %v3365 = vpow.pop %v3364
        %v3366 = vadd.f32 %v3365, 1.0
        %v3367 = vrcp.pop %v3366
        %v3368 = vmul.f32 1.0, %v3367
        %v3369 = vmul.f32 %v3357, %v2959
        %v3370 = vmul.f32 %v3348, %v3360
        %v3371 = vadd.f32 %v3369, %v3370
        %v3372 = vtanh.pop %v3371
        %v3373 = vmul.f32 %v3368, %v3372
        %3374 = vst [vmem:[#allocation4 + $0x5] sm:$0x1] %v3342
        %3375 = vst [vmem:[#allocation5 + $0x2] sm:$0x1] %v3373
        %s3376 = scalar_lea.vmem [#allocation2], 6
        %v3377 = vld [vmem:[%s3376] ss:$8 sm:$0xf]
        %3378 = vmatprep.subr.mxu0 %v838
        %3379 = vmatpush1.msra.mxu0 %v837
        %3380 = vmatprep.subr.mxu0 %v834
        %3381 = vmatpush1.msra.mxu0 %v833
        %3382 = vmatprep.subr.mxu0 %v830
        %3383 = vmatpush1.msra.mxu0 %v829
        %3384 = vmatprep.subr.mxu0 %v826
        %3385 = vmatpush1.msra.mxu0 %v825
        %3386 = vmatprep.subr.mxu0 %v822
        %3387 = vmatpush1.msra.mxu0 %v821
        %3388 = vmatprep.subr.mxu0 %v818
        %3389 = vmatpush1.msra.mxu0 %v817
        %3390 = vmatprep.subr.mxu0 %v814
        %3391 = vmatpush1.msra.mxu0 %v813
        %3392 = vmatprep.subr.mxu0 %v810
        %3393 = vmatpush1.msra.mxu0 %v809
        %3394 = vmatprep.subr.mxu0 %v806
        %3395 = vmatpush1.msra.mxu0 %v805
        %3396 = vmatprep.subr.mxu0 %v802
        %3397 = vmatpush1.msra.mxu0 %v801
        %3398 = vmatprep.subr.mxu0 %v798
        %3399 = vmatpush1.msra.mxu0 %v797
        %3400 = vmatprep.subr.mxu0 %v794
        %3401 = vmatpush1.msra.mxu0 %v793
        %3402 = vmatprep.subr.mxu0 %v790
        %3403 = vmatpush1.msra.mxu0 %v789
        %3404 = vmatprep.subr.mxu0 %v786
        %3405 = vmatpush1.msra.mxu0 %v785
        %3406 = vmatprep.subr.mxu0 %v782
        %3407 = vmatpush1.msra.mxu0 %v781
        %3408 = vmatprep.subr.mxu0 %v778
        %3409 = vmatpush1.msra.mxu0 %v777
        %3410 = vmatprep.subr.mxu0 0.0
        %3411 = vmatpush2.msra.mxu0 0.0
        %3412 = vmatprep.subr.mxu0 0.0
        %3413 = vmatpush2.msra.mxu0 0.0
        %3414 = vmatprep.subr.mxu0 0.0
        %3415 = vmatpush2.msra.mxu0 0.0
        %3416 = vmatprep.subr.mxu0 0.0
        %3417 = vmatpush2.msra.mxu0 0.0
        %3418 = vmatprep.subr.mxu0 0.0
        %3419 = vmatpush2.msra.mxu0 0.0
        %3420 = vmatprep.subr.mxu0 0.0
        %3421 = vmatpush2.msra.mxu0 0.0
        %3422 = vmatprep.subr.mxu0 0.0
        %3423 = vmatpush2.msra.mxu0 0.0
        %3424 = vmatprep.subr.mxu0 0.0
        %3425 = vmatpush2.msra.mxu0 0.0
        %3426 = vmatprep.subr.mxu0 0.0
        %3427 = vmatpush2.msra.mxu0 0.0
        %3428 = vmatprep.subr.mxu0 0.0
        %3429 = vmatpush2.msra.mxu0 0.0
        %3430 = vmatprep.subr.mxu0 0.0
        %3431 = vmatpush2.msra.mxu0 0.0
        %3432 = vmatprep.subr.mxu0 0.0
        %3433 = vmatpush2.msra.mxu0 0.0
        %3434 = vmatprep.subr.mxu0 0.0
        %3435 = vmatpush2.msra.mxu0 0.0
        %3436 = vmatprep.subr.mxu0 0.0
        %3437 = vmatpush2.msra.mxu0 0.0
        %3438 = vmatprep.subr.mxu0 0.0
        %3439 = vmatpush2.msra.mxu0 0.0
        %3440 = vmatprep.subr.mxu0 0.0
        %3441 = vmatpush2.msra.mxu0 0.0
        %3442 = vmatprep.mubr.f32.mxu0 0.0
        %3443 = vmatmul.mubr.f32.gmra.mxu0 %v3342
        %v3444 = vpop.f32.mrf.mxu0
        %v3445 = vadd.f32 0.0, %v3444
        %v3446 = vpop.f32.mrf.mxu0
        %v3447 = vadd.f32 0.0, %v3446
        %3448 = vdwg.mxu0
        %3449 = vmatprep.subr.mxu0 %v840
        %3450 = vmatpush1.msra.mxu0 %v839
        %3451 = vmatprep.subr.mxu0 %v836
        %3452 = vmatpush1.msra.mxu0 %v835
        %3453 = vmatprep.subr.mxu0 %v832
        %3454 = vmatpush1.msra.mxu0 %v831
        %3455 = vmatprep.subr.mxu0 %v828
        %3456 = vmatpush1.msra.mxu0 %v827
        %3457 = vmatprep.subr.mxu0 %v824
        %3458 = vmatpush1.msra.mxu0 %v823
        %3459 = vmatprep.subr.mxu0 %v820
        %3460 = vmatpush1.msra.mxu0 %v819
        %3461 = vmatprep.subr.mxu0 %v816
        %3462 = vmatpush1.msra.mxu0 %v815
        %3463 = vmatprep.subr.mxu0 %v812
        %3464 = vmatpush1.msra.mxu0 %v811
        %3465 = vmatprep.subr.mxu0 %v808
        %3466 = vmatpush1.msra.mxu0 %v807
        %3467 = vmatprep.subr.mxu0 %v804
        %3468 = vmatpush1.msra.mxu0 %v803
        %3469 = vmatprep.subr.mxu0 %v800
        %3470 = vmatpush1.msra.mxu0 %v799
        %3471 = vmatprep.subr.mxu0 %v796
        %3472 = vmatpush1.msra.mxu0 %v795
        %3473 = vmatprep.subr.mxu0 %v792
        %3474 = vmatpush1.msra.mxu0 %v791
        %3475 = vmatprep.subr.mxu0 %v788
        %3476 = vmatpush1.msra.mxu0 %v787
        %3477 = vmatprep.subr.mxu0 %v784
        %3478 = vmatpush1.msra.mxu0 %v783
        %3479 = vmatprep.subr.mxu0 %v780
        %3480 = vmatpush1.msra.mxu0 %v779
        %3481 = vmatprep.subr.mxu0 0.0
        %3482 = vmatpush2.msra.mxu0 0.0
        %3483 = vmatprep.subr.mxu0 0.0
        %3484 = vmatpush2.msra.mxu0 0.0
        %3485 = vmatprep.subr.mxu0 0.0
        %3486 = vmatpush2.msra.mxu0 0.0
        %3487 = vmatprep.subr.mxu0 0.0
        %3488 = vmatpush2.msra.mxu0 0.0
        %3489 = vmatprep.subr.mxu0 0.0
        %3490 = vmatpush2.msra.mxu0 0.0
        %3491 = vmatprep.subr.mxu0 0.0
        %3492 = vmatpush2.msra.mxu0 0.0
        %3493 = vmatprep.subr.mxu0 0.0
        %3494 = vmatpush2.msra.mxu0 0.0
        %3495 = vmatprep.subr.mxu0 0.0
        %3496 = vmatpush2.msra.mxu0 0.0
        %3497 = vmatprep.subr.mxu0 0.0
        %3498 = vmatpush2.msra.mxu0 0.0
        %3499 = vmatprep.subr.mxu0 0.0
        %3500 = vmatpush2.msra.mxu0 0.0
        %3501 = vmatprep.subr.mxu0 0.0
        %3502 = vmatpush2.msra.mxu0 0.0
        %3503 = vmatprep.subr.mxu0 0.0
        %3504 = vmatpush2.msra.mxu0 0.0
        %3505 = vmatprep.subr.mxu0 0.0
        %3506 = vmatpush2.msra.mxu0 0.0
        %3507 = vmatprep.subr.mxu0 0.0
        %3508 = vmatpush2.msra.mxu0 0.0
        %3509 = vmatprep.subr.mxu0 0.0
        %3510 = vmatpush2.msra.mxu0 0.0
        %3511 = vmatprep.subr.mxu0 0.0
        %3512 = vmatpush2.msra.mxu0 0.0
        %3513 = vmatprep.mubr.f32.mxu0 0.0
        %3514 = vmatmul.mubr.f32.gmra.mxu0 %v3342
        %v3515 = vpop.f32.mrf.mxu0
        %v3516 = vadd.f32 0.0, %v3515
        %v3517 = vpop.f32.mrf.mxu0
        %v3518 = vadd.f32 0.0, %v3517
        %3519 = vdwg.mxu0
        %v3524 = vcombine.low %v3445, %v3447
        %v3525 = vcombine.low %v3516, %v3518
        %v3527 = vunpack.c.l.s4 1966171168
        %v3528 = vunpack.c.0.s8 %v3527
        %v3529 = vlaneseq
        %v3530 = vshrl.u32 %v3529, 7
        %v3531 = vsub.s32 %v3528, %v3530
        %v3532 = vrot.slane %v3524, %v3531
        %v3534 = vunpack.c.l.s4 1966171168
        %v3535 = vunpack.c.0.s8 %v3534
        %v3536 = vlaneseq
        %v3537 = vshrl.u32 %v3536, 7
        %v3538 = vsub.s32 %v3535, %v3537
        %v3539 = vrot.slane %v3525, %v3538
        %v3540 = vcombine.low %v3532, %v3539
        %v3542 = vunpack.c.l.s4 1966171168
        %v3543 = vunpack.c.0.s8 %v3542
        %v3544 = vlaneseq
        %v3545 = vshrl.u32 %v3544, 7
        %v3546 = vsub.s32 %v3543, %v3545
        %v3547 = vrot.slane %v3540, %v3546
        %v3549 = vadd.f32 %v3377, %v3547
        %s3550 = scalar_lea.vmem [#allocation3], 1
        %v3551 = vld [vmem:[%s3550] ss:$8 sm:$0xf]
        %3552 = vmatprep.subr.mxu0 %v902
        %3553 = vmatpush1.msra.mxu0 %v901
        %3554 = vmatprep.subr.mxu0 %v898
        %3555 = vmatpush1.msra.mxu0 %v897
        %3556 = vmatprep.subr.mxu0 %v894
        %3557 = vmatpush1.msra.mxu0 %v893
        %3558 = vmatprep.subr.mxu0 %v890
        %3559 = vmatpush1.msra.mxu0 %v889
        %3560 = vmatprep.subr.mxu0 %v886
        %3561 = vmatpush1.msra.mxu0 %v885
        %3562 = vmatprep.subr.mxu0 %v882
        %3563 = vmatpush1.msra.mxu0 %v881
        %3564 = vmatprep.subr.mxu0 %v878
        %3565 = vmatpush1.msra.mxu0 %v877
        %3566 = vmatprep.subr.mxu0 %v874
        %3567 = vmatpush1.msra.mxu0 %v873
        %3568 = vmatprep.subr.mxu0 %v870
        %3569 = vmatpush1.msra.mxu0 %v869
        %3570 = vmatprep.subr.mxu0 %v866
        %3571 = vmatpush1.msra.mxu0 %v865
        %3572 = vmatprep.subr.mxu0 %v862
        %3573 = vmatpush1.msra.mxu0 %v861
        %3574 = vmatprep.subr.mxu0 %v858
        %3575 = vmatpush1.msra.mxu0 %v857
        %3576 = vmatprep.subr.mxu0 %v854
        %3577 = vmatpush1.msra.mxu0 %v853
        %3578 = vmatprep.subr.mxu0 %v850
        %3579 = vmatpush1.msra.mxu0 %v849
        %3580 = vmatprep.subr.mxu0 %v846
        %3581 = vmatpush1.msra.mxu0 %v845
        %3582 = vmatprep.subr.mxu0 %v842
        %3583 = vmatpush1.msra.mxu0 %v841
        %3584 = vmatprep.subr.mxu0 0.0
        %3585 = vmatpush2.msra.mxu0 0.0
        %3586 = vmatprep.subr.mxu0 0.0
        %3587 = vmatpush2.msra.mxu0 0.0
        %3588 = vmatprep.subr.mxu0 0.0
        %3589 = vmatpush2.msra.mxu0 0.0
        %3590 = vmatprep.subr.mxu0 0.0
        %3591 = vmatpush2.msra.mxu0 0.0
        %3592 = vmatprep.subr.mxu0 0.0
        %3593 = vmatpush2.msra.mxu0 0.0
        %3594 = vmatprep.subr.mxu0 0.0
        %3595 = vmatpush2.msra.mxu0 0.0
        %3596 = vmatprep.subr.mxu0 0.0
        %3597 = vmatpush2.msra.mxu0 0.0
        %3598 = vmatprep.subr.mxu0 0.0
        %3599 = vmatpush2.msra.mxu0 0.0
        %3600 = vmatprep.subr.mxu0 0.0
        %3601 = vmatpush2.msra.mxu0 0.0
        %3602 = vmatprep.subr.mxu0 0.0
        %3603 = vmatpush2.msra.mxu0 0.0
        %3604 = vmatprep.subr.mxu0 0.0
        %3605 = vmatpush2.msra.mxu0 0.0
        %3606 = vmatprep.subr.mxu0 0.0
        %3607 = vmatpush2.msra.mxu0 0.0
        %3608 = vmatprep.subr.mxu0 0.0
        %3609 = vmatpush2.msra.mxu0 0.0
        %3610 = vmatprep.subr.mxu0 0.0
        %3611 = vmatpush2.msra.mxu0 0.0
        %3612 = vmatprep.subr.mxu0 0.0
        %3613 = vmatpush2.msra.mxu0 0.0
        %3614 = vmatprep.subr.mxu0 0.0
        %3615 = vmatpush2.msra.mxu0 0.0
        %3616 = vmatprep.mubr.f32.mxu0 0.0
        %3617 = vmatmul.mubr.f32.gmra.mxu0 %v3373
        %v3618 = vpop.f32.mrf.mxu0
        %v3619 = vadd.f32 0.0, %v3618
        %v3620 = vpop.f32.mrf.mxu0
        %v3621 = vadd.f32 0.0, %v3620
        %3622 = vdwg.mxu0
        %3623 = vmatprep.subr.mxu0 %v904
        %3624 = vmatpush1.msra.mxu0 %v903
        %3625 = vmatprep.subr.mxu0 %v900
        %3626 = vmatpush1.msra.mxu0 %v899
        %3627 = vmatprep.subr.mxu0 %v896
        %3628 = vmatpush1.msra.mxu0 %v895
        %3629 = vmatprep.subr.mxu0 %v892
        %3630 = vmatpush1.msra.mxu0 %v891
        %3631 = vmatprep.subr.mxu0 %v888
        %3632 = vmatpush1.msra.mxu0 %v887
        %3633 = vmatprep.subr.mxu0 %v884
        %3634 = vmatpush1.msra.mxu0 %v883
        %3635 = vmatprep.subr.mxu0 %v880
        %3636 = vmatpush1.msra.mxu0 %v879
        %3637 = vmatprep.subr.mxu0 %v876
        %3638 = vmatpush1.msra.mxu0 %v875
        %3639 = vmatprep.subr.mxu0 %v872
        %3640 = vmatpush1.msra.mxu0 %v871
        %3641 = vmatprep.subr.mxu0 %v868
        %3642 = vmatpush1.msra.mxu0 %v867
        %3643 = vmatprep.subr.mxu0 %v864
        %3644 = vmatpush1.msra.mxu0 %v863
        %3645 = vmatprep.subr.mxu0 %v860
        %3646 = vmatpush1.msra.mxu0 %v859
        %3647 = vmatprep.subr.mxu0 %v856
        %3648 = vmatpush1.msra.mxu0 %v855
        %3649 = vmatprep.subr.mxu0 %v852
        %3650 = vmatpush1.msra.mxu0 %v851
        %3651 = vmatprep.subr.mxu0 %v848
        %3652 = vmatpush1.msra.mxu0 %v847
        %3653 = vmatprep.subr.mxu0 %v844
        %3654 = vmatpush1.msra.mxu0 %v843
        %3655 = vmatprep.subr.mxu0 0.0
        %3656 = vmatpush2.msra.mxu0 0.0
        %3657 = vmatprep.subr.mxu0 0.0
        %3658 = vmatpush2.msra.mxu0 0.0
        %3659 = vmatprep.subr.mxu0 0.0
        %3660 = vmatpush2.msra.mxu0 0.0
        %3661 = vmatprep.subr.mxu0 0.0
        %3662 = vmatpush2.msra.mxu0 0.0
        %3663 = vmatprep.subr.mxu0 0.0
        %3664 = vmatpush2.msra.mxu0 0.0
        %3665 = vmatprep.subr.mxu0 0.0
        %3666 = vmatpush2.msra.mxu0 0.0
        %3667 = vmatprep.subr.mxu0 0.0
        %3668 = vmatpush2.msra.mxu0 0.0
        %3669 = vmatprep.subr.mxu0 0.0
        %3670 = vmatpush2.msra.mxu0 0.0
        %3671 = vmatprep.subr.mxu0 0.0
        %3672 = vmatpush2.msra.mxu0 0.0
        %3673 = vmatprep.subr.mxu0 0.0
        %3674 = vmatpush2.msra.mxu0 0.0
        %3675 = vmatprep.subr.mxu0 0.0
        %3676 = vmatpush2.msra.mxu0 0.0
        %3677 = vmatprep.subr.mxu0 0.0
        %3678 = vmatpush2.msra.mxu0 0.0
        %3679 = vmatprep.subr.mxu0 0.0
        %3680 = vmatpush2.msra.mxu0 0.0
        %3681 = vmatprep.subr.mxu0 0.0
        %3682 = vmatpush2.msra.mxu0 0.0
        %3683 = vmatprep.subr.mxu0 0.0
        %3684 = vmatpush2.msra.mxu0 0.0
        %3685 = vmatprep.subr.mxu0 0.0
        %3686 = vmatpush2.msra.mxu0 0.0
        %3687 = vmatprep.mubr.f32.mxu0 0.0
        %3688 = vmatmul.mubr.f32.gmra.mxu0 %v3373
        %v3689 = vpop.f32.mrf.mxu0
        %v3690 = vadd.f32 0.0, %v3689
        %v3691 = vpop.f32.mrf.mxu0
        %v3692 = vadd.f32 0.0, %v3691
        %3693 = vdwg.mxu0
        %v3698 = vcombine.low %v3619, %v3621
        %v3699 = vcombine.low %v3690, %v3692
        %v3701 = vunpack.c.l.s4 1966171168
        %v3702 = vunpack.c.0.s8 %v3701
        %v3703 = vlaneseq
        %v3704 = vshrl.u32 %v3703, 7
        %v3705 = vsub.s32 %v3702, %v3704
        %v3706 = vrot.slane %v3698, %v3705
        %v3708 = vunpack.c.l.s4 1966171168
        %v3709 = vunpack.c.0.s8 %v3708
        %v3710 = vlaneseq
        %v3711 = vshrl.u32 %v3710, 7
        %v3712 = vsub.s32 %v3709, %v3711
        %v3713 = vrot.slane %v3699, %v3712
        %v3714 = vcombine.low %v3706, %v3713
        %v3716 = vunpack.c.l.s4 1966171168
        %v3717 = vunpack.c.0.s8 %v3716
        %v3718 = vlaneseq
        %v3719 = vshrl.u32 %v3718, 7
        %v3720 = vsub.s32 %v3717, %v3719
        %v3721 = vrot.slane %v3714, %v3720
        %v3723 = vadd.f32 %v3551, %v3721
        %v3724 = vxor.u32 %v3549, 2147483648
        %v3725 = vmul.f32 %v3724, 1.442695
        %v3726 = vpow.pop %v3725
        %v3727 = vadd.f32 %v3726, 1.0
        %v3728 = vrcp.pop %v3727
        %v3729 = vmul.f32 1.0, %v3728
        %v3731 = vrot.slane %v3549, 1
        %v3733 = vxor.u32 %v3731, 2147483648
        %v3734 = vmul.f32 %v3733, 1.442695
        %v3735 = vpow.pop %v3734
        %v3736 = vadd.f32 %v3735, 1.0
        %v3737 = vrcp.pop %v3736
        %v3738 = vmul.f32 1.0, %v3737
        %v3739 = vrot.slane %v3549, 2
        %v3741 = vtanh.pop %v3739
        %v3742 = vrot.slane %v3549, 3
        %v3744 = vxor.u32 %v3742, 2147483648
        %v3745 = vmul.f32 %v3744, 1.442695
        %v3746 = vpow.pop %v3745
        %v3747 = vadd.f32 %v3746, 1.0
        %v3748 = vrcp.pop %v3747
        %v3749 = vmul.f32 1.0, %v3748
        %v3750 = vmul.f32 %v3738, %v3340
        %v3751 = vmul.f32 %v3729, %v3741
        %v3752 = vadd.f32 %v3750, %v3751
        %v3753 = vtanh.pop %v3752
        %v3754 = vmul.f32 %v3749, %v3753
        %v3755 = vxor.u32 %v3723, 2147483648
        %v3756 = vmul.f32 %v3755, 1.442695
        %v3757 = vpow.pop %v3756
        %v3758 = vadd.f32 %v3757, 1.0
        %v3759 = vrcp.pop %v3758
        %v3760 = vmul.f32 1.0, %v3759
        %v3762 = vrot.slane %v3723, 1
        %v3764 = vxor.u32 %v3762, 2147483648
        %v3765 = vmul.f32 %v3764, 1.442695
        %v3766 = vpow.pop %v3765
        %v3767 = vadd.f32 %v3766, 1.0
        %v3768 = vrcp.pop %v3767
        %v3769 = vmul.f32 1.0, %v3768
        %v3770 = vrot.slane %v3723, 2
        %v3772 = vtanh.pop %v3770
        %v3773 = vrot.slane %v3723, 3
        %v3775 = vxor.u32 %v3773, 2147483648
        %v3776 = vmul.f32 %v3775, 1.442695
        %v3777 = vpow.pop %v3776
        %v3778 = vadd.f32 %v3777, 1.0
        %v3779 = vrcp.pop %v3778
        %v3780 = vmul.f32 1.0, %v3779
        %v3781 = vmul.f32 %v3769, %v3371
        %v3782 = vmul.f32 %v3760, %v3772
        %v3783 = vadd.f32 %v3781, %v3782
        %v3784 = vtanh.pop %v3783
        %v3785 = vmul.f32 %v3780, %v3784
        %3786 = vst [vmem:[#allocation4 + $0x6] sm:$0x1] %v3754
        %3787 = vst [vmem:[#allocation5 + $0x1] sm:$0x1] %v3785
        %s3788 = scalar_lea.vmem [#allocation2], 7
        %v3789 = vld [vmem:[%s3788] ss:$8 sm:$0xf]
        %3790 = vmatprep.subr.mxu0 %v838
        %3791 = vmatpush1.msra.mxu0 %v837
        %3792 = vmatprep.subr.mxu0 %v834
        %3793 = vmatpush1.msra.mxu0 %v833
        %3794 = vmatprep.subr.mxu0 %v830
        %3795 = vmatpush1.msra.mxu0 %v829
        %3796 = vmatprep.subr.mxu0 %v826
        %3797 = vmatpush1.msra.mxu0 %v825
        %3798 = vmatprep.subr.mxu0 %v822
        %3799 = vmatpush1.msra.mxu0 %v821
        %3800 = vmatprep.subr.mxu0 %v818
        %3801 = vmatpush1.msra.mxu0 %v817
        %3802 = vmatprep.subr.mxu0 %v814
        %3803 = vmatpush1.msra.mxu0 %v813
        %3804 = vmatprep.subr.mxu0 %v810
        %3805 = vmatpush1.msra.mxu0 %v809
        %3806 = vmatprep.subr.mxu0 %v806
        %3807 = vmatpush1.msra.mxu0 %v805
        %3808 = vmatprep.subr.mxu0 %v802
        %3809 = vmatpush1.msra.mxu0 %v801
        %3810 = vmatprep.subr.mxu0 %v798
        %3811 = vmatpush1.msra.mxu0 %v797
        %3812 = vmatprep.subr.mxu0 %v794
        %3813 = vmatpush1.msra.mxu0 %v793
        %3814 = vmatprep.subr.mxu0 %v790
        %3815 = vmatpush1.msra.mxu0 %v789
        %3816 = vmatprep.subr.mxu0 %v786
        %3817 = vmatpush1.msra.mxu0 %v785
        %3818 = vmatprep.subr.mxu0 %v782
        %3819 = vmatpush1.msra.mxu0 %v781
        %3820 = vmatprep.subr.mxu0 %v778
        %3821 = vmatpush1.msra.mxu0 %v777
        %3822 = vmatprep.subr.mxu0 0.0
        %3823 = vmatpush2.msra.mxu0 0.0
        %3824 = vmatprep.subr.mxu0 0.0
        %3825 = vmatpush2.msra.mxu0 0.0
        %3826 = vmatprep.subr.mxu0 0.0
        %3827 = vmatpush2.msra.mxu0 0.0
        %3828 = vmatprep.subr.mxu0 0.0
        %3829 = vmatpush2.msra.mxu0 0.0
        %3830 = vmatprep.subr.mxu0 0.0
        %3831 = vmatpush2.msra.mxu0 0.0
        %3832 = vmatprep.subr.mxu0 0.0
        %3833 = vmatpush2.msra.mxu0 0.0
        %3834 = vmatprep.subr.mxu0 0.0
        %3835 = vmatpush2.msra.mxu0 0.0
        %3836 = vmatprep.subr.mxu0 0.0
        %3837 = vmatpush2.msra.mxu0 0.0
        %3838 = vmatprep.subr.mxu0 0.0
        %3839 = vmatpush2.msra.mxu0 0.0
        %3840 = vmatprep.subr.mxu0 0.0
        %3841 = vmatpush2.msra.mxu0 0.0
        %3842 = vmatprep.subr.mxu0 0.0
        %3843 = vmatpush2.msra.mxu0 0.0
        %3844 = vmatprep.subr.mxu0 0.0
        %3845 = vmatpush2.msra.mxu0 0.0
        %3846 = vmatprep.subr.mxu0 0.0
        %3847 = vmatpush2.msra.mxu0 0.0
        %3848 = vmatprep.subr.mxu0 0.0
        %3849 = vmatpush2.msra.mxu0 0.0
        %3850 = vmatprep.subr.mxu0 0.0
        %3851 = vmatpush2.msra.mxu0 0.0
        %3852 = vmatprep.subr.mxu0 0.0
        %3853 = vmatpush2.msra.mxu0 0.0
        %3854 = vmatprep.mubr.f32.mxu0 0.0
        %3855 = vmatmul.mubr.f32.gmra.mxu0 %v3754
        %v3856 = vpop.f32.mrf.mxu0
        %v3857 = vadd.f32 0.0, %v3856
        %v3858 = vpop.f32.mrf.mxu0
        %v3859 = vadd.f32 0.0, %v3858
        %3860 = vdwg.mxu0
        %3861 = vmatprep.subr.mxu0 %v840
        %3862 = vmatpush1.msra.mxu0 %v839
        %3863 = vmatprep.subr.mxu0 %v836
        %3864 = vmatpush1.msra.mxu0 %v835
        %3865 = vmatprep.subr.mxu0 %v832
        %3866 = vmatpush1.msra.mxu0 %v831
        %3867 = vmatprep.subr.mxu0 %v828
        %3868 = vmatpush1.msra.mxu0 %v827
        %3869 = vmatprep.subr.mxu0 %v824
        %3870 = vmatpush1.msra.mxu0 %v823
        %3871 = vmatprep.subr.mxu0 %v820
        %3872 = vmatpush1.msra.mxu0 %v819
        %3873 = vmatprep.subr.mxu0 %v816
        %3874 = vmatpush1.msra.mxu0 %v815
        %3875 = vmatprep.subr.mxu0 %v812
        %3876 = vmatpush1.msra.mxu0 %v811
        %3877 = vmatprep.subr.mxu0 %v808
        %3878 = vmatpush1.msra.mxu0 %v807
        %3879 = vmatprep.subr.mxu0 %v804
        %3880 = vmatpush1.msra.mxu0 %v803
        %3881 = vmatprep.subr.mxu0 %v800
        %3882 = vmatpush1.msra.mxu0 %v799
        %3883 = vmatprep.subr.mxu0 %v796
        %3884 = vmatpush1.msra.mxu0 %v795
        %3885 = vmatprep.subr.mxu0 %v792
        %3886 = vmatpush1.msra.mxu0 %v791
        %3887 = vmatprep.subr.mxu0 %v788
        %3888 = vmatpush1.msra.mxu0 %v787
        %3889 = vmatprep.subr.mxu0 %v784
        %3890 = vmatpush1.msra.mxu0 %v783
        %3891 = vmatprep.subr.mxu0 %v780
        %3892 = vmatpush1.msra.mxu0 %v779
        %3893 = vmatprep.subr.mxu0 0.0
        %3894 = vmatpush2.msra.mxu0 0.0
        %3895 = vmatprep.subr.mxu0 0.0
        %3896 = vmatpush2.msra.mxu0 0.0
        %3897 = vmatprep.subr.mxu0 0.0
        %3898 = vmatpush2.msra.mxu0 0.0
        %3899 = vmatprep.subr.mxu0 0.0
        %3900 = vmatpush2.msra.mxu0 0.0
        %3901 = vmatprep.subr.mxu0 0.0
        %3902 = vmatpush2.msra.mxu0 0.0
        %3903 = vmatprep.subr.mxu0 0.0
        %3904 = vmatpush2.msra.mxu0 0.0
        %3905 = vmatprep.subr.mxu0 0.0
        %3906 = vmatpush2.msra.mxu0 0.0
        %3907 = vmatprep.subr.mxu0 0.0
        %3908 = vmatpush2.msra.mxu0 0.0
        %3909 = vmatprep.subr.mxu0 0.0
        %3910 = vmatpush2.msra.mxu0 0.0
        %3911 = vmatprep.subr.mxu0 0.0
        %3912 = vmatpush2.msra.mxu0 0.0
        %3913 = vmatprep.subr.mxu0 0.0
        %3914 = vmatpush2.msra.mxu0 0.0
        %3915 = vmatprep.subr.mxu0 0.0
        %3916 = vmatpush2.msra.mxu0 0.0
        %3917 = vmatprep.subr.mxu0 0.0
        %3918 = vmatpush2.msra.mxu0 0.0
        %3919 = vmatprep.subr.mxu0 0.0
        %3920 = vmatpush2.msra.mxu0 0.0
        %3921 = vmatprep.subr.mxu0 0.0
        %3922 = vmatpush2.msra.mxu0 0.0
        %3923 = vmatprep.subr.mxu0 0.0
        %3924 = vmatpush2.msra.mxu0 0.0
        %3925 = vmatprep.mubr.f32.mxu0 0.0
        %3926 = vmatmul.mubr.f32.gmra.mxu0 %v3754
        %v3927 = vpop.f32.mrf.mxu0
        %v3928 = vadd.f32 0.0, %v3927
        %v3929 = vpop.f32.mrf.mxu0
        %v3930 = vadd.f32 0.0, %v3929
        %3931 = vdwg.mxu0
        %v3936 = vcombine.low %v3857, %v3859
        %v3937 = vcombine.low %v3928, %v3930
        %v3939 = vunpack.c.l.s4 1966171168
        %v3940 = vunpack.c.0.s8 %v3939
        %v3941 = vlaneseq
        %v3942 = vshrl.u32 %v3941, 7
        %v3943 = vsub.s32 %v3940, %v3942
        %v3944 = vrot.slane %v3936, %v3943
        %v3946 = vunpack.c.l.s4 1966171168
        %v3947 = vunpack.c.0.s8 %v3946
        %v3948 = vlaneseq
        %v3949 = vshrl.u32 %v3948, 7
        %v3950 = vsub.s32 %v3947, %v3949
        %v3951 = vrot.slane %v3937, %v3950
        %v3952 = vcombine.low %v3944, %v3951
        %v3954 = vunpack.c.l.s4 1966171168
        %v3955 = vunpack.c.0.s8 %v3954
        %v3956 = vlaneseq
        %v3957 = vshrl.u32 %v3956, 7
        %v3958 = vsub.s32 %v3955, %v3957
        %v3959 = vrot.slane %v3952, %v3958
        %v3961 = vadd.f32 %v3789, %v3959
        %v3962 = vld [vmem:[#allocation3] ss:$8 sm:$0xf]
        %3963 = vmatprep.subr.mxu0 %v902
        %3964 = vmatpush1.msra.mxu0 %v901
        %3965 = vmatprep.subr.mxu0 %v898
        %3966 = vmatpush1.msra.mxu0 %v897
        %3967 = vmatprep.subr.mxu0 %v894
        %3968 = vmatpush1.msra.mxu0 %v893
        %3969 = vmatprep.subr.mxu0 %v890
        %3970 = vmatpush1.msra.mxu0 %v889
        %3971 = vmatprep.subr.mxu0 %v886
        %3972 = vmatpush1.msra.mxu0 %v885
        %3973 = vmatprep.subr.mxu0 %v882
        %3974 = vmatpush1.msra.mxu0 %v881
        %3975 = vmatprep.subr.mxu0 %v878
        %3976 = vmatpush1.msra.mxu0 %v877
        %3977 = vmatprep.subr.mxu0 %v874
        %3978 = vmatpush1.msra.mxu0 %v873
        %3979 = vmatprep.subr.mxu0 %v870
        %3980 = vmatpush1.msra.mxu0 %v869
        %3981 = vmatprep.subr.mxu0 %v866
        %3982 = vmatpush1.msra.mxu0 %v865
        %3983 = vmatprep.subr.mxu0 %v862
        %3984 = vmatpush1.msra.mxu0 %v861
        %3985 = vmatprep.subr.mxu0 %v858
        %3986 = vmatpush1.msra.mxu0 %v857
        %3987 = vmatprep.subr.mxu0 %v854
        %3988 = vmatpush1.msra.mxu0 %v853
        %3989 = vmatprep.subr.mxu0 %v850
        %3990 = vmatpush1.msra.mxu0 %v849
        %3991 = vmatprep.subr.mxu0 %v846
        %3992 = vmatpush1.msra.mxu0 %v845
        %3993 = vmatprep.subr.mxu0 %v842
        %3994 = vmatpush1.msra.mxu0 %v841
        %3995 = vmatprep.subr.mxu0 0.0
        %3996 = vmatpush2.msra.mxu0 0.0
        %3997 = vmatprep.subr.mxu0 0.0
        %3998 = vmatpush2.msra.mxu0 0.0
        %3999 = vmatprep.subr.mxu0 0.0
        %4000 = vmatpush2.msra.mxu0 0.0
        %4001 = vmatprep.subr.mxu0 0.0
        %4002 = vmatpush2.msra.mxu0 0.0
        %4003 = vmatprep.subr.mxu0 0.0
        %4004 = vmatpush2.msra.mxu0 0.0
        %4005 = vmatprep.subr.mxu0 0.0
        %4006 = vmatpush2.msra.mxu0 0.0
        %4007 = vmatprep.subr.mxu0 0.0
        %4008 = vmatpush2.msra.mxu0 0.0
        %4009 = vmatprep.subr.mxu0 0.0
        %4010 = vmatpush2.msra.mxu0 0.0
        %4011 = vmatprep.subr.mxu0 0.0
        %4012 = vmatpush2.msra.mxu0 0.0
        %4013 = vmatprep.subr.mxu0 0.0
        %4014 = vmatpush2.msra.mxu0 0.0
        %4015 = vmatprep.subr.mxu0 0.0
        %4016 = vmatpush2.msra.mxu0 0.0
        %4017 = vmatprep.subr.mxu0 0.0
        %4018 = vmatpush2.msra.mxu0 0.0
        %4019 = vmatprep.subr.mxu0 0.0
        %4020 = vmatpush2.msra.mxu0 0.0
        %4021 = vmatprep.subr.mxu0 0.0
        %4022 = vmatpush2.msra.mxu0 0.0
        %4023 = vmatprep.subr.mxu0 0.0
        %4024 = vmatpush2.msra.mxu0 0.0
        %4025 = vmatprep.subr.mxu0 0.0
        %4026 = vmatpush2.msra.mxu0 0.0
        %4027 = vmatprep.mubr.f32.mxu0 0.0
        %4028 = vmatmul.mubr.f32.gmra.mxu0 %v3785
        %v4029 = vpop.f32.mrf.mxu0
        %v4030 = vadd.f32 0.0, %v4029
        %v4031 = vpop.f32.mrf.mxu0
        %v4032 = vadd.f32 0.0, %v4031
        %4033 = vdwg.mxu0
        %4034 = vmatprep.subr.mxu0 %v904
        %4035 = vmatpush1.msra.mxu0 %v903
        %4036 = vmatprep.subr.mxu0 %v900
        %4037 = vmatpush1.msra.mxu0 %v899
        %4038 = vmatprep.subr.mxu0 %v896
        %4039 = vmatpush1.msra.mxu0 %v895
        %4040 = vmatprep.subr.mxu0 %v892
        %4041 = vmatpush1.msra.mxu0 %v891
        %4042 = vmatprep.subr.mxu0 %v888
        %4043 = vmatpush1.msra.mxu0 %v887
        %4044 = vmatprep.subr.mxu0 %v884
        %4045 = vmatpush1.msra.mxu0 %v883
        %4046 = vmatprep.subr.mxu0 %v880
        %4047 = vmatpush1.msra.mxu0 %v879
        %4048 = vmatprep.subr.mxu0 %v876
        %4049 = vmatpush1.msra.mxu0 %v875
        %4050 = vmatprep.subr.mxu0 %v872
        %4051 = vmatpush1.msra.mxu0 %v871
        %4052 = vmatprep.subr.mxu0 %v868
        %4053 = vmatpush1.msra.mxu0 %v867
        %4054 = vmatprep.subr.mxu0 %v864
        %4055 = vmatpush1.msra.mxu0 %v863
        %4056 = vmatprep.subr.mxu0 %v860
        %4057 = vmatpush1.msra.mxu0 %v859
        %4058 = vmatprep.subr.mxu0 %v856
        %4059 = vmatpush1.msra.mxu0 %v855
        %4060 = vmatprep.subr.mxu0 %v852
        %4061 = vmatpush1.msra.mxu0 %v851
        %4062 = vmatprep.subr.mxu0 %v848
        %4063 = vmatpush1.msra.mxu0 %v847
        %4064 = vmatprep.subr.mxu0 %v844
        %4065 = vmatpush1.msra.mxu0 %v843
        %4066 = vmatprep.subr.mxu0 0.0
        %4067 = vmatpush2.msra.mxu0 0.0
        %4068 = vmatprep.subr.mxu0 0.0
        %4069 = vmatpush2.msra.mxu0 0.0
        %4070 = vmatprep.subr.mxu0 0.0
        %4071 = vmatpush2.msra.mxu0 0.0
        %4072 = vmatprep.subr.mxu0 0.0
        %4073 = vmatpush2.msra.mxu0 0.0
        %4074 = vmatprep.subr.mxu0 0.0
        %4075 = vmatpush2.msra.mxu0 0.0
        %4076 = vmatprep.subr.mxu0 0.0
        %4077 = vmatpush2.msra.mxu0 0.0
        %4078 = vmatprep.subr.mxu0 0.0
        %4079 = vmatpush2.msra.mxu0 0.0
        %4080 = vmatprep.subr.mxu0 0.0
        %4081 = vmatpush2.msra.mxu0 0.0
        %4082 = vmatprep.subr.mxu0 0.0
        %4083 = vmatpush2.msra.mxu0 0.0
        %4084 = vmatprep.subr.mxu0 0.0
        %4085 = vmatpush2.msra.mxu0 0.0
        %4086 = vmatprep.subr.mxu0 0.0
        %4087 = vmatpush2.msra.mxu0 0.0
        %4088 = vmatprep.subr.mxu0 0.0
        %4089 = vmatpush2.msra.mxu0 0.0
        %4090 = vmatprep.subr.mxu0 0.0
        %4091 = vmatpush2.msra.mxu0 0.0
        %4092 = vmatprep.subr.mxu0 0.0
        %4093 = vmatpush2.msra.mxu0 0.0
        %4094 = vmatprep.subr.mxu0 0.0
        %4095 = vmatpush2.msra.mxu0 0.0
        %4096 = vmatprep.subr.mxu0 0.0
        %4097 = vmatpush2.msra.mxu0 0.0
        %4098 = vmatprep.mubr.f32.mxu0 0.0
        %4099 = vmatmul.mubr.f32.gmra.mxu0 %v3785
        %v4100 = vpop.f32.mrf.mxu0
        %v4101 = vadd.f32 0.0, %v4100
        %v4102 = vpop.f32.mrf.mxu0
        %v4103 = vadd.f32 0.0, %v4102
        %4104 = vdwg.mxu0
        %v4109 = vcombine.low %v4030, %v4032
        %v4110 = vcombine.low %v4101, %v4103
        %v4112 = vunpack.c.l.s4 1966171168
        %v4113 = vunpack.c.0.s8 %v4112
        %v4114 = vlaneseq
        %v4115 = vshrl.u32 %v4114, 7
        %v4116 = vsub.s32 %v4113, %v4115
        %v4117 = vrot.slane %v4109, %v4116
        %v4119 = vunpack.c.l.s4 1966171168
        %v4120 = vunpack.c.0.s8 %v4119
        %v4121 = vlaneseq
        %v4122 = vshrl.u32 %v4121, 7
        %v4123 = vsub.s32 %v4120, %v4122
        %v4124 = vrot.slane %v4110, %v4123
        %v4125 = vcombine.low %v4117, %v4124
        %v4127 = vunpack.c.l.s4 1966171168
        %v4128 = vunpack.c.0.s8 %v4127
        %v4129 = vlaneseq
        %v4130 = vshrl.u32 %v4129, 7
        %v4131 = vsub.s32 %v4128, %v4130
        %v4132 = vrot.slane %v4125, %v4131
        %v4134 = vadd.f32 %v3962, %v4132
        %v4135 = vxor.u32 %v3961, 2147483648
        %v4136 = vmul.f32 %v4135, 1.442695
        %v4137 = vpow.pop %v4136
        %v4138 = vadd.f32 %v4137, 1.0
        %v4139 = vrcp.pop %v4138
        %v4140 = vmul.f32 1.0, %v4139
        %v4142 = vrot.slane %v3961, 1
        %v4144 = vxor.u32 %v4142, 2147483648
        %v4145 = vmul.f32 %v4144, 1.442695
        %v4146 = vpow.pop %v4145
        %v4147 = vadd.f32 %v4146, 1.0
        %v4148 = vrcp.pop %v4147
        %v4149 = vmul.f32 1.0, %v4148
        %v4150 = vrot.slane %v3961, 2
        %v4152 = vtanh.pop %v4150
        %v4153 = vrot.slane %v3961, 3
        %v4155 = vxor.u32 %v4153, 2147483648
        %v4156 = vmul.f32 %v4155, 1.442695
        %v4157 = vpow.pop %v4156
        %v4158 = vadd.f32 %v4157, 1.0
        %v4159 = vrcp.pop %v4158
        %v4160 = vmul.f32 1.0, %v4159
        %v4161 = vmul.f32 %v4149, %v3752
        %v4162 = vmul.f32 %v4140, %v4152
        %v4163 = vadd.f32 %v4161, %v4162
        %v4164 = vtanh.pop %v4163
        %v4165 = vmul.f32 %v4160, %v4164
        %v4166 = vxor.u32 %v4134, 2147483648
        %v4167 = vmul.f32 %v4166, 1.442695
        %v4168 = vpow.pop %v4167
        %v4169 = vadd.f32 %v4168, 1.0
        %v4170 = vrcp.pop %v4169
        %v4171 = vmul.f32 1.0, %v4170
        %v4173 = vrot.slane %v4134, 1
        %v4175 = vxor.u32 %v4173, 2147483648
        %v4176 = vmul.f32 %v4175, 1.442695
        %v4177 = vpow.pop %v4176
        %v4178 = vadd.f32 %v4177, 1.0
        %v4179 = vrcp.pop %v4178
        %v4180 = vmul.f32 1.0, %v4179
        %v4181 = vrot.slane %v4134, 2
        %v4183 = vtanh.pop %v4181
        %v4184 = vrot.slane %v4134, 3
        %v4186 = vxor.u32 %v4184, 2147483648
        %v4187 = vmul.f32 %v4186, 1.442695
        %v4188 = vpow.pop %v4187
        %v4189 = vadd.f32 %v4188, 1.0
        %v4190 = vrcp.pop %v4189
        %v4191 = vmul.f32 1.0, %v4190
        %v4192 = vmul.f32 %v4180, %v3783
        %v4193 = vmul.f32 %v4171, %v4183
        %v4194 = vadd.f32 %v4192, %v4193
        %v4195 = vtanh.pop %v4194
        %v4196 = vmul.f32 %v4191, %v4195
        %4197 = vst [vmem:[#allocation4 + $0x7] sm:$0x1] %v4165
        %4198 = vst [vmem:[#allocation5] sm:$0x1] %v4196
        %v4199 = vld [vmem:[#allocation4] sm:$0xff]
        %v4200 = vld [vmem:[#allocation15] sm:$0xff]
        %v4201 = vld [vmem:[#allocation15 + $0x8] sm:$0xff]
        %v4202 = vld [vmem:[#allocation15 + $0x10] sm:$0xff]
        %v4203 = vld [vmem:[#allocation15 + $0x18] sm:$0xff]
        %v4204 = vld [vmem:[#allocation15 + $0x20] sm:$0xff]
        %v4205 = vld [vmem:[#allocation15 + $0x28] sm:$0xff]
        %v4206 = vld [vmem:[#allocation15 + $0x30] sm:$0xff]
        %v4207 = vld [vmem:[#allocation15 + $0x38] sm:$0xff]
        %v4208 = vld [vmem:[#allocation15 + $0x40] sm:$0xff]
        %v4209 = vld [vmem:[#allocation15 + $0x48] sm:$0xff]
        %v4210 = vld [vmem:[#allocation15 + $0x50] sm:$0xff]
        %v4211 = vld [vmem:[#allocation15 + $0x58] sm:$0xff]
        %v4212 = vld [vmem:[#allocation15 + $0x60] sm:$0xff]
        %v4213 = vld [vmem:[#allocation15 + $0x68] sm:$0xff]
        %v4214 = vld [vmem:[#allocation15 + $0x70] sm:$0xff]
        %v4215 = vld [vmem:[#allocation15 + $0x78] sm:$0xff]
        %v4216 = vld [vmem:[#allocation5] sm:$0xff]
        %v4217 = vld [vmem:[#allocation17] sm:$0xff]
        %v4218 = vld [vmem:[#allocation17 + $0x8] sm:$0xff]
        %v4219 = vld [vmem:[#allocation17 + $0x10] sm:$0xff]
        %v4220 = vld [vmem:[#allocation17 + $0x18] sm:$0xff]
        %v4221 = vld [vmem:[#allocation17 + $0x20] sm:$0xff]
        %v4222 = vld [vmem:[#allocation17 + $0x28] sm:$0xff]
        %v4223 = vld [vmem:[#allocation17 + $0x30] sm:$0xff]
        %v4224 = vld [vmem:[#allocation17 + $0x38] sm:$0xff]
        %v4225 = vld [vmem:[#allocation17 + $0x40] sm:$0xff]
        %v4226 = vld [vmem:[#allocation17 + $0x48] sm:$0xff]
        %v4227 = vld [vmem:[#allocation17 + $0x50] sm:$0xff]
        %v4228 = vld [vmem:[#allocation17 + $0x58] sm:$0xff]
        %v4229 = vld [vmem:[#allocation17 + $0x60] sm:$0xff]
        %v4230 = vld [vmem:[#allocation17 + $0x68] sm:$0xff]
        %v4231 = vld [vmem:[#allocation17 + $0x70] sm:$0xff]
        %v4232 = vld [vmem:[#allocation17 + $0x78] sm:$0xff]
        %4233 = vmatprep.subr.mxu0 0.0
        %4234 = vmatpush1.msra.mxu0 %v4232
        %4235 = vmatprep.subr.mxu0 0.0
        %4236 = vmatpush1.msra.mxu0 %v4231
        %4237 = vmatprep.subr.mxu0 0.0
        %4238 = vmatpush1.msra.mxu0 %v4230
        %4239 = vmatprep.subr.mxu0 0.0
        %4240 = vmatpush1.msra.mxu0 %v4229
        %4241 = vmatprep.subr.mxu0 0.0
        %4242 = vmatpush1.msra.mxu0 %v4228
        %4243 = vmatprep.subr.mxu0 0.0
        %4244 = vmatpush1.msra.mxu0 %v4227
        %4245 = vmatprep.subr.mxu0 0.0
        %4246 = vmatpush1.msra.mxu0 %v4226
        %4247 = vmatprep.subr.mxu0 0.0
        %4248 = vmatpush1.msra.mxu0 %v4225
        %4249 = vmatprep.subr.mxu0 0.0
        %4250 = vmatpush1.msra.mxu0 %v4224
        %4251 = vmatprep.subr.mxu0 0.0
        %4252 = vmatpush1.msra.mxu0 %v4223
        %4253 = vmatprep.subr.mxu0 0.0
        %4254 = vmatpush1.msra.mxu0 %v4222
        %4255 = vmatprep.subr.mxu0 0.0
        %4256 = vmatpush1.msra.mxu0 %v4221
        %4257 = vmatprep.subr.mxu0 0.0
        %4258 = vmatpush1.msra.mxu0 %v4220
        %4259 = vmatprep.subr.mxu0 0.0
        %4260 = vmatpush1.msra.mxu0 %v4219
        %4261 = vmatprep.subr.mxu0 0.0
        %4262 = vmatpush1.msra.mxu0 %v4218
        %4263 = vmatprep.subr.mxu0 0.0
        %4264 = vmatpush1.msra.mxu0 %v4217
        %4265 = vmatprep.subr.mxu0 0.0
        %4266 = vmatpush2.msra.mxu0 0.0
        %4267 = vmatprep.subr.mxu0 0.0
        %4268 = vmatpush2.msra.mxu0 0.0
        %4269 = vmatprep.subr.mxu0 0.0
        %4270 = vmatpush2.msra.mxu0 0.0
        %4271 = vmatprep.subr.mxu0 0.0
        %4272 = vmatpush2.msra.mxu0 0.0
        %4273 = vmatprep.subr.mxu0 0.0
        %4274 = vmatpush2.msra.mxu0 0.0
        %4275 = vmatprep.subr.mxu0 0.0
        %4276 = vmatpush2.msra.mxu0 0.0
        %4277 = vmatprep.subr.mxu0 0.0
        %4278 = vmatpush2.msra.mxu0 0.0
        %4279 = vmatprep.subr.mxu0 0.0
        %4280 = vmatpush2.msra.mxu0 0.0
        %4281 = vmatprep.subr.mxu0 0.0
        %4282 = vmatpush2.msra.mxu0 0.0
        %4283 = vmatprep.subr.mxu0 0.0
        %4284 = vmatpush2.msra.mxu0 0.0
        %4285 = vmatprep.subr.mxu0 0.0
        %4286 = vmatpush2.msra.mxu0 0.0
        %4287 = vmatprep.subr.mxu0 0.0
        %4288 = vmatpush2.msra.mxu0 0.0
        %4289 = vmatprep.subr.mxu0 0.0
        %4290 = vmatpush2.msra.mxu0 0.0
        %4291 = vmatprep.subr.mxu0 0.0
        %4292 = vmatpush2.msra.mxu0 0.0
        %4293 = vmatprep.subr.mxu0 0.0
        %4294 = vmatpush2.msra.mxu0 0.0
        %4295 = vmatprep.subr.mxu0 0.0
        %4296 = vmatpush2.msra.mxu0 0.0
        %4297 = vmatprep.mubr.f32.mxu0 0.0
        %4298 = vmatmul.mubr.f32.gmra.mxu0 %v4216
        %v4299 = vpop.f32.mrf.mxu0
        %v4300 = vadd.f32 0.0, %v4299
        %v4301 = vpop.f32.mrf.mxu0
        %4302 = vdwg.mxu0
        %4303 = vmatprep.subr.mxu0 0.0
        %4304 = vmatpush1.msra.mxu0 %v4215
        %4305 = vmatprep.subr.mxu0 0.0
        %4306 = vmatpush1.msra.mxu0 %v4214
        %4307 = vmatprep.subr.mxu0 0.0
        %4308 = vmatpush1.msra.mxu0 %v4213
        %4309 = vmatprep.subr.mxu0 0.0
        %4310 = vmatpush1.msra.mxu0 %v4212
        %4311 = vmatprep.subr.mxu0 0.0
        %4312 = vmatpush1.msra.mxu0 %v4211
        %4313 = vmatprep.subr.mxu0 0.0
        %4314 = vmatpush1.msra.mxu0 %v4210
        %4315 = vmatprep.subr.mxu0 0.0
        %4316 = vmatpush1.msra.mxu0 %v4209
        %4317 = vmatprep.subr.mxu0 0.0
        %4318 = vmatpush1.msra.mxu0 %v4208
        %4319 = vmatprep.subr.mxu0 0.0
        %4320 = vmatpush1.msra.mxu0 %v4207
        %4321 = vmatprep.subr.mxu0 0.0
        %4322 = vmatpush1.msra.mxu0 %v4206
        %4323 = vmatprep.subr.mxu0 0.0
        %4324 = vmatpush1.msra.mxu0 %v4205
        %4325 = vmatprep.subr.mxu0 0.0
        %4326 = vmatpush1.msra.mxu0 %v4204
        %4327 = vmatprep.subr.mxu0 0.0
        %4328 = vmatpush1.msra.mxu0 %v4203
        %4329 = vmatprep.subr.mxu0 0.0
        %4330 = vmatpush1.msra.mxu0 %v4202
        %4331 = vmatprep.subr.mxu0 0.0
        %4332 = vmatpush1.msra.mxu0 %v4201
        %4333 = vmatprep.subr.mxu0 0.0
        %4334 = vmatpush1.msra.mxu0 %v4200
        %4335 = vmatprep.subr.mxu0 0.0
        %4336 = vmatpush2.msra.mxu0 0.0
        %4337 = vmatprep.subr.mxu0 0.0
        %4338 = vmatpush2.msra.mxu0 0.0
        %4339 = vmatprep.subr.mxu0 0.0
        %4340 = vmatpush2.msra.mxu0 0.0
        %4341 = vmatprep.subr.mxu0 0.0
        %4342 = vmatpush2.msra.mxu0 0.0
        %4343 = vmatprep.subr.mxu0 0.0
        %4344 = vmatpush2.msra.mxu0 0.0
        %4345 = vmatprep.subr.mxu0 0.0
        %4346 = vmatpush2.msra.mxu0 0.0
        %4347 = vmatprep.subr.mxu0 0.0
        %4348 = vmatpush2.msra.mxu0 0.0
        %4349 = vmatprep.subr.mxu0 0.0
        %4350 = vmatpush2.msra.mxu0 0.0
        %4351 = vmatprep.subr.mxu0 0.0
        %4352 = vmatpush2.msra.mxu0 0.0
        %4353 = vmatprep.subr.mxu0 0.0
        %4354 = vmatpush2.msra.mxu0 0.0
        %4355 = vmatprep.subr.mxu0 0.0
        %4356 = vmatpush2.msra.mxu0 0.0
        %4357 = vmatprep.subr.mxu0 0.0
        %4358 = vmatpush2.msra.mxu0 0.0
        %4359 = vmatprep.subr.mxu0 0.0
        %4360 = vmatpush2.msra.mxu0 0.0
        %4361 = vmatprep.subr.mxu0 0.0
        %4362 = vmatpush2.msra.mxu0 0.0
        %4363 = vmatprep.subr.mxu0 0.0
        %4364 = vmatpush2.msra.mxu0 0.0
        %4365 = vmatprep.subr.mxu0 0.0
        %4366 = vmatpush2.msra.mxu0 0.0
        %4367 = vmatprep.mubr.f32.mxu0 0.0
        %4368 = vmatmul.mubr.f32.gmra.mxu0 %v4199
        %v4369 = vpop.f32.mrf.mxu0
        %v4370 = vadd.f32 %v4300, %v4369
        %v4371 = vpop.f32.mrf.mxu0
        %4372 = vdwg.mxu0
        %v4373 = vld [vmem:[%s7] sm:$0x1]
        %v4375 = vlaneseq
        %v4376 = vshrl.u32 %v4375, 7
        %v4377 = vsub.s32 0, %v4376
        %v4378 = vrot.slane %v4373, %v4377
        %v4380 = vadd.f32 %v4370, %v4378
        %4381 = vst [vmem:[%s405] sm:$0xff] %v4380
        %s4382 = sand.u32 %s209, 1
        %s4383 = scalar_lea.sflag [#allocation8], %s4382
        %s4384 = sand.u32 %s209, 1
        %s4385 = smul.addr %s4384, 8
        %s4386 = scalar_lea.vmem [#allocation18], %s4385
        // Predicated region
        $region81: #{tpu_custom_call.1} parent=51 // pred_check
          %p4387 = pneg %p219
        $region82: #{tpu_custom_call.1} parent=51 // pred_check_branch
          %4389 = sbr.rel (%p4387) target = $region84
        $region83: #{tpu_custom_call.1} parent=51 // pred_region
          %s4391 = ssub.s32 128, 128
          %4392 = vsyncadd %s4383, %s4391
          %s4393 = smul.addr %s28, 128
          %s4394 = scalar_lea.hbm %s8, %s4393
          %s4396 = sshll.u32 %s4386, 4
          %s4397 = int_to_ptr.vmem [resolvable:$true] %s4396
          %4399 = dma.vmem_to_hbm [thread:$0]  %s4397, 128, %s4394, %s4383
        $region84: #{tpu_custom_call.1} parent=51 // pred_fallthru
          _
      $region52: #{tpu_custom_call.1} parent=5 // pred_fallthru
        _
      %p4400 = scmp.le.s32.totalorder 2, %s23
      // Predicated region
      $region85: #{tpu_custom_call.1} parent=5 // pred_check
        %p4401 = pneg %p4400
      $region86: #{tpu_custom_call.1} parent=5 // pred_check_branch
        %4403 = sbr.rel (%p4401) target = $region88
      $region87: #{tpu_custom_call.1} parent=5 // pred_region
        %s4404 = ssub.s32 %s23, 2
        // Predicated region
        $region89: #{tpu_custom_call.1} parent=87 // pred_check
          %p4405 = pneg %p225
        $region90: #{tpu_custom_call.1} parent=87 // pred_check_branch
          %4407 = sbr.rel (%p4405) target = $region92
        $region91: #{tpu_custom_call.1} parent=87 // pred_region
          %s4408 = sand.u32 %s210, 1
          %s4409 = scalar_lea.sflag [#allocation8], %s4408
          %s4410 = sand.u32 %s210, 1
          %s4411 = smul.addr %s4410, 8
          %s4412 = scalar_lea.vmem [#allocation18], %s4411
          %4413 = dma.done %s4409, 128
        $region92: #{tpu_custom_call.1} parent=87 // pred_fallthru
          _
      $region88: #{tpu_custom_call.1} parent=5 // pred_fallthru
        _
    $region6: #{tpu_custom_call.1} parent=1 // loop_footer
      %s27 = sadd.s32 1, %s23
    $region7: #{tpu_custom_call.1} parent=1 // loop_footer_branch
      %22 = sbr.rel target = $region3
    $region8: #{tpu_custom_call.1} parent=1 // loop_exit
      _
    %4414 = vsyncpa [#allocation7], 1
    %s4415 = scalar_lea.sflag [#allocation7], 1
    %4416 = vsyncpa %s4415, 1
    %4417 = vsyncpa [#allocation10], 1
    %4418 = vsyncpa [#allocation13], 1
    %4419 = vsyncpa [#allocation16], 1
    %4420 = vsyncpa [#allocation8], 1
    %s4421 = scalar_lea.sflag [#allocation8], 1
    %4422 = vsyncpa %s4421, 1

</llo_original>
